<compile_context>
chip_gen: v5e
topology: v5e:2x2
jax: 0.10.0
libtpu: 0.0.40
codegen_flags: <defaults>
</compile_context>

<pallas_src>
import jax
import jax.numpy as jnp
from jax import lax
from jax.experimental import pallas as pl
from jax.experimental.pallas import tpu as pltpu


# ----------------------------------------------------------------------------
# Fused kernel: 2-layer LSTM recurrence + FC head, everything resident in VMEM.
# ----------------------------------------------------------------------------
def _fused_lstm_kernel(x_ref, wih0_ref, whh0_ref, b0_ref,
                       wih1_ref, whh1_ref, b1_ref,
                       fc1w_ref, fc1b_ref, fc2w_ref, fc2b_ref,
                       out_ref,
                       gx_scr, h1_scr, h_scr, c_scr):
    """Shapes (B = padded batch, T = seq len, F = input size, H = hidden, C = classes):
      x_ref:  (B, T, F)
      wih0: (F, 4H)  whh0: (H, 4H)  b0: (1, 4H)   (b_ih + b_hh folded)
      wih1: (H, 4H)  whh1: (H, 4H)  b1: (1, 4H)
      fc1w: (H, 64)  fc1b: (1, 64)  fc2w: (64, C)  fc2b: (1, C)
      out_ref: (B, C)
      gx_scr: (T, B, 4H) hoisted input-projection gates (reused by both layers)
      h1_scr: (T, B, H)  layer-0 hidden sequence (input to layer 1), VMEM only
      h_scr, c_scr: (B, H) recurrent state (reused by both layers)
    """
    B, T, F = x_ref.shape
    H = whh0_ref.shape[0]

    def cell(gates, c_prev):
        # PyTorch gate order: [i, f, g, o]
        i_g = jax.nn.sigmoid(gates[:, 0 * H:1 * H])
        f_g = jax.nn.sigmoid(gates[:, 1 * H:2 * H])
        g_g = jnp.tanh(gates[:, 2 * H:3 * H])
        o_g = jax.nn.sigmoid(gates[:, 3 * H:4 * H])
        c_new = f_g * c_prev + i_g * g_g
        h_new = o_g * jnp.tanh(c_new)
        return h_new, c_new

    # ---- Layer 0: hoisted input projection, one (B*T, F) @ (F, 4H) matmul ----
    x_all = x_ref[...].reshape(B * T, F)
    g0_all = jnp.dot(x_all, wih0_ref[...],
                     preferred_element_type=jnp.float32) + b0_ref[...]
    g0_btg = g0_all.reshape(B, T, 4 * H)
    # Repack to time-major (T, B, 4H) with static-slice copies (cheap; avoids a
    # general 3-D relayout/transpose inside the kernel).
    for t in range(T):
        gx_scr[t] = g0_btg[:, t, :]

    # ---- Layer 0 recurrence: only h_prev @ W_hh is on the serial path ----
    h_scr[...] = jnp.zeros_like(h_scr)
    c_scr[...] = jnp.zeros_like(c_scr)

    def step0(t, carry):
        gates = gx_scr[t] + jnp.dot(h_scr[...], whh0_ref[...],
                                    preferred_element_type=jnp.float32)
        h_new, c_new = cell(gates, c_scr[...])
        h_scr[...] = h_new
        c_scr[...] = c_new
        h1_scr[t] = h_new            # stays in VMEM; never touches HBM
        return carry

    lax.fori_loop(0, T, step0, 0, unroll=True)

    # ---- Layer 1: hoisted input projection over the whole layer-0 sequence ----
    # (inter-layer dropout is identity in eval mode)
    h1_all = h1_scr[...].reshape(T * B, H)
    g1_all = jnp.dot(h1_all, wih1_ref[...],
                     preferred_element_type=jnp.float32) + b1_ref[...]
    gx_scr[...] = g1_all.reshape(T, B, 4 * H)   # already time-major; reuse scratch

    # ---- Layer 1 recurrence (only the last hidden state is needed) ----
    h_scr[...] = jnp.zeros_like(h_scr)
    c_scr[...] = jnp.zeros_like(c_scr)

    def step1(t, carry):
        gates = gx_scr[t] + jnp.dot(h_scr[...], whh1_ref[...],
                                    preferred_element_type=jnp.float32)
        h_new, c_new = cell(gates, c_scr[...])
        h_scr[...] = h_new
        c_scr[...] = c_new
        return carry

    lax.fori_loop(0, T, step1, 0, unroll=True)

    # ---- FC head: Linear(H, 64) -> ReLU -> (Dropout = id) -> Linear(64, C) ----
    z = jnp.dot(h_scr[...], fc1w_ref[...],
                preferred_element_type=jnp.float32) + fc1b_ref[...]
    z = jnp.maximum(z, 0.0)
    logits = jnp.dot(z, fc2w_ref[...],
                     preferred_element_type=jnp.float32) + fc2b_ref[...]
    out_ref[...] = logits.astype(out_ref.dtype)


# ----------------------------------------------------------------------------
# Wrapper: batch padding + single fused pallas_call.
# ----------------------------------------------------------------------------
@jax.jit
def enhanced_lstm_net_forward(x_btf, params):
    """x_btf: (B, T, input_size) float32 (PyTorch batch_first layout).
    Returns logits: (B, num_classes)."""
    B, T, F = x_btf.shape
    H = params["w_hh0"].shape[0]
    C = params["fc2_w"].shape[1]

    # Pad batch to the f32 sublane multiple (8) so vreg/MXU rows carry data.
    B_pad = ((B + 7) // 8) * 8
    if B_pad != B:
        x_btf = jnp.pad(x_btf, ((0, B_pad - B), (0, 0), (0, 0)))

    logits = pl.pallas_call(
        _fused_lstm_kernel,
        out_shape=jax.ShapeDtypeStruct((B_pad, C), jnp.float32),
        scratch_shapes=[
            pltpu.VMEM((T, B_pad, 4 * H), jnp.float32),  # hoisted gate projections
            pltpu.VMEM((T, B_pad, H), jnp.float32),      # layer-0 hidden sequence
            pltpu.VMEM((B_pad, H), jnp.float32),         # h state
            pltpu.VMEM((B_pad, H), jnp.float32),         # c state
        ],
    )(x_btf,
      params["w_ih0"], params["w_hh0"], params["b0"],
      params["w_ih1"], params["w_hh1"], params["b1"],
      params["fc1_w"], params["fc1_b"], params["fc2_w"], params["fc2_b"])
    return logits[:B]


# ----------------------------------------------------------------------------
# Parameter construction (deterministic).  Gate weights stored pre-transposed:
# w_ih*: (F or H, 4H), w_hh*: (H, 4H); b* = b_ih + b_hh folded, shape (1, 4H).
# ----------------------------------------------------------------------------
def init_params(key, input_size, hidden_size, num_classes):
    H = hidden_size
    scale = 1.0 / jnp.sqrt(jnp.float32(H))
    keys = jax.random.split(key, 12)

    def u(k, shape):
        return jax.random.uniform(k, shape, jnp.float32, -scale, scale)

    return {
        "w_ih0": u(keys[0], (input_size, 4 * H)),
        "w_hh0": u(keys[1], (H, 4 * H)),
        "b0":    u(keys[2], (1, 4 * H)) + u(keys[3], (1, 4 * H)),
        "w_ih1": u(keys[4], (H, 4 * H)),
        "w_hh1": u(keys[5], (H, 4 * H)),
        "b1":    u(keys[6], (1, 4 * H)) + u(keys[7], (1, 4 * H)),
        "fc1_w": u(keys[8], (H, 64)),
        "fc1_b": u(keys[9], (1, 64)),
        "fc2_w": u(keys[10], (64, num_classes)),
        "fc2_b": u(keys[11], (1, num_classes)),
    }


# ----------------------------------------------------------------------------
# Pure-JAX reference (XLA) for numerical validation.
# ----------------------------------------------------------------------------
def _reference_forward(x, params):
    B, T, F = x.shape
    H = params["w_hh0"].shape[0]
    hp = jax.lax.Precision.HIGHEST

    def run_layer(seq_btf, wih, whh, b):
        def step(carry, x_t):
            h, c = carry
            gates = (jnp.dot(x_t, wih, precision=hp)
                     + jnp.dot(h, whh, precision=hp) + b[0])
            i = jax.nn.sigmoid(gates[:, 0 * H:1 * H])
            f = jax.nn.sigmoid(gates[:, 1 * H:2 * H])
            g = jnp.tanh(gates[:, 2 * H:3 * H])
            o = jax.nn.sigmoid(gates[:, 3 * H:4 * H])
            c = f * c + i * g
            h = o * jnp.tanh(c)
            return (h, c), h

        h0 = jnp.zeros((B, H), jnp.float32)
        c0 = jnp.zeros((B, H), jnp.float32)
        _, hs = jax.lax.scan(step, (h0, c0), jnp.transpose(seq_btf, (1, 0, 2)))
        return jnp.transpose(hs, (1, 0, 2))

    h1 = run_layer(x, params["w_ih0"], params["w_hh0"], params["b0"])
    h2 = run_layer(h1, params["w_ih1"], params["w_hh1"], params["b1"])
    h_last = h2[:, -1, :]
    z = jnp.maximum(jnp.dot(h_last, params["fc1_w"], precision=hp)
                    + params["fc1_b"][0], 0.0)
    return jnp.dot(z, params["fc2_w"], precision=hp) + params["fc2_b"][0]


if __name__ == "__main__":
    B, T, INPUT_SIZE, HIDDEN_SIZE, NUM_CLASSES = 2, 8, 16, 32, 4

    key = jax.random.PRNGKey(0)
    k_x, k_p = jax.random.split(key)

    x = jax.random.normal(k_x, (B, T, INPUT_SIZE), dtype=jnp.float32)
    params = init_params(k_p, INPUT_SIZE, HIDDEN_SIZE, NUM_CLASSES)

    out = enhanced_lstm_net_forward(x, params)
    out = jax.block_until_ready(out)
    assert out.shape == (B, NUM_CLASSES), out.shape

    ref = _reference_forward(x, params)
    assert jnp.allclose(out, ref, rtol=2e-3, atol=2e-3), (out, ref)

    print("KERNEL_OK")
</pallas_src>

<mosaic_0001>
module attributes {stable_mosaic.version = 11 : i64} {
  func.func @_fused_lstm_kernel(%arg0: memref<8x8x16xf32, #tpu.memory_space<vmem>>, %arg1: memref<16x128xf32, #tpu.memory_space<vmem>>, %arg2: memref<32x128xf32, #tpu.memory_space<vmem>>, %arg3: memref<1x128xf32, #tpu.memory_space<vmem>>, %arg4: memref<32x128xf32, #tpu.memory_space<vmem>>, %arg5: memref<32x128xf32, #tpu.memory_space<vmem>>, %arg6: memref<1x128xf32, #tpu.memory_space<vmem>>, %arg7: memref<32x64xf32, #tpu.memory_space<vmem>>, %arg8: memref<1x64xf32, #tpu.memory_space<vmem>>, %arg9: memref<64x4xf32, #tpu.memory_space<vmem>>, %arg10: memref<1x4xf32, #tpu.memory_space<vmem>>, %arg11: memref<8x4xf32, #tpu.memory_space<vmem>>, %arg12: memref<8x8x128xf32, #tpu.memory_space<vmem>>, %arg13: memref<8x8x32xf32, #tpu.memory_space<vmem>>, %arg14: memref<8x32xf32, #tpu.memory_space<vmem>>, %arg15: memref<8x32xf32, #tpu.memory_space<vmem>>) attributes {dimension_semantics = [], scalar_prefetch = 0 : i64, scratch_operands = 4 : i64, tpu.core_type = #tpu.core_type<tc>} {
    %c0 = arith.constant 0 : index
    %c0_0 = arith.constant 0 : index
    %c0_1 = arith.constant 0 : index
    %0 = vector.load %arg0[%c0, %c0_0, %c0_1] : memref<8x8x16xf32, #tpu.memory_space<vmem>>, vector<8x8x16xf32>
    %1 = vector.shape_cast %0 : vector<8x8x16xf32> to vector<64x16xf32>
    %c0_2 = arith.constant 0 : index
    %c0_3 = arith.constant 0 : index
    %2 = vector.load %arg1[%c0_2, %c0_3] : memref<16x128xf32, #tpu.memory_space<vmem>>, vector<16x128xf32>
    %cst = arith.constant dense<0.000000e+00> : vector<64x128xf32>
    %3 = tpu.matmul %1, %2, %cst {dimension_numbers = #tpu.dot_dimension_numbers<[1], [0], [0], [1], [0, 0, 1, 1], [], []>} : vector<64x16xf32>, vector<16x128xf32>, vector<64x128xf32> -> vector<64x128xf32>
    %c0_4 = arith.constant 0 : index
    %c0_5 = arith.constant 0 : index
    %4 = vector.load %arg3[%c0_4, %c0_5] : memref<1x128xf32, #tpu.memory_space<vmem>>, vector<1x128xf32>
    %5 = vector.broadcast %4 : vector<1x128xf32> to vector<64x128xf32>
    %6 = arith.addf %3, %5 : vector<64x128xf32>
    %7 = vector.shape_cast %6 : vector<64x128xf32> to vector<8x8x128xf32>
    %8 = vector.extract_strided_slice %7 {offsets = [0, 0, 0], sizes = [8, 1, 128], strides = [1, 1, 1]} : vector<8x8x128xf32> to vector<8x1x128xf32>
    %9 = vector.shape_cast %8 : vector<8x1x128xf32> to vector<8x128xf32>
    %c0_6 = arith.constant 0 : index
    %c0_7 = arith.constant 0 : index
    %c0_8 = arith.constant 0 : index
    %10 = vector.load %arg12[%c0_6, %c0_7, %c0_8] : memref<8x8x128xf32, #tpu.memory_space<vmem>>, vector<1x8x128xf32>
    %11 = vector.shape_cast %10 : vector<1x8x128xf32> to vector<8x128xf32>
    %12 = vector.shape_cast %9 : vector<8x128xf32> to vector<1x8x128xf32>
    tpu.vector_store %arg12[%c0_6, %c0_7, %c0_8], %12 {strides = array<i32>} : memref<8x8x128xf32, #tpu.memory_space<vmem>>, vector<1x8x128xf32>,
    %13 = vector.extract_strided_slice %7 {offsets = [0, 1, 0], sizes = [8, 1, 128], strides = [1, 1, 1]} : vector<8x8x128xf32> to vector<8x1x128xf32>
    %14 = vector.shape_cast %13 : vector<8x1x128xf32> to vector<8x128xf32>
    %c1 = arith.constant 1 : index
    %c0_9 = arith.constant 0 : index
    %c0_10 = arith.constant 0 : index
    %15 = vector.load %arg12[%c1, %c0_9, %c0_10] : memref<8x8x128xf32, #tpu.memory_space<vmem>>, vector<1x8x128xf32>
    %16 = vector.shape_cast %15 : vector<1x8x128xf32> to vector<8x128xf32>
    %17 = vector.shape_cast %14 : vector<8x128xf32> to vector<1x8x128xf32>
    tpu.vector_store %arg12[%c1, %c0_9, %c0_10], %17 {strides = array<i32>} : memref<8x8x128xf32, #tpu.memory_space<vmem>>, vector<1x8x128xf32>,
    %18 = vector.extract_strided_slice %7 {offsets = [0, 2, 0], sizes = [8, 1, 128], strides = [1, 1, 1]} : vector<8x8x128xf32> to vector<8x1x128xf32>
    %19 = vector.shape_cast %18 : vector<8x1x128xf32> to vector<8x128xf32>
    %c2 = arith.constant 2 : index
    %c0_11 = arith.constant 0 : index
    %c0_12 = arith.constant 0 : index
    %20 = vector.load %arg12[%c2, %c0_11, %c0_12] : memref<8x8x128xf32, #tpu.memory_space<vmem>>, vector<1x8x128xf32>
    %21 = vector.shape_cast %20 : vector<1x8x128xf32> to vector<8x128xf32>
    %22 = vector.shape_cast %19 : vector<8x128xf32> to vector<1x8x128xf32>
    tpu.vector_store %arg12[%c2, %c0_11, %c0_12], %22 {strides = array<i32>} : memref<8x8x128xf32, #tpu.memory_space<vmem>>, vector<1x8x128xf32>,
    %23 = vector.extract_strided_slice %7 {offsets = [0, 3, 0], sizes = [8, 1, 128], strides = [1, 1, 1]} : vector<8x8x128xf32> to vector<8x1x128xf32>
    %24 = vector.shape_cast %23 : vector<8x1x128xf32> to vector<8x128xf32>
    %c3 = arith.constant 3 : index
    %c0_13 = arith.constant 0 : index
    %c0_14 = arith.constant 0 : index
    %25 = vector.load %arg12[%c3, %c0_13, %c0_14] : memref<8x8x128xf32, #tpu.memory_space<vmem>>, vector<1x8x128xf32>
    %26 = vector.shape_cast %25 : vector<1x8x128xf32> to vector<8x128xf32>
    %27 = vector.shape_cast %24 : vector<8x128xf32> to vector<1x8x128xf32>
    tpu.vector_store %arg12[%c3, %c0_13, %c0_14], %27 {strides = array<i32>} : memref<8x8x128xf32, #tpu.memory_space<vmem>>, vector<1x8x128xf32>,
    %28 = vector.extract_strided_slice %7 {offsets = [0, 4, 0], sizes = [8, 1, 128], strides = [1, 1, 1]} : vector<8x8x128xf32> to vector<8x1x128xf32>
    %29 = vector.shape_cast %28 : vector<8x1x128xf32> to vector<8x128xf32>
    %c4 = arith.constant 4 : index
    %c0_15 = arith.constant 0 : index
    %c0_16 = arith.constant 0 : index
    %30 = vector.load %arg12[%c4, %c0_15, %c0_16] : memref<8x8x128xf32, #tpu.memory_space<vmem>>, vector<1x8x128xf32>
    %31 = vector.shape_cast %30 : vector<1x8x128xf32> to vector<8x128xf32>
    %32 = vector.shape_cast %29 : vector<8x128xf32> to vector<1x8x128xf32>
    tpu.vector_store %arg12[%c4, %c0_15, %c0_16], %32 {strides = array<i32>} : memref<8x8x128xf32, #tpu.memory_space<vmem>>, vector<1x8x128xf32>,
    %33 = vector.extract_strided_slice %7 {offsets = [0, 5, 0], sizes = [8, 1, 128], strides = [1, 1, 1]} : vector<8x8x128xf32> to vector<8x1x128xf32>
    %34 = vector.shape_cast %33 : vector<8x1x128xf32> to vector<8x128xf32>
    %c5 = arith.constant 5 : index
    %c0_17 = arith.constant 0 : index
    %c0_18 = arith.constant 0 : index
    %35 = vector.load %arg12[%c5, %c0_17, %c0_18] : memref<8x8x128xf32, #tpu.memory_space<vmem>>, vector<1x8x128xf32>
    %36 = vector.shape_cast %35 : vector<1x8x128xf32> to vector<8x128xf32>
    %37 = vector.shape_cast %34 : vector<8x128xf32> to vector<1x8x128xf32>
    tpu.vector_store %arg12[%c5, %c0_17, %c0_18], %37 {strides = array<i32>} : memref<8x8x128xf32, #tpu.memory_space<vmem>>, vector<1x8x128xf32>,
    %38 = vector.extract_strided_slice %7 {offsets = [0, 6, 0], sizes = [8, 1, 128], strides = [1, 1, 1]} : vector<8x8x128xf32> to vector<8x1x128xf32>
    %39 = vector.shape_cast %38 : vector<8x1x128xf32> to vector<8x128xf32>
    %c6 = arith.constant 6 : index
    %c0_19 = arith.constant 0 : index
    %c0_20 = arith.constant 0 : index
    %40 = vector.load %arg12[%c6, %c0_19, %c0_20] : memref<8x8x128xf32, #tpu.memory_space<vmem>>, vector<1x8x128xf32>
    %41 = vector.shape_cast %40 : vector<1x8x128xf32> to vector<8x128xf32>
    %42 = vector.shape_cast %39 : vector<8x128xf32> to vector<1x8x128xf32>
    tpu.vector_store %arg12[%c6, %c0_19, %c0_20], %42 {strides = array<i32>} : memref<8x8x128xf32, #tpu.memory_space<vmem>>, vector<1x8x128xf32>,
    %43 = vector.extract_strided_slice %7 {offsets = [0, 7, 0], sizes = [8, 1, 128], strides = [1, 1, 1]} : vector<8x8x128xf32> to vector<8x1x128xf32>
    %44 = vector.shape_cast %43 : vector<8x1x128xf32> to vector<8x128xf32>
    %c7 = arith.constant 7 : index
    %c0_21 = arith.constant 0 : index
    %c0_22 = arith.constant 0 : index
    %45 = vector.load %arg12[%c7, %c0_21, %c0_22] : memref<8x8x128xf32, #tpu.memory_space<vmem>>, vector<1x8x128xf32>
    %46 = vector.shape_cast %45 : vector<1x8x128xf32> to vector<8x128xf32>
    %47 = vector.shape_cast %44 : vector<8x128xf32> to vector<1x8x128xf32>
    tpu.vector_store %arg12[%c7, %c0_21, %c0_22], %47 {strides = array<i32>} : memref<8x8x128xf32, #tpu.memory_space<vmem>>, vector<1x8x128xf32>,
    %cst_23 = arith.constant 0.000000e+00 : f32
    %48 = vector.broadcast %cst_23 : f32 to vector<8x32xf32>
    %c0_24 = arith.constant 0 : index
    %c0_25 = arith.constant 0 : index
    %49 = vector.load %arg14[%c0_24, %c0_25] : memref<8x32xf32, #tpu.memory_space<vmem>>, vector<8x32xf32>
    tpu.vector_store %arg14[%c0_24, %c0_25], %48 {strides = array<i32>} : memref<8x32xf32, #tpu.memory_space<vmem>>, vector<8x32xf32>,
    %cst_26 = arith.constant 0.000000e+00 : f32
    %50 = vector.broadcast %cst_26 : f32 to vector<8x32xf32>
    %c0_27 = arith.constant 0 : index
    %c0_28 = arith.constant 0 : index
    %51 = vector.load %arg15[%c0_27, %c0_28] : memref<8x32xf32, #tpu.memory_space<vmem>>, vector<8x32xf32>
    tpu.vector_store %arg15[%c0_27, %c0_28], %50 {strides = array<i32>} : memref<8x32xf32, #tpu.memory_space<vmem>>, vector<8x32xf32>,
    %c0_i32 = arith.constant 0 : i32
    %52 = arith.index_cast %c0_i32 : i32 to index
    %c0_29 = arith.constant 0 : index
    %c0_30 = arith.constant 0 : index
    %53 = vector.load %arg12[%52, %c0_29, %c0_30] : memref<8x8x128xf32, #tpu.memory_space<vmem>>, vector<1x8x128xf32>
    %54 = vector.shape_cast %53 : vector<1x8x128xf32> to vector<8x128xf32>
    %c0_31 = arith.constant 0 : index
    %c0_32 = arith.constant 0 : index
    %55 = vector.load %arg14[%c0_31, %c0_32] : memref<8x32xf32, #tpu.memory_space<vmem>>, vector<8x32xf32>
    %c0_33 = arith.constant 0 : index
    %c0_34 = arith.constant 0 : index
    %56 = vector.load %arg2[%c0_33, %c0_34] : memref<32x128xf32, #tpu.memory_space<vmem>>, vector<32x128xf32>
    %cst_35 = arith.constant dense<0.000000e+00> : vector<8x128xf32>
    %57 = tpu.matmul %55, %56, %cst_35 {dimension_numbers = #tpu.dot_dimension_numbers<[1], [0], [0], [1], [0, 0, 1, 1], [], []>} : vector<8x32xf32>, vector<32x128xf32>, vector<8x128xf32> -> vector<8x128xf32>
    %58 = arith.addf %54, %57 : vector<8x128xf32>
    %c0_36 = arith.constant 0 : index
    %c0_37 = arith.constant 0 : index
    %59 = vector.load %arg15[%c0_36, %c0_37] : memref<8x32xf32, #tpu.memory_space<vmem>>, vector<8x32xf32>
    %60 = vector.extract_strided_slice %58 {offsets = [0, 0], sizes = [8, 32], strides = [1, 1]} : vector<8x128xf32> to vector<8x32xf32>
    %61 = arith.negf %60 : vector<8x32xf32>
    %62 = math.exp %61 : vector<8x32xf32>
    %cst_38 = arith.constant 1.000000e+00 : f32
    %63 = vector.broadcast %cst_38 : f32 to vector<8x32xf32>
    %64 = arith.addf %63, %62 : vector<8x32xf32>
    %65 = arith.divf %63, %64 : vector<8x32xf32>
    %66 = vector.extract_strided_slice %58 {offsets = [0, 32], sizes = [8, 32], strides = [1, 1]} : vector<8x128xf32> to vector<8x32xf32>
    %67 = arith.negf %66 : vector<8x32xf32>
    %68 = math.exp %67 : vector<8x32xf32>
    %cst_39 = arith.constant 1.000000e+00 : f32
    %69 = vector.broadcast %cst_39 : f32 to vector<8x32xf32>
    %70 = arith.addf %69, %68 : vector<8x32xf32>
    %71 = arith.divf %69, %70 : vector<8x32xf32>
    %72 = vector.extract_strided_slice %58 {offsets = [0, 64], sizes = [8, 32], strides = [1, 1]} : vector<8x128xf32> to vector<8x32xf32>
    %73 = math.tanh %72 : vector<8x32xf32>
    %74 = vector.extract_strided_slice %58 {offsets = [0, 96], sizes = [8, 32], strides = [1, 1]} : vector<8x128xf32> to vector<8x32xf32>
    %75 = arith.negf %74 : vector<8x32xf32>
    %76 = math.exp %75 : vector<8x32xf32>
    %cst_40 = arith.constant 1.000000e+00 : f32
    %77 = vector.broadcast %cst_40 : f32 to vector<8x32xf32>
    %78 = arith.addf %77, %76 : vector<8x32xf32>
    %79 = arith.divf %77, %78 : vector<8x32xf32>
    %80 = arith.mulf %71, %59 : vector<8x32xf32>
    %81 = arith.mulf %65, %73 : vector<8x32xf32>
    %82 = arith.addf %80, %81 : vector<8x32xf32>
    %83 = math.tanh %82 : vector<8x32xf32>
    %84 = arith.mulf %79, %83 : vector<8x32xf32>
    %c0_41 = arith.constant 0 : index
    %c0_42 = arith.constant 0 : index
    %85 = vector.load %arg14[%c0_41, %c0_42] : memref<8x32xf32, #tpu.memory_space<vmem>>, vector<8x32xf32>
    tpu.vector_store %arg14[%c0_41, %c0_42], %84 {strides = array<i32>} : memref<8x32xf32, #tpu.memory_space<vmem>>, vector<8x32xf32>,
    %c0_43 = arith.constant 0 : index
    %c0_44 = arith.constant 0 : index
    %86 = vector.load %arg15[%c0_43, %c0_44] : memref<8x32xf32, #tpu.memory_space<vmem>>, vector<8x32xf32>
    tpu.vector_store %arg15[%c0_43, %c0_44], %82 {strides = array<i32>} : memref<8x32xf32, #tpu.memory_space<vmem>>, vector<8x32xf32>,
    %87 = arith.index_cast %c0_i32 : i32 to index
    %c0_45 = arith.constant 0 : index
    %c0_46 = arith.constant 0 : index
    %88 = vector.load %arg13[%87, %c0_45, %c0_46] : memref<8x8x32xf32, #tpu.memory_space<vmem>>, vector<1x8x32xf32>
    %89 = vector.shape_cast %88 : vector<1x8x32xf32> to vector<8x32xf32>
    %90 = vector.shape_cast %84 : vector<8x32xf32> to vector<1x8x32xf32>
    tpu.vector_store %arg13[%87, %c0_45, %c0_46], %90 {strides = array<i32>} : memref<8x8x32xf32, #tpu.memory_space<vmem>>, vector<1x8x32xf32>,
    %c1_i32 = arith.constant 1 : i32
    %91 = arith.index_cast %c1_i32 : i32 to index
    %c0_47 = arith.constant 0 : index
    %c0_48 = arith.constant 0 : index
    %92 = vector.load %arg12[%91, %c0_47, %c0_48] : memref<8x8x128xf32, #tpu.memory_space<vmem>>, vector<1x8x128xf32>
    %93 = vector.shape_cast %92 : vector<1x8x128xf32> to vector<8x128xf32>
    %c0_49 = arith.constant 0 : index
    %c0_50 = arith.constant 0 : index
    %94 = vector.load %arg14[%c0_49, %c0_50] : memref<8x32xf32, #tpu.memory_space<vmem>>, vector<8x32xf32>
    %c0_51 = arith.constant 0 : index
    %c0_52 = arith.constant 0 : index
    %95 = vector.load %arg2[%c0_51, %c0_52] : memref<32x128xf32, #tpu.memory_space<vmem>>, vector<32x128xf32>
    %cst_53 = arith.constant dense<0.000000e+00> : vector<8x128xf32>
    %96 = tpu.matmul %94, %95, %cst_53 {dimension_numbers = #tpu.dot_dimension_numbers<[1], [0], [0], [1], [0, 0, 1, 1], [], []>} : vector<8x32xf32>, vector<32x128xf32>, vector<8x128xf32> -> vector<8x128xf32>
    %97 = arith.addf %93, %96 : vector<8x128xf32>
    %c0_54 = arith.constant 0 : index
    %c0_55 = arith.constant 0 : index
    %98 = vector.load %arg15[%c0_54, %c0_55] : memref<8x32xf32, #tpu.memory_space<vmem>>, vector<8x32xf32>
    %99 = vector.extract_strided_slice %97 {offsets = [0, 0], sizes = [8, 32], strides = [1, 1]} : vector<8x128xf32> to vector<8x32xf32>
    %100 = arith.negf %99 : vector<8x32xf32>
    %101 = math.exp %100 : vector<8x32xf32>
    %cst_56 = arith.constant 1.000000e+00 : f32
    %102 = vector.broadcast %cst_56 : f32 to vector<8x32xf32>
    %103 = arith.addf %102, %101 : vector<8x32xf32>
    %104 = arith.divf %102, %103 : vector<8x32xf32>
    %105 = vector.extract_strided_slice %97 {offsets = [0, 32], sizes = [8, 32], strides = [1, 1]} : vector<8x128xf32> to vector<8x32xf32>
    %106 = arith.negf %105 : vector<8x32xf32>
    %107 = math.exp %106 : vector<8x32xf32>
    %cst_57 = arith.constant 1.000000e+00 : f32
    %108 = vector.broadcast %cst_57 : f32 to vector<8x32xf32>
    %109 = arith.addf %108, %107 : vector<8x32xf32>
    %110 = arith.divf %108, %109 : vector<8x32xf32>
    %111 = vector.extract_strided_slice %97 {offsets = [0, 64], sizes = [8, 32], strides = [1, 1]} : vector<8x128xf32> to vector<8x32xf32>
    %112 = math.tanh %111 : vector<8x32xf32>
    %113 = vector.extract_strided_slice %97 {offsets = [0, 96], sizes = [8, 32], strides = [1, 1]} : vector<8x128xf32> to vector<8x32xf32>
    %114 = arith.negf %113 : vector<8x32xf32>
    %115 = math.exp %114 : vector<8x32xf32>
    %cst_58 = arith.constant 1.000000e+00 : f32
    %116 = vector.broadcast %cst_58 : f32 to vector<8x32xf32>
    %117 = arith.addf %116, %115 : vector<8x32xf32>
    %118 = arith.divf %116, %117 : vector<8x32xf32>
    %119 = arith.mulf %110, %98 : vector<8x32xf32>
    %120 = arith.mulf %104, %112 : vector<8x32xf32>
    %121 = arith.addf %119, %120 : vector<8x32xf32>
    %122 = math.tanh %121 : vector<8x32xf32>
    %123 = arith.mulf %118, %122 : vector<8x32xf32>
    %c0_59 = arith.constant 0 : index
    %c0_60 = arith.constant 0 : index
    %124 = vector.load %arg14[%c0_59, %c0_60] : memref<8x32xf32, #tpu.memory_space<vmem>>, vector<8x32xf32>
    tpu.vector_store %arg14[%c0_59, %c0_60], %123 {strides = array<i32>} : memref<8x32xf32, #tpu.memory_space<vmem>>, vector<8x32xf32>,
    %c0_61 = arith.constant 0 : index
    %c0_62 = arith.constant 0 : index
    %125 = vector.load %arg15[%c0_61, %c0_62] : memref<8x32xf32, #tpu.memory_space<vmem>>, vector<8x32xf32>
    tpu.vector_store %arg15[%c0_61, %c0_62], %121 {strides = array<i32>} : memref<8x32xf32, #tpu.memory_space<vmem>>, vector<8x32xf32>,
    %126 = arith.index_cast %c1_i32 : i32 to index
    %c0_63 = arith.constant 0 : index
    %c0_64 = arith.constant 0 : index
    %127 = vector.load %arg13[%126, %c0_63, %c0_64] : memref<8x8x32xf32, #tpu.memory_space<vmem>>, vector<1x8x32xf32>
    %128 = vector.shape_cast %127 : vector<1x8x32xf32> to vector<8x32xf32>
    %129 = vector.shape_cast %123 : vector<8x32xf32> to vector<1x8x32xf32>
    tpu.vector_store %arg13[%126, %c0_63, %c0_64], %129 {strides = array<i32>} : memref<8x8x32xf32, #tpu.memory_space<vmem>>, vector<1x8x32xf32>,
    %c2_i32 = arith.constant 2 : i32
    %130 = arith.index_cast %c2_i32 : i32 to index
    %c0_65 = arith.constant 0 : index
    %c0_66 = arith.constant 0 : index
    %131 = vector.load %arg12[%130, %c0_65, %c0_66] : memref<8x8x128xf32, #tpu.memory_space<vmem>>, vector<1x8x128xf32>
    %132 = vector.shape_cast %131 : vector<1x8x128xf32> to vector<8x128xf32>
    %c0_67 = arith.constant 0 : index
    %c0_68 = arith.constant 0 : index
    %133 = vector.load %arg14[%c0_67, %c0_68] : memref<8x32xf32, #tpu.memory_space<vmem>>, vector<8x32xf32>
    %c0_69 = arith.constant 0 : index
    %c0_70 = arith.constant 0 : index
    %134 = vector.load %arg2[%c0_69, %c0_70] : memref<32x128xf32, #tpu.memory_space<vmem>>, vector<32x128xf32>
    %cst_71 = arith.constant dense<0.000000e+00> : vector<8x128xf32>
    %135 = tpu.matmul %133, %134, %cst_71 {dimension_numbers = #tpu.dot_dimension_numbers<[1], [0], [0], [1], [0, 0, 1, 1], [], []>} : vector<8x32xf32>, vector<32x128xf32>, vector<8x128xf32> -> vector<8x128xf32>
    %136 = arith.addf %132, %135 : vector<8x128xf32>
    %c0_72 = arith.constant 0 : index
    %c0_73 = arith.constant 0 : index
    %137 = vector.load %arg15[%c0_72, %c0_73] : memref<8x32xf32, #tpu.memory_space<vmem>>, vector<8x32xf32>
    %138 = vector.extract_strided_slice %136 {offsets = [0, 0], sizes = [8, 32], strides = [1, 1]} : vector<8x128xf32> to vector<8x32xf32>
    %139 = arith.negf %138 : vector<8x32xf32>
    %140 = math.exp %139 : vector<8x32xf32>
    %cst_74 = arith.constant 1.000000e+00 : f32
    %141 = vector.broadcast %cst_74 : f32 to vector<8x32xf32>
    %142 = arith.addf %141, %140 : vector<8x32xf32>
    %143 = arith.divf %141, %142 : vector<8x32xf32>
    %144 = vector.extract_strided_slice %136 {offsets = [0, 32], sizes = [8, 32], strides = [1, 1]} : vector<8x128xf32> to vector<8x32xf32>
    %145 = arith.negf %144 : vector<8x32xf32>
    %146 = math.exp %145 : vector<8x32xf32>
    %cst_75 = arith.constant 1.000000e+00 : f32
    %147 = vector.broadcast %cst_75 : f32 to vector<8x32xf32>
    %148 = arith.addf %147, %146 : vector<8x32xf32>
    %149 = arith.divf %147, %148 : vector<8x32xf32>
    %150 = vector.extract_strided_slice %136 {offsets = [0, 64], sizes = [8, 32], strides = [1, 1]} : vector<8x128xf32> to vector<8x32xf32>
    %151 = math.tanh %150 : vector<8x32xf32>
    %152 = vector.extract_strided_slice %136 {offsets = [0, 96], sizes = [8, 32], strides = [1, 1]} : vector<8x128xf32> to vector<8x32xf32>
    %153 = arith.negf %152 : vector<8x32xf32>
    %154 = math.exp %153 : vector<8x32xf32>
    %cst_76 = arith.constant 1.000000e+00 : f32
    %155 = vector.broadcast %cst_76 : f32 to vector<8x32xf32>
    %156 = arith.addf %155, %154 : vector<8x32xf32>
    %157 = arith.divf %155, %156 : vector<8x32xf32>
    %158 = arith.mulf %149, %137 : vector<8x32xf32>
    %159 = arith.mulf %143, %151 : vector<8x32xf32>
    %160 = arith.addf %158, %159 : vector<8x32xf32>
    %161 = math.tanh %160 : vector<8x32xf32>
    %162 = arith.mulf %157, %161 : vector<8x32xf32>
    %c0_77 = arith.constant 0 : index
    %c0_78 = arith.constant 0 : index
    %163 = vector.load %arg14[%c0_77, %c0_78] : memref<8x32xf32, #tpu.memory_space<vmem>>, vector<8x32xf32>
    tpu.vector_store %arg14[%c0_77, %c0_78], %162 {strides = array<i32>} : memref<8x32xf32, #tpu.memory_space<vmem>>, vector<8x32xf32>,
    %c0_79 = arith.constant 0 : index
    %c0_80 = arith.constant 0 : index
    %164 = vector.load %arg15[%c0_79, %c0_80] : memref<8x32xf32, #tpu.memory_space<vmem>>, vector<8x32xf32>
    tpu.vector_store %arg15[%c0_79, %c0_80], %160 {strides = array<i32>} : memref<8x32xf32, #tpu.memory_space<vmem>>, vector<8x32xf32>,
    %165 = arith.index_cast %c2_i32 : i32 to index
    %c0_81 = arith.constant 0 : index
    %c0_82 = arith.constant 0 : index
    %166 = vector.load %arg13[%165, %c0_81, %c0_82] : memref<8x8x32xf32, #tpu.memory_space<vmem>>, vector<1x8x32xf32>
    %167 = vector.shape_cast %166 : vector<1x8x32xf32> to vector<8x32xf32>
    %168 = vector.shape_cast %162 : vector<8x32xf32> to vector<1x8x32xf32>
    tpu.vector_store %arg13[%165, %c0_81, %c0_82], %168 {strides = array<i32>} : memref<8x8x32xf32, #tpu.memory_space<vmem>>, vector<1x8x32xf32>,
    %c3_i32 = arith.constant 3 : i32
    %169 = arith.index_cast %c3_i32 : i32 to index
    %c0_83 = arith.constant 0 : index
    %c0_84 = arith.constant 0 : index
    %170 = vector.load %arg12[%169, %c0_83, %c0_84] : memref<8x8x128xf32, #tpu.memory_space<vmem>>, vector<1x8x128xf32>
    %171 = vector.shape_cast %170 : vector<1x8x128xf32> to vector<8x128xf32>
    %c0_85 = arith.constant 0 : index
    %c0_86 = arith.constant 0 : index
    %172 = vector.load %arg14[%c0_85, %c0_86] : memref<8x32xf32, #tpu.memory_space<vmem>>, vector<8x32xf32>
    %c0_87 = arith.constant 0 : index
    %c0_88 = arith.constant 0 : index
    %173 = vector.load %arg2[%c0_87, %c0_88] : memref<32x128xf32, #tpu.memory_space<vmem>>, vector<32x128xf32>
    %cst_89 = arith.constant dense<0.000000e+00> : vector<8x128xf32>
    %174 = tpu.matmul %172, %173, %cst_89 {dimension_numbers = #tpu.dot_dimension_numbers<[1], [0], [0], [1], [0, 0, 1, 1], [], []>} : vector<8x32xf32>, vector<32x128xf32>, vector<8x128xf32> -> vector<8x128xf32>
    %175 = arith.addf %171, %174 : vector<8x128xf32>
    %c0_90 = arith.constant 0 : index
    %c0_91 = arith.constant 0 : index
    %176 = vector.load %arg15[%c0_90, %c0_91] : memref<8x32xf32, #tpu.memory_space<vmem>>, vector<8x32xf32>
    %177 = vector.extract_strided_slice %175 {offsets = [0, 0], sizes = [8, 32], strides = [1, 1]} : vector<8x128xf32> to vector<8x32xf32>
    %178 = arith.negf %177 : vector<8x32xf32>
    %179 = math.exp %178 : vector<8x32xf32>
    %cst_92 = arith.constant 1.000000e+00 : f32
    %180 = vector.broadcast %cst_92 : f32 to vector<8x32xf32>
    %181 = arith.addf %180, %179 : vector<8x32xf32>
    %182 = arith.divf %180, %181 : vector<8x32xf32>
    %183 = vector.extract_strided_slice %175 {offsets = [0, 32], sizes = [8, 32], strides = [1, 1]} : vector<8x128xf32> to vector<8x32xf32>
    %184 = arith.negf %183 : vector<8x32xf32>
    %185 = math.exp %184 : vector<8x32xf32>
    %cst_93 = arith.constant 1.000000e+00 : f32
    %186 = vector.broadcast %cst_93 : f32 to vector<8x32xf32>
    %187 = arith.addf %186, %185 : vector<8x32xf32>
    %188 = arith.divf %186, %187 : vector<8x32xf32>
    %189 = vector.extract_strided_slice %175 {offsets = [0, 64], sizes = [8, 32], strides = [1, 1]} : vector<8x128xf32> to vector<8x32xf32>
    %190 = math.tanh %189 : vector<8x32xf32>
    %191 = vector.extract_strided_slice %175 {offsets = [0, 96], sizes = [8, 32], strides = [1, 1]} : vector<8x128xf32> to vector<8x32xf32>
    %192 = arith.negf %191 : vector<8x32xf32>
    %193 = math.exp %192 : vector<8x32xf32>
    %cst_94 = arith.constant 1.000000e+00 : f32
    %194 = vector.broadcast %cst_94 : f32 to vector<8x32xf32>
    %195 = arith.addf %194, %193 : vector<8x32xf32>
    %196 = arith.divf %194, %195 : vector<8x32xf32>
    %197 = arith.mulf %188, %176 : vector<8x32xf32>
    %198 = arith.mulf %182, %190 : vector<8x32xf32>
    %199 = arith.addf %197, %198 : vector<8x32xf32>
    %200 = math.tanh %199 : vector<8x32xf32>
    %201 = arith.mulf %196, %200 : vector<8x32xf32>
    %c0_95 = arith.constant 0 : index
    %c0_96 = arith.constant 0 : index
    %202 = vector.load %arg14[%c0_95, %c0_96] : memref<8x32xf32, #tpu.memory_space<vmem>>, vector<8x32xf32>
    tpu.vector_store %arg14[%c0_95, %c0_96], %201 {strides = array<i32>} : memref<8x32xf32, #tpu.memory_space<vmem>>, vector<8x32xf32>,
    %c0_97 = arith.constant 0 : index
    %c0_98 = arith.constant 0 : index
    %203 = vector.load %arg15[%c0_97, %c0_98] : memref<8x32xf32, #tpu.memory_space<vmem>>, vector<8x32xf32>
    tpu.vector_store %arg15[%c0_97, %c0_98], %199 {strides = array<i32>} : memref<8x32xf32, #tpu.memory_space<vmem>>, vector<8x32xf32>,
    %204 = arith.index_cast %c3_i32 : i32 to index
    %c0_99 = arith.constant 0 : index
    %c0_100 = arith.constant 0 : index
    %205 = vector.load %arg13[%204, %c0_99, %c0_100] : memref<8x8x32xf32, #tpu.memory_space<vmem>>, vector<1x8x32xf32>
    %206 = vector.shape_cast %205 : vector<1x8x32xf32> to vector<8x32xf32>
    %207 = vector.shape_cast %201 : vector<8x32xf32> to vector<1x8x32xf32>
    tpu.vector_store %arg13[%204, %c0_99, %c0_100], %207 {strides = array<i32>} : memref<8x8x32xf32, #tpu.memory_space<vmem>>, vector<1x8x32xf32>,
    %c4_i32 = arith.constant 4 : i32
    %208 = arith.index_cast %c4_i32 : i32 to index
    %c0_101 = arith.constant 0 : index
    %c0_102 = arith.constant 0 : index
    %209 = vector.load %arg12[%208, %c0_101, %c0_102] : memref<8x8x128xf32, #tpu.memory_space<vmem>>, vector<1x8x128xf32>
    %210 = vector.shape_cast %209 : vector<1x8x128xf32> to vector<8x128xf32>
    %c0_103 = arith.constant 0 : index
    %c0_104 = arith.constant 0 : index
    %211 = vector.load %arg14[%c0_103, %c0_104] : memref<8x32xf32, #tpu.memory_space<vmem>>, vector<8x32xf32>
    %c0_105 = arith.constant 0 : index
    %c0_106 = arith.constant 0 : index
    %212 = vector.load %arg2[%c0_105, %c0_106] : memref<32x128xf32, #tpu.memory_space<vmem>>, vector<32x128xf32>
    %cst_107 = arith.constant dense<0.000000e+00> : vector<8x128xf32>
    %213 = tpu.matmul %211, %212, %cst_107 {dimension_numbers = #tpu.dot_dimension_numbers<[1], [0], [0], [1], [0, 0, 1, 1], [], []>} : vector<8x32xf32>, vector<32x128xf32>, vector<8x128xf32> -> vector<8x128xf32>
    %214 = arith.addf %210, %213 : vector<8x128xf32>
    %c0_108 = arith.constant 0 : index
    %c0_109 = arith.constant 0 : index
    %215 = vector.load %arg15[%c0_108, %c0_109] : memref<8x32xf32, #tpu.memory_space<vmem>>, vector<8x32xf32>
    %216 = vector.extract_strided_slice %214 {offsets = [0, 0], sizes = [8, 32], strides = [1, 1]} : vector<8x128xf32> to vector<8x32xf32>
    %217 = arith.negf %216 : vector<8x32xf32>
    %218 = math.exp %217 : vector<8x32xf32>
    %cst_110 = arith.constant 1.000000e+00 : f32
    %219 = vector.broadcast %cst_110 : f32 to vector<8x32xf32>
    %220 = arith.addf %219, %218 : vector<8x32xf32>
    %221 = arith.divf %219, %220 : vector<8x32xf32>
    %222 = vector.extract_strided_slice %214 {offsets = [0, 32], sizes = [8, 32], strides = [1, 1]} : vector<8x128xf32> to vector<8x32xf32>
    %223 = arith.negf %222 : vector<8x32xf32>
    %224 = math.exp %223 : vector<8x32xf32>
    %cst_111 = arith.constant 1.000000e+00 : f32
    %225 = vector.broadcast %cst_111 : f32 to vector<8x32xf32>
    %226 = arith.addf %225, %224 : vector<8x32xf32>
    %227 = arith.divf %225, %226 : vector<8x32xf32>
    %228 = vector.extract_strided_slice %214 {offsets = [0, 64], sizes = [8, 32], strides = [1, 1]} : vector<8x128xf32> to vector<8x32xf32>
    %229 = math.tanh %228 : vector<8x32xf32>
    %230 = vector.extract_strided_slice %214 {offsets = [0, 96], sizes = [8, 32], strides = [1, 1]} : vector<8x128xf32> to vector<8x32xf32>
    %231 = arith.negf %230 : vector<8x32xf32>
    %232 = math.exp %231 : vector<8x32xf32>
    %cst_112 = arith.constant 1.000000e+00 : f32
    %233 = vector.broadcast %cst_112 : f32 to vector<8x32xf32>
    %234 = arith.addf %233, %232 : vector<8x32xf32>
    %235 = arith.divf %233, %234 : vector<8x32xf32>
    %236 = arith.mulf %227, %215 : vector<8x32xf32>
    %237 = arith.mulf %221, %229 : vector<8x32xf32>
    %238 = arith.addf %236, %237 : vector<8x32xf32>
    %239 = math.tanh %238 : vector<8x32xf32>
    %240 = arith.mulf %235, %239 : vector<8x32xf32>
    %c0_113 = arith.constant 0 : index
    %c0_114 = arith.constant 0 : index
    %241 = vector.load %arg14[%c0_113, %c0_114] : memref<8x32xf32, #tpu.memory_space<vmem>>, vector<8x32xf32>
    tpu.vector_store %arg14[%c0_113, %c0_114], %240 {strides = array<i32>} : memref<8x32xf32, #tpu.memory_space<vmem>>, vector<8x32xf32>,
    %c0_115 = arith.constant 0 : index
    %c0_116 = arith.constant 0 : index
    %242 = vector.load %arg15[%c0_115, %c0_116] : memref<8x32xf32, #tpu.memory_space<vmem>>, vector<8x32xf32>
    tpu.vector_store %arg15[%c0_115, %c0_116], %238 {strides = array<i32>} : memref<8x32xf32, #tpu.memory_space<vmem>>, vector<8x32xf32>,
    %243 = arith.index_cast %c4_i32 : i32 to index
    %c0_117 = arith.constant 0 : index
    %c0_118 = arith.constant 0 : index
    %244 = vector.load %arg13[%243, %c0_117, %c0_118] : memref<8x8x32xf32, #tpu.memory_space<vmem>>, vector<1x8x32xf32>
    %245 = vector.shape_cast %244 : vector<1x8x32xf32> to vector<8x32xf32>
    %246 = vector.shape_cast %240 : vector<8x32xf32> to vector<1x8x32xf32>
    tpu.vector_store %arg13[%243, %c0_117, %c0_118], %246 {strides = array<i32>} : memref<8x8x32xf32, #tpu.memory_space<vmem>>, vector<1x8x32xf32>,
    %c5_i32 = arith.constant 5 : i32
    %247 = arith.index_cast %c5_i32 : i32 to index
    %c0_119 = arith.constant 0 : index
    %c0_120 = arith.constant 0 : index
    %248 = vector.load %arg12[%247, %c0_119, %c0_120] : memref<8x8x128xf32, #tpu.memory_space<vmem>>, vector<1x8x128xf32>
    %249 = vector.shape_cast %248 : vector<1x8x128xf32> to vector<8x128xf32>
    %c0_121 = arith.constant 0 : index
    %c0_122 = arith.constant 0 : index
    %250 = vector.load %arg14[%c0_121, %c0_122] : memref<8x32xf32, #tpu.memory_space<vmem>>, vector<8x32xf32>
    %c0_123 = arith.constant 0 : index
    %c0_124 = arith.constant 0 : index
    %251 = vector.load %arg2[%c0_123, %c0_124] : memref<32x128xf32, #tpu.memory_space<vmem>>, vector<32x128xf32>
    %cst_125 = arith.constant dense<0.000000e+00> : vector<8x128xf32>
    %252 = tpu.matmul %250, %251, %cst_125 {dimension_numbers = #tpu.dot_dimension_numbers<[1], [0], [0], [1], [0, 0, 1, 1], [], []>} : vector<8x32xf32>, vector<32x128xf32>, vector<8x128xf32> -> vector<8x128xf32>
    %253 = arith.addf %249, %252 : vector<8x128xf32>
    %c0_126 = arith.constant 0 : index
    %c0_127 = arith.constant 0 : index
    %254 = vector.load %arg15[%c0_126, %c0_127] : memref<8x32xf32, #tpu.memory_space<vmem>>, vector<8x32xf32>
    %255 = vector.extract_strided_slice %253 {offsets = [0, 0], sizes = [8, 32], strides = [1, 1]} : vector<8x128xf32> to vector<8x32xf32>
    %256 = arith.negf %255 : vector<8x32xf32>
    %257 = math.exp %256 : vector<8x32xf32>
    %cst_128 = arith.constant 1.000000e+00 : f32
    %258 = vector.broadcast %cst_128 : f32 to vector<8x32xf32>
    %259 = arith.addf %258, %257 : vector<8x32xf32>
    %260 = arith.divf %258, %259 : vector<8x32xf32>
    %261 = vector.extract_strided_slice %253 {offsets = [0, 32], sizes = [8, 32], strides = [1, 1]} : vector<8x128xf32> to vector<8x32xf32>
    %262 = arith.negf %261 : vector<8x32xf32>
    %263 = math.exp %262 : vector<8x32xf32>
    %cst_129 = arith.constant 1.000000e+00 : f32
    %264 = vector.broadcast %cst_129 : f32 to vector<8x32xf32>
    %265 = arith.addf %264, %263 : vector<8x32xf32>
    %266 = arith.divf %264, %265 : vector<8x32xf32>
    %267 = vector.extract_strided_slice %253 {offsets = [0, 64], sizes = [8, 32], strides = [1, 1]} : vector<8x128xf32> to vector<8x32xf32>
    %268 = math.tanh %267 : vector<8x32xf32>
    %269 = vector.extract_strided_slice %253 {offsets = [0, 96], sizes = [8, 32], strides = [1, 1]} : vector<8x128xf32> to vector<8x32xf32>
    %270 = arith.negf %269 : vector<8x32xf32>
    %271 = math.exp %270 : vector<8x32xf32>
    %cst_130 = arith.constant 1.000000e+00 : f32
    %272 = vector.broadcast %cst_130 : f32 to vector<8x32xf32>
    %273 = arith.addf %272, %271 : vector<8x32xf32>
    %274 = arith.divf %272, %273 : vector<8x32xf32>
    %275 = arith.mulf %266, %254 : vector<8x32xf32>
    %276 = arith.mulf %260, %268 : vector<8x32xf32>
    %277 = arith.addf %275, %276 : vector<8x32xf32>
    %278 = math.tanh %277 : vector<8x32xf32>
    %279 = arith.mulf %274, %278 : vector<8x32xf32>
    %c0_131 = arith.constant 0 : index
    %c0_132 = arith.constant 0 : index
    %280 = vector.load %arg14[%c0_131, %c0_132] : memref<8x32xf32, #tpu.memory_space<vmem>>, vector<8x32xf32>
    tpu.vector_store %arg14[%c0_131, %c0_132], %279 {strides = array<i32>} : memref<8x32xf32, #tpu.memory_space<vmem>>, vector<8x32xf32>,
    %c0_133 = arith.constant 0 : index
    %c0_134 = arith.constant 0 : index
    %281 = vector.load %arg15[%c0_133, %c0_134] : memref<8x32xf32, #tpu.memory_space<vmem>>, vector<8x32xf32>
    tpu.vector_store %arg15[%c0_133, %c0_134], %277 {strides = array<i32>} : memref<8x32xf32, #tpu.memory_space<vmem>>, vector<8x32xf32>,
    %282 = arith.index_cast %c5_i32 : i32 to index
    %c0_135 = arith.constant 0 : index
    %c0_136 = arith.constant 0 : index
    %283 = vector.load %arg13[%282, %c0_135, %c0_136] : memref<8x8x32xf32, #tpu.memory_space<vmem>>, vector<1x8x32xf32>
    %284 = vector.shape_cast %283 : vector<1x8x32xf32> to vector<8x32xf32>
    %285 = vector.shape_cast %279 : vector<8x32xf32> to vector<1x8x32xf32>
    tpu.vector_store %arg13[%282, %c0_135, %c0_136], %285 {strides = array<i32>} : memref<8x8x32xf32, #tpu.memory_space<vmem>>, vector<1x8x32xf32>,
    %c6_i32 = arith.constant 6 : i32
    %286 = arith.index_cast %c6_i32 : i32 to index
    %c0_137 = arith.constant 0 : index
    %c0_138 = arith.constant 0 : index
    %287 = vector.load %arg12[%286, %c0_137, %c0_138] : memref<8x8x128xf32, #tpu.memory_space<vmem>>, vector<1x8x128xf32>
    %288 = vector.shape_cast %287 : vector<1x8x128xf32> to vector<8x128xf32>
    %c0_139 = arith.constant 0 : index
    %c0_140 = arith.constant 0 : index
    %289 = vector.load %arg14[%c0_139, %c0_140] : memref<8x32xf32, #tpu.memory_space<vmem>>, vector<8x32xf32>
    %c0_141 = arith.constant 0 : index
    %c0_142 = arith.constant 0 : index
    %290 = vector.load %arg2[%c0_141, %c0_142] : memref<32x128xf32, #tpu.memory_space<vmem>>, vector<32x128xf32>
    %cst_143 = arith.constant dense<0.000000e+00> : vector<8x128xf32>
    %291 = tpu.matmul %289, %290, %cst_143 {dimension_numbers = #tpu.dot_dimension_numbers<[1], [0], [0], [1], [0, 0, 1, 1], [], []>} : vector<8x32xf32>, vector<32x128xf32>, vector<8x128xf32> -> vector<8x128xf32>
    %292 = arith.addf %288, %291 : vector<8x128xf32>
    %c0_144 = arith.constant 0 : index
    %c0_145 = arith.constant 0 : index
    %293 = vector.load %arg15[%c0_144, %c0_145] : memref<8x32xf32, #tpu.memory_space<vmem>>, vector<8x32xf32>
    %294 = vector.extract_strided_slice %292 {offsets = [0, 0], sizes = [8, 32], strides = [1, 1]} : vector<8x128xf32> to vector<8x32xf32>
    %295 = arith.negf %294 : vector<8x32xf32>
    %296 = math.exp %295 : vector<8x32xf32>
    %cst_146 = arith.constant 1.000000e+00 : f32
    %297 = vector.broadcast %cst_146 : f32 to vector<8x32xf32>
    %298 = arith.addf %297, %296 : vector<8x32xf32>
    %299 = arith.divf %297, %298 : vector<8x32xf32>
    %300 = vector.extract_strided_slice %292 {offsets = [0, 32], sizes = [8, 32], strides = [1, 1]} : vector<8x128xf32> to vector<8x32xf32>
    %301 = arith.negf %300 : vector<8x32xf32>
    %302 = math.exp %301 : vector<8x32xf32>
    %cst_147 = arith.constant 1.000000e+00 : f32
    %303 = vector.broadcast %cst_147 : f32 to vector<8x32xf32>
    %304 = arith.addf %303, %302 : vector<8x32xf32>
    %305 = arith.divf %303, %304 : vector<8x32xf32>
    %306 = vector.extract_strided_slice %292 {offsets = [0, 64], sizes = [8, 32], strides = [1, 1]} : vector<8x128xf32> to vector<8x32xf32>
    %307 = math.tanh %306 : vector<8x32xf32>
    %308 = vector.extract_strided_slice %292 {offsets = [0, 96], sizes = [8, 32], strides = [1, 1]} : vector<8x128xf32> to vector<8x32xf32>
    %309 = arith.negf %308 : vector<8x32xf32>
    %310 = math.exp %309 : vector<8x32xf32>
    %cst_148 = arith.constant 1.000000e+00 : f32
    %311 = vector.broadcast %cst_148 : f32 to vector<8x32xf32>
    %312 = arith.addf %311, %310 : vector<8x32xf32>
    %313 = arith.divf %311, %312 : vector<8x32xf32>
    %314 = arith.mulf %305, %293 : vector<8x32xf32>
    %315 = arith.mulf %299, %307 : vector<8x32xf32>
    %316 = arith.addf %314, %315 : vector<8x32xf32>
    %317 = math.tanh %316 : vector<8x32xf32>
    %318 = arith.mulf %313, %317 : vector<8x32xf32>
    %c0_149 = arith.constant 0 : index
    %c0_150 = arith.constant 0 : index
    %319 = vector.load %arg14[%c0_149, %c0_150] : memref<8x32xf32, #tpu.memory_space<vmem>>, vector<8x32xf32>
    tpu.vector_store %arg14[%c0_149, %c0_150], %318 {strides = array<i32>} : memref<8x32xf32, #tpu.memory_space<vmem>>, vector<8x32xf32>,
    %c0_151 = arith.constant 0 : index
    %c0_152 = arith.constant 0 : index
    %320 = vector.load %arg15[%c0_151, %c0_152] : memref<8x32xf32, #tpu.memory_space<vmem>>, vector<8x32xf32>
    tpu.vector_store %arg15[%c0_151, %c0_152], %316 {strides = array<i32>} : memref<8x32xf32, #tpu.memory_space<vmem>>, vector<8x32xf32>,
    %321 = arith.index_cast %c6_i32 : i32 to index
    %c0_153 = arith.constant 0 : index
    %c0_154 = arith.constant 0 : index
    %322 = vector.load %arg13[%321, %c0_153, %c0_154] : memref<8x8x32xf32, #tpu.memory_space<vmem>>, vector<1x8x32xf32>
    %323 = vector.shape_cast %322 : vector<1x8x32xf32> to vector<8x32xf32>
    %324 = vector.shape_cast %318 : vector<8x32xf32> to vector<1x8x32xf32>
    tpu.vector_store %arg13[%321, %c0_153, %c0_154], %324 {strides = array<i32>} : memref<8x8x32xf32, #tpu.memory_space<vmem>>, vector<1x8x32xf32>,
    %c7_i32 = arith.constant 7 : i32
    %325 = arith.index_cast %c7_i32 : i32 to index
    %c0_155 = arith.constant 0 : index
    %c0_156 = arith.constant 0 : index
    %326 = vector.load %arg12[%325, %c0_155, %c0_156] : memref<8x8x128xf32, #tpu.memory_space<vmem>>, vector<1x8x128xf32>
    %327 = vector.shape_cast %326 : vector<1x8x128xf32> to vector<8x128xf32>
    %c0_157 = arith.constant 0 : index
    %c0_158 = arith.constant 0 : index
    %328 = vector.load %arg14[%c0_157, %c0_158] : memref<8x32xf32, #tpu.memory_space<vmem>>, vector<8x32xf32>
    %c0_159 = arith.constant 0 : index
    %c0_160 = arith.constant 0 : index
    %329 = vector.load %arg2[%c0_159, %c0_160] : memref<32x128xf32, #tpu.memory_space<vmem>>, vector<32x128xf32>
    %cst_161 = arith.constant dense<0.000000e+00> : vector<8x128xf32>
    %330 = tpu.matmul %328, %329, %cst_161 {dimension_numbers = #tpu.dot_dimension_numbers<[1], [0], [0], [1], [0, 0, 1, 1], [], []>} : vector<8x32xf32>, vector<32x128xf32>, vector<8x128xf32> -> vector<8x128xf32>
    %331 = arith.addf %327, %330 : vector<8x128xf32>
    %c0_162 = arith.constant 0 : index
    %c0_163 = arith.constant 0 : index
    %332 = vector.load %arg15[%c0_162, %c0_163] : memref<8x32xf32, #tpu.memory_space<vmem>>, vector<8x32xf32>
    %333 = vector.extract_strided_slice %331 {offsets = [0, 0], sizes = [8, 32], strides = [1, 1]} : vector<8x128xf32> to vector<8x32xf32>
    %334 = arith.negf %333 : vector<8x32xf32>
    %335 = math.exp %334 : vector<8x32xf32>
    %cst_164 = arith.constant 1.000000e+00 : f32
    %336 = vector.broadcast %cst_164 : f32 to vector<8x32xf32>
    %337 = arith.addf %336, %335 : vector<8x32xf32>
    %338 = arith.divf %336, %337 : vector<8x32xf32>
    %339 = vector.extract_strided_slice %331 {offsets = [0, 32], sizes = [8, 32], strides = [1, 1]} : vector<8x128xf32> to vector<8x32xf32>
    %340 = arith.negf %339 : vector<8x32xf32>
    %341 = math.exp %340 : vector<8x32xf32>
    %cst_165 = arith.constant 1.000000e+00 : f32
    %342 = vector.broadcast %cst_165 : f32 to vector<8x32xf32>
    %343 = arith.addf %342, %341 : vector<8x32xf32>
    %344 = arith.divf %342, %343 : vector<8x32xf32>
    %345 = vector.extract_strided_slice %331 {offsets = [0, 64], sizes = [8, 32], strides = [1, 1]} : vector<8x128xf32> to vector<8x32xf32>
    %346 = math.tanh %345 : vector<8x32xf32>
    %347 = vector.extract_strided_slice %331 {offsets = [0, 96], sizes = [8, 32], strides = [1, 1]} : vector<8x128xf32> to vector<8x32xf32>
    %348 = arith.negf %347 : vector<8x32xf32>
    %349 = math.exp %348 : vector<8x32xf32>
    %cst_166 = arith.constant 1.000000e+00 : f32
    %350 = vector.broadcast %cst_166 : f32 to vector<8x32xf32>
    %351 = arith.addf %350, %349 : vector<8x32xf32>
    %352 = arith.divf %350, %351 : vector<8x32xf32>
    %353 = arith.mulf %344, %332 : vector<8x32xf32>
    %354 = arith.mulf %338, %346 : vector<8x32xf32>
    %355 = arith.addf %353, %354 : vector<8x32xf32>
    %356 = math.tanh %355 : vector<8x32xf32>
    %357 = arith.mulf %352, %356 : vector<8x32xf32>
    %c0_167 = arith.constant 0 : index
    %c0_168 = arith.constant 0 : index
    %358 = vector.load %arg14[%c0_167, %c0_168] : memref<8x32xf32, #tpu.memory_space<vmem>>, vector<8x32xf32>
    tpu.vector_store %arg14[%c0_167, %c0_168], %357 {strides = array<i32>} : memref<8x32xf32, #tpu.memory_space<vmem>>, vector<8x32xf32>,
    %c0_169 = arith.constant 0 : index
    %c0_170 = arith.constant 0 : index
    %359 = vector.load %arg15[%c0_169, %c0_170] : memref<8x32xf32, #tpu.memory_space<vmem>>, vector<8x32xf32>
    tpu.vector_store %arg15[%c0_169, %c0_170], %355 {strides = array<i32>} : memref<8x32xf32, #tpu.memory_space<vmem>>, vector<8x32xf32>,
    %360 = arith.index_cast %c7_i32 : i32 to index
    %c0_171 = arith.constant 0 : index
    %c0_172 = arith.constant 0 : index
    %361 = vector.load %arg13[%360, %c0_171, %c0_172] : memref<8x8x32xf32, #tpu.memory_space<vmem>>, vector<1x8x32xf32>
    %362 = vector.shape_cast %361 : vector<1x8x32xf32> to vector<8x32xf32>
    %363 = vector.shape_cast %357 : vector<8x32xf32> to vector<1x8x32xf32>
    tpu.vector_store %arg13[%360, %c0_171, %c0_172], %363 {strides = array<i32>} : memref<8x8x32xf32, #tpu.memory_space<vmem>>, vector<1x8x32xf32>,
    %c8_i32 = arith.constant 8 : i32
    %c0_173 = arith.constant 0 : index
    %c0_174 = arith.constant 0 : index
    %c0_175 = arith.constant 0 : index
    %364 = vector.load %arg13[%c0_173, %c0_174, %c0_175] : memref<8x8x32xf32, #tpu.memory_space<vmem>>, vector<8x8x32xf32>
    %365 = vector.shape_cast %364 : vector<8x8x32xf32> to vector<64x32xf32>
    %c0_176 = arith.constant 0 : index
    %c0_177 = arith.constant 0 : index
    %366 = vector.load %arg4[%c0_176, %c0_177] : memref<32x128xf32, #tpu.memory_space<vmem>>, vector<32x128xf32>
    %cst_178 = arith.constant dense<0.000000e+00> : vector<64x128xf32>
    %367 = tpu.matmul %365, %366, %cst_178 {dimension_numbers = #tpu.dot_dimension_numbers<[1], [0], [0], [1], [0, 0, 1, 1], [], []>} : vector<64x32xf32>, vector<32x128xf32>, vector<64x128xf32> -> vector<64x128xf32>
    %c0_179 = arith.constant 0 : index
    %c0_180 = arith.constant 0 : index
    %368 = vector.load %arg6[%c0_179, %c0_180] : memref<1x128xf32, #tpu.memory_space<vmem>>, vector<1x128xf32>
    %369 = vector.broadcast %368 : vector<1x128xf32> to vector<64x128xf32>
    %370 = arith.addf %367, %369 : vector<64x128xf32>
    %371 = vector.shape_cast %370 : vector<64x128xf32> to vector<8x8x128xf32>
    %c0_181 = arith.constant 0 : index
    %c0_182 = arith.constant 0 : index
    %c0_183 = arith.constant 0 : index
    %372 = vector.load %arg12[%c0_181, %c0_182, %c0_183] : memref<8x8x128xf32, #tpu.memory_space<vmem>>, vector<8x8x128xf32>
    tpu.vector_store %arg12[%c0_181, %c0_182, %c0_183], %371 {strides = array<i32>} : memref<8x8x128xf32, #tpu.memory_space<vmem>>, vector<8x8x128xf32>,
    %cst_184 = arith.constant 0.000000e+00 : f32
    %373 = vector.broadcast %cst_184 : f32 to vector<8x32xf32>
    %c0_185 = arith.constant 0 : index
    %c0_186 = arith.constant 0 : index
    %374 = vector.load %arg14[%c0_185, %c0_186] : memref<8x32xf32, #tpu.memory_space<vmem>>, vector<8x32xf32>
    tpu.vector_store %arg14[%c0_185, %c0_186], %373 {strides = array<i32>} : memref<8x32xf32, #tpu.memory_space<vmem>>, vector<8x32xf32>,
    %cst_187 = arith.constant 0.000000e+00 : f32
    %375 = vector.broadcast %cst_187 : f32 to vector<8x32xf32>
    %c0_188 = arith.constant 0 : index
    %c0_189 = arith.constant 0 : index
    %376 = vector.load %arg15[%c0_188, %c0_189] : memref<8x32xf32, #tpu.memory_space<vmem>>, vector<8x32xf32>
    tpu.vector_store %arg15[%c0_188, %c0_189], %375 {strides = array<i32>} : memref<8x32xf32, #tpu.memory_space<vmem>>, vector<8x32xf32>,
    %c0_i32_190 = arith.constant 0 : i32
    %377 = arith.index_cast %c0_i32_190 : i32 to index
    %c0_191 = arith.constant 0 : index
    %c0_192 = arith.constant 0 : index
    %378 = vector.load %arg12[%377, %c0_191, %c0_192] : memref<8x8x128xf32, #tpu.memory_space<vmem>>, vector<1x8x128xf32>
    %379 = vector.shape_cast %378 : vector<1x8x128xf32> to vector<8x128xf32>
    %c0_193 = arith.constant 0 : index
    %c0_194 = arith.constant 0 : index
    %380 = vector.load %arg14[%c0_193, %c0_194] : memref<8x32xf32, #tpu.memory_space<vmem>>, vector<8x32xf32>
    %c0_195 = arith.constant 0 : index
    %c0_196 = arith.constant 0 : index
    %381 = vector.load %arg5[%c0_195, %c0_196] : memref<32x128xf32, #tpu.memory_space<vmem>>, vector<32x128xf32>
    %cst_197 = arith.constant dense<0.000000e+00> : vector<8x128xf32>
    %382 = tpu.matmul %380, %381, %cst_197 {dimension_numbers = #tpu.dot_dimension_numbers<[1], [0], [0], [1], [0, 0, 1, 1], [], []>} : vector<8x32xf32>, vector<32x128xf32>, vector<8x128xf32> -> vector<8x128xf32>
    %383 = arith.addf %379, %382 : vector<8x128xf32>
    %c0_198 = arith.constant 0 : index
    %c0_199 = arith.constant 0 : index
    %384 = vector.load %arg15[%c0_198, %c0_199] : memref<8x32xf32, #tpu.memory_space<vmem>>, vector<8x32xf32>
    %385 = vector.extract_strided_slice %383 {offsets = [0, 0], sizes = [8, 32], strides = [1, 1]} : vector<8x128xf32> to vector<8x32xf32>
    %386 = arith.negf %385 : vector<8x32xf32>
    %387 = math.exp %386 : vector<8x32xf32>
    %cst_200 = arith.constant 1.000000e+00 : f32
    %388 = vector.broadcast %cst_200 : f32 to vector<8x32xf32>
    %389 = arith.addf %388, %387 : vector<8x32xf32>
    %390 = arith.divf %388, %389 : vector<8x32xf32>
    %391 = vector.extract_strided_slice %383 {offsets = [0, 32], sizes = [8, 32], strides = [1, 1]} : vector<8x128xf32> to vector<8x32xf32>
    %392 = arith.negf %391 : vector<8x32xf32>
    %393 = math.exp %392 : vector<8x32xf32>
    %cst_201 = arith.constant 1.000000e+00 : f32
    %394 = vector.broadcast %cst_201 : f32 to vector<8x32xf32>
    %395 = arith.addf %394, %393 : vector<8x32xf32>
    %396 = arith.divf %394, %395 : vector<8x32xf32>
    %397 = vector.extract_strided_slice %383 {offsets = [0, 64], sizes = [8, 32], strides = [1, 1]} : vector<8x128xf32> to vector<8x32xf32>
    %398 = math.tanh %397 : vector<8x32xf32>
    %399 = vector.extract_strided_slice %383 {offsets = [0, 96], sizes = [8, 32], strides = [1, 1]} : vector<8x128xf32> to vector<8x32xf32>
    %400 = arith.negf %399 : vector<8x32xf32>
    %401 = math.exp %400 : vector<8x32xf32>
    %cst_202 = arith.constant 1.000000e+00 : f32
    %402 = vector.broadcast %cst_202 : f32 to vector<8x32xf32>
    %403 = arith.addf %402, %401 : vector<8x32xf32>
    %404 = arith.divf %402, %403 : vector<8x32xf32>
    %405 = arith.mulf %396, %384 : vector<8x32xf32>
    %406 = arith.mulf %390, %398 : vector<8x32xf32>
    %407 = arith.addf %405, %406 : vector<8x32xf32>
    %408 = math.tanh %407 : vector<8x32xf32>
    %409 = arith.mulf %404, %408 : vector<8x32xf32>
    %c0_203 = arith.constant 0 : index
    %c0_204 = arith.constant 0 : index
    %410 = vector.load %arg14[%c0_203, %c0_204] : memref<8x32xf32, #tpu.memory_space<vmem>>, vector<8x32xf32>
    tpu.vector_store %arg14[%c0_203, %c0_204], %409 {strides = array<i32>} : memref<8x32xf32, #tpu.memory_space<vmem>>, vector<8x32xf32>,
    %c0_205 = arith.constant 0 : index
    %c0_206 = arith.constant 0 : index
    %411 = vector.load %arg15[%c0_205, %c0_206] : memref<8x32xf32, #tpu.memory_space<vmem>>, vector<8x32xf32>
    tpu.vector_store %arg15[%c0_205, %c0_206], %407 {strides = array<i32>} : memref<8x32xf32, #tpu.memory_space<vmem>>, vector<8x32xf32>,
    %c1_i32_207 = arith.constant 1 : i32
    %412 = arith.index_cast %c1_i32_207 : i32 to index
    %c0_208 = arith.constant 0 : index
    %c0_209 = arith.constant 0 : index
    %413 = vector.load %arg12[%412, %c0_208, %c0_209] : memref<8x8x128xf32, #tpu.memory_space<vmem>>, vector<1x8x128xf32>
    %414 = vector.shape_cast %413 : vector<1x8x128xf32> to vector<8x128xf32>
    %c0_210 = arith.constant 0 : index
    %c0_211 = arith.constant 0 : index
    %415 = vector.load %arg14[%c0_210, %c0_211] : memref<8x32xf32, #tpu.memory_space<vmem>>, vector<8x32xf32>
    %c0_212 = arith.constant 0 : index
    %c0_213 = arith.constant 0 : index
    %416 = vector.load %arg5[%c0_212, %c0_213] : memref<32x128xf32, #tpu.memory_space<vmem>>, vector<32x128xf32>
    %cst_214 = arith.constant dense<0.000000e+00> : vector<8x128xf32>
    %417 = tpu.matmul %415, %416, %cst_214 {dimension_numbers = #tpu.dot_dimension_numbers<[1], [0], [0], [1], [0, 0, 1, 1], [], []>} : vector<8x32xf32>, vector<32x128xf32>, vector<8x128xf32> -> vector<8x128xf32>
    %418 = arith.addf %414, %417 : vector<8x128xf32>
    %c0_215 = arith.constant 0 : index
    %c0_216 = arith.constant 0 : index
    %419 = vector.load %arg15[%c0_215, %c0_216] : memref<8x32xf32, #tpu.memory_space<vmem>>, vector<8x32xf32>
    %420 = vector.extract_strided_slice %418 {offsets = [0, 0], sizes = [8, 32], strides = [1, 1]} : vector<8x128xf32> to vector<8x32xf32>
    %421 = arith.negf %420 : vector<8x32xf32>
    %422 = math.exp %421 : vector<8x32xf32>
    %cst_217 = arith.constant 1.000000e+00 : f32
    %423 = vector.broadcast %cst_217 : f32 to vector<8x32xf32>
    %424 = arith.addf %423, %422 : vector<8x32xf32>
    %425 = arith.divf %423, %424 : vector<8x32xf32>
    %426 = vector.extract_strided_slice %418 {offsets = [0, 32], sizes = [8, 32], strides = [1, 1]} : vector<8x128xf32> to vector<8x32xf32>
    %427 = arith.negf %426 : vector<8x32xf32>
    %428 = math.exp %427 : vector<8x32xf32>
    %cst_218 = arith.constant 1.000000e+00 : f32
    %429 = vector.broadcast %cst_218 : f32 to vector<8x32xf32>
    %430 = arith.addf %429, %428 : vector<8x32xf32>
    %431 = arith.divf %429, %430 : vector<8x32xf32>
    %432 = vector.extract_strided_slice %418 {offsets = [0, 64], sizes = [8, 32], strides = [1, 1]} : vector<8x128xf32> to vector<8x32xf32>
    %433 = math.tanh %432 : vector<8x32xf32>
    %434 = vector.extract_strided_slice %418 {offsets = [0, 96], sizes = [8, 32], strides = [1, 1]} : vector<8x128xf32> to vector<8x32xf32>
    %435 = arith.negf %434 : vector<8x32xf32>
    %436 = math.exp %435 : vector<8x32xf32>
    %cst_219 = arith.constant 1.000000e+00 : f32
    %437 = vector.broadcast %cst_219 : f32 to vector<8x32xf32>
    %438 = arith.addf %437, %436 : vector<8x32xf32>
    %439 = arith.divf %437, %438 : vector<8x32xf32>
    %440 = arith.mulf %431, %419 : vector<8x32xf32>
    %441 = arith.mulf %425, %433 : vector<8x32xf32>
    %442 = arith.addf %440, %441 : vector<8x32xf32>
    %443 = math.tanh %442 : vector<8x32xf32>
    %444 = arith.mulf %439, %443 : vector<8x32xf32>
    %c0_220 = arith.constant 0 : index
    %c0_221 = arith.constant 0 : index
    %445 = vector.load %arg14[%c0_220, %c0_221] : memref<8x32xf32, #tpu.memory_space<vmem>>, vector<8x32xf32>
    tpu.vector_store %arg14[%c0_220, %c0_221], %444 {strides = array<i32>} : memref<8x32xf32, #tpu.memory_space<vmem>>, vector<8x32xf32>,
    %c0_222 = arith.constant 0 : index
    %c0_223 = arith.constant 0 : index
    %446 = vector.load %arg15[%c0_222, %c0_223] : memref<8x32xf32, #tpu.memory_space<vmem>>, vector<8x32xf32>
    tpu.vector_store %arg15[%c0_222, %c0_223], %442 {strides = array<i32>} : memref<8x32xf32, #tpu.memory_space<vmem>>, vector<8x32xf32>,
    %c2_i32_224 = arith.constant 2 : i32
    %447 = arith.index_cast %c2_i32_224 : i32 to index
    %c0_225 = arith.constant 0 : index
    %c0_226 = arith.constant 0 : index
    %448 = vector.load %arg12[%447, %c0_225, %c0_226] : memref<8x8x128xf32, #tpu.memory_space<vmem>>, vector<1x8x128xf32>
    %449 = vector.shape_cast %448 : vector<1x8x128xf32> to vector<8x128xf32>
    %c0_227 = arith.constant 0 : index
    %c0_228 = arith.constant 0 : index
    %450 = vector.load %arg14[%c0_227, %c0_228] : memref<8x32xf32, #tpu.memory_space<vmem>>, vector<8x32xf32>
    %c0_229 = arith.constant 0 : index
    %c0_230 = arith.constant 0 : index
    %451 = vector.load %arg5[%c0_229, %c0_230] : memref<32x128xf32, #tpu.memory_space<vmem>>, vector<32x128xf32>
    %cst_231 = arith.constant dense<0.000000e+00> : vector<8x128xf32>
    %452 = tpu.matmul %450, %451, %cst_231 {dimension_numbers = #tpu.dot_dimension_numbers<[1], [0], [0], [1], [0, 0, 1, 1], [], []>} : vector<8x32xf32>, vector<32x128xf32>, vector<8x128xf32> -> vector<8x128xf32>
    %453 = arith.addf %449, %452 : vector<8x128xf32>
    %c0_232 = arith.constant 0 : index
    %c0_233 = arith.constant 0 : index
    %454 = vector.load %arg15[%c0_232, %c0_233] : memref<8x32xf32, #tpu.memory_space<vmem>>, vector<8x32xf32>
    %455 = vector.extract_strided_slice %453 {offsets = [0, 0], sizes = [8, 32], strides = [1, 1]} : vector<8x128xf32> to vector<8x32xf32>
    %456 = arith.negf %455 : vector<8x32xf32>
    %457 = math.exp %456 : vector<8x32xf32>
    %cst_234 = arith.constant 1.000000e+00 : f32
    %458 = vector.broadcast %cst_234 : f32 to vector<8x32xf32>
    %459 = arith.addf %458, %457 : vector<8x32xf32>
    %460 = arith.divf %458, %459 : vector<8x32xf32>
    %461 = vector.extract_strided_slice %453 {offsets = [0, 32], sizes = [8, 32], strides = [1, 1]} : vector<8x128xf32> to vector<8x32xf32>
    %462 = arith.negf %461 : vector<8x32xf32>
    %463 = math.exp %462 : vector<8x32xf32>
    %cst_235 = arith.constant 1.000000e+00 : f32
    %464 = vector.broadcast %cst_235 : f32 to vector<8x32xf32>
    %465 = arith.addf %464, %463 : vector<8x32xf32>
    %466 = arith.divf %464, %465 : vector<8x32xf32>
    %467 = vector.extract_strided_slice %453 {offsets = [0, 64], sizes = [8, 32], strides = [1, 1]} : vector<8x128xf32> to vector<8x32xf32>
    %468 = math.tanh %467 : vector<8x32xf32>
    %469 = vector.extract_strided_slice %453 {offsets = [0, 96], sizes = [8, 32], strides = [1, 1]} : vector<8x128xf32> to vector<8x32xf32>
    %470 = arith.negf %469 : vector<8x32xf32>
    %471 = math.exp %470 : vector<8x32xf32>
    %cst_236 = arith.constant 1.000000e+00 : f32
    %472 = vector.broadcast %cst_236 : f32 to vector<8x32xf32>
    %473 = arith.addf %472, %471 : vector<8x32xf32>
    %474 = arith.divf %472, %473 : vector<8x32xf32>
    %475 = arith.mulf %466, %454 : vector<8x32xf32>
    %476 = arith.mulf %460, %468 : vector<8x32xf32>
    %477 = arith.addf %475, %476 : vector<8x32xf32>
    %478 = math.tanh %477 : vector<8x32xf32>
    %479 = arith.mulf %474, %478 : vector<8x32xf32>
    %c0_237 = arith.constant 0 : index
    %c0_238 = arith.constant 0 : index
    %480 = vector.load %arg14[%c0_237, %c0_238] : memref<8x32xf32, #tpu.memory_space<vmem>>, vector<8x32xf32>
    tpu.vector_store %arg14[%c0_237, %c0_238], %479 {strides = array<i32>} : memref<8x32xf32, #tpu.memory_space<vmem>>, vector<8x32xf32>,
    %c0_239 = arith.constant 0 : index
    %c0_240 = arith.constant 0 : index
    %481 = vector.load %arg15[%c0_239, %c0_240] : memref<8x32xf32, #tpu.memory_space<vmem>>, vector<8x32xf32>
    tpu.vector_store %arg15[%c0_239, %c0_240], %477 {strides = array<i32>} : memref<8x32xf32, #tpu.memory_space<vmem>>, vector<8x32xf32>,
    %c3_i32_241 = arith.constant 3 : i32
    %482 = arith.index_cast %c3_i32_241 : i32 to index
    %c0_242 = arith.constant 0 : index
    %c0_243 = arith.constant 0 : index
    %483 = vector.load %arg12[%482, %c0_242, %c0_243] : memref<8x8x128xf32, #tpu.memory_space<vmem>>, vector<1x8x128xf32>
    %484 = vector.shape_cast %483 : vector<1x8x128xf32> to vector<8x128xf32>
    %c0_244 = arith.constant 0 : index
    %c0_245 = arith.constant 0 : index
    %485 = vector.load %arg14[%c0_244, %c0_245] : memref<8x32xf32, #tpu.memory_space<vmem>>, vector<8x32xf32>
    %c0_246 = arith.constant 0 : index
    %c0_247 = arith.constant 0 : index
    %486 = vector.load %arg5[%c0_246, %c0_247] : memref<32x128xf32, #tpu.memory_space<vmem>>, vector<32x128xf32>
    %cst_248 = arith.constant dense<0.000000e+00> : vector<8x128xf32>
    %487 = tpu.matmul %485, %486, %cst_248 {dimension_numbers = #tpu.dot_dimension_numbers<[1], [0], [0], [1], [0, 0, 1, 1], [], []>} : vector<8x32xf32>, vector<32x128xf32>, vector<8x128xf32> -> vector<8x128xf32>
    %488 = arith.addf %484, %487 : vector<8x128xf32>
    %c0_249 = arith.constant 0 : index
    %c0_250 = arith.constant 0 : index
    %489 = vector.load %arg15[%c0_249, %c0_250] : memref<8x32xf32, #tpu.memory_space<vmem>>, vector<8x32xf32>
    %490 = vector.extract_strided_slice %488 {offsets = [0, 0], sizes = [8, 32], strides = [1, 1]} : vector<8x128xf32> to vector<8x32xf32>
    %491 = arith.negf %490 : vector<8x32xf32>
    %492 = math.exp %491 : vector<8x32xf32>
    %cst_251 = arith.constant 1.000000e+00 : f32
    %493 = vector.broadcast %cst_251 : f32 to vector<8x32xf32>
    %494 = arith.addf %493, %492 : vector<8x32xf32>
    %495 = arith.divf %493, %494 : vector<8x32xf32>
    %496 = vector.extract_strided_slice %488 {offsets = [0, 32], sizes = [8, 32], strides = [1, 1]} : vector<8x128xf32> to vector<8x32xf32>
    %497 = arith.negf %496 : vector<8x32xf32>
    %498 = math.exp %497 : vector<8x32xf32>
    %cst_252 = arith.constant 1.000000e+00 : f32
    %499 = vector.broadcast %cst_252 : f32 to vector<8x32xf32>
    %500 = arith.addf %499, %498 : vector<8x32xf32>
    %501 = arith.divf %499, %500 : vector<8x32xf32>
    %502 = vector.extract_strided_slice %488 {offsets = [0, 64], sizes = [8, 32], strides = [1, 1]} : vector<8x128xf32> to vector<8x32xf32>
    %503 = math.tanh %502 : vector<8x32xf32>
    %504 = vector.extract_strided_slice %488 {offsets = [0, 96], sizes = [8, 32], strides = [1, 1]} : vector<8x128xf32> to vector<8x32xf32>
    %505 = arith.negf %504 : vector<8x32xf32>
    %506 = math.exp %505 : vector<8x32xf32>
    %cst_253 = arith.constant 1.000000e+00 : f32
    %507 = vector.broadcast %cst_253 : f32 to vector<8x32xf32>
    %508 = arith.addf %507, %506 : vector<8x32xf32>
    %509 = arith.divf %507, %508 : vector<8x32xf32>
    %510 = arith.mulf %501, %489 : vector<8x32xf32>
    %511 = arith.mulf %495, %503 : vector<8x32xf32>
    %512 = arith.addf %510, %511 : vector<8x32xf32>
    %513 = math.tanh %512 : vector<8x32xf32>
    %514 = arith.mulf %509, %513 : vector<8x32xf32>
    %c0_254 = arith.constant 0 : index
    %c0_255 = arith.constant 0 : index
    %515 = vector.load %arg14[%c0_254, %c0_255] : memref<8x32xf32, #tpu.memory_space<vmem>>, vector<8x32xf32>
    tpu.vector_store %arg14[%c0_254, %c0_255], %514 {strides = array<i32>} : memref<8x32xf32, #tpu.memory_space<vmem>>, vector<8x32xf32>,
    %c0_256 = arith.constant 0 : index
    %c0_257 = arith.constant 0 : index
    %516 = vector.load %arg15[%c0_256, %c0_257] : memref<8x32xf32, #tpu.memory_space<vmem>>, vector<8x32xf32>
    tpu.vector_store %arg15[%c0_256, %c0_257], %512 {strides = array<i32>} : memref<8x32xf32, #tpu.memory_space<vmem>>, vector<8x32xf32>,
    %c4_i32_258 = arith.constant 4 : i32
    %517 = arith.index_cast %c4_i32_258 : i32 to index
    %c0_259 = arith.constant 0 : index
    %c0_260 = arith.constant 0 : index
    %518 = vector.load %arg12[%517, %c0_259, %c0_260] : memref<8x8x128xf32, #tpu.memory_space<vmem>>, vector<1x8x128xf32>
    %519 = vector.shape_cast %518 : vector<1x8x128xf32> to vector<8x128xf32>
    %c0_261 = arith.constant 0 : index
    %c0_262 = arith.constant 0 : index
    %520 = vector.load %arg14[%c0_261, %c0_262] : memref<8x32xf32, #tpu.memory_space<vmem>>, vector<8x32xf32>
    %c0_263 = arith.constant 0 : index
    %c0_264 = arith.constant 0 : index
    %521 = vector.load %arg5[%c0_263, %c0_264] : memref<32x128xf32, #tpu.memory_space<vmem>>, vector<32x128xf32>
    %cst_265 = arith.constant dense<0.000000e+00> : vector<8x128xf32>
    %522 = tpu.matmul %520, %521, %cst_265 {dimension_numbers = #tpu.dot_dimension_numbers<[1], [0], [0], [1], [0, 0, 1, 1], [], []>} : vector<8x32xf32>, vector<32x128xf32>, vector<8x128xf32> -> vector<8x128xf32>
    %523 = arith.addf %519, %522 : vector<8x128xf32>
    %c0_266 = arith.constant 0 : index
    %c0_267 = arith.constant 0 : index
    %524 = vector.load %arg15[%c0_266, %c0_267] : memref<8x32xf32, #tpu.memory_space<vmem>>, vector<8x32xf32>
    %525 = vector.extract_strided_slice %523 {offsets = [0, 0], sizes = [8, 32], strides = [1, 1]} : vector<8x128xf32> to vector<8x32xf32>
    %526 = arith.negf %525 : vector<8x32xf32>
    %527 = math.exp %526 : vector<8x32xf32>
    %cst_268 = arith.constant 1.000000e+00 : f32
    %528 = vector.broadcast %cst_268 : f32 to vector<8x32xf32>
    %529 = arith.addf %528, %527 : vector<8x32xf32>
    %530 = arith.divf %528, %529 : vector<8x32xf32>
    %531 = vector.extract_strided_slice %523 {offsets = [0, 32], sizes = [8, 32], strides = [1, 1]} : vector<8x128xf32> to vector<8x32xf32>
    %532 = arith.negf %531 : vector<8x32xf32>
    %533 = math.exp %532 : vector<8x32xf32>
    %cst_269 = arith.constant 1.000000e+00 : f32
    %534 = vector.broadcast %cst_269 : f32 to vector<8x32xf32>
    %535 = arith.addf %534, %533 : vector<8x32xf32>
    %536 = arith.divf %534, %535 : vector<8x32xf32>
    %537 = vector.extract_strided_slice %523 {offsets = [0, 64], sizes = [8, 32], strides = [1, 1]} : vector<8x128xf32> to vector<8x32xf32>
    %538 = math.tanh %537 : vector<8x32xf32>
    %539 = vector.extract_strided_slice %523 {offsets = [0, 96], sizes = [8, 32], strides = [1, 1]} : vector<8x128xf32> to vector<8x32xf32>
    %540 = arith.negf %539 : vector<8x32xf32>
    %541 = math.exp %540 : vector<8x32xf32>
    %cst_270 = arith.constant 1.000000e+00 : f32
    %542 = vector.broadcast %cst_270 : f32 to vector<8x32xf32>
    %543 = arith.addf %542, %541 : vector<8x32xf32>
    %544 = arith.divf %542, %543 : vector<8x32xf32>
    %545 = arith.mulf %536, %524 : vector<8x32xf32>
    %546 = arith.mulf %530, %538 : vector<8x32xf32>
    %547 = arith.addf %545, %546 : vector<8x32xf32>
    %548 = math.tanh %547 : vector<8x32xf32>
    %549 = arith.mulf %544, %548 : vector<8x32xf32>
    %c0_271 = arith.constant 0 : index
    %c0_272 = arith.constant 0 : index
    %550 = vector.load %arg14[%c0_271, %c0_272] : memref<8x32xf32, #tpu.memory_space<vmem>>, vector<8x32xf32>
    tpu.vector_store %arg14[%c0_271, %c0_272], %549 {strides = array<i32>} : memref<8x32xf32, #tpu.memory_space<vmem>>, vector<8x32xf32>,
    %c0_273 = arith.constant 0 : index
    %c0_274 = arith.constant 0 : index
    %551 = vector.load %arg15[%c0_273, %c0_274] : memref<8x32xf32, #tpu.memory_space<vmem>>, vector<8x32xf32>
    tpu.vector_store %arg15[%c0_273, %c0_274], %547 {strides = array<i32>} : memref<8x32xf32, #tpu.memory_space<vmem>>, vector<8x32xf32>,
    %c5_i32_275 = arith.constant 5 : i32
    %552 = arith.index_cast %c5_i32_275 : i32 to index
    %c0_276 = arith.constant 0 : index
    %c0_277 = arith.constant 0 : index
    %553 = vector.load %arg12[%552, %c0_276, %c0_277] : memref<8x8x128xf32, #tpu.memory_space<vmem>>, vector<1x8x128xf32>
    %554 = vector.shape_cast %553 : vector<1x8x128xf32> to vector<8x128xf32>
    %c0_278 = arith.constant 0 : index
    %c0_279 = arith.constant 0 : index
    %555 = vector.load %arg14[%c0_278, %c0_279] : memref<8x32xf32, #tpu.memory_space<vmem>>, vector<8x32xf32>
    %c0_280 = arith.constant 0 : index
    %c0_281 = arith.constant 0 : index
    %556 = vector.load %arg5[%c0_280, %c0_281] : memref<32x128xf32, #tpu.memory_space<vmem>>, vector<32x128xf32>
    %cst_282 = arith.constant dense<0.000000e+00> : vector<8x128xf32>
    %557 = tpu.matmul %555, %556, %cst_282 {dimension_numbers = #tpu.dot_dimension_numbers<[1], [0], [0], [1], [0, 0, 1, 1], [], []>} : vector<8x32xf32>, vector<32x128xf32>, vector<8x128xf32> -> vector<8x128xf32>
    %558 = arith.addf %554, %557 : vector<8x128xf32>
    %c0_283 = arith.constant 0 : index
    %c0_284 = arith.constant 0 : index
    %559 = vector.load %arg15[%c0_283, %c0_284] : memref<8x32xf32, #tpu.memory_space<vmem>>, vector<8x32xf32>
    %560 = vector.extract_strided_slice %558 {offsets = [0, 0], sizes = [8, 32], strides = [1, 1]} : vector<8x128xf32> to vector<8x32xf32>
    %561 = arith.negf %560 : vector<8x32xf32>
    %562 = math.exp %561 : vector<8x32xf32>
    %cst_285 = arith.constant 1.000000e+00 : f32
    %563 = vector.broadcast %cst_285 : f32 to vector<8x32xf32>
    %564 = arith.addf %563, %562 : vector<8x32xf32>
    %565 = arith.divf %563, %564 : vector<8x32xf32>
    %566 = vector.extract_strided_slice %558 {offsets = [0, 32], sizes = [8, 32], strides = [1, 1]} : vector<8x128xf32> to vector<8x32xf32>
    %567 = arith.negf %566 : vector<8x32xf32>
    %568 = math.exp %567 : vector<8x32xf32>
    %cst_286 = arith.constant 1.000000e+00 : f32
    %569 = vector.broadcast %cst_286 : f32 to vector<8x32xf32>
    %570 = arith.addf %569, %568 : vector<8x32xf32>
    %571 = arith.divf %569, %570 : vector<8x32xf32>
    %572 = vector.extract_strided_slice %558 {offsets = [0, 64], sizes = [8, 32], strides = [1, 1]} : vector<8x128xf32> to vector<8x32xf32>
    %573 = math.tanh %572 : vector<8x32xf32>
    %574 = vector.extract_strided_slice %558 {offsets = [0, 96], sizes = [8, 32], strides = [1, 1]} : vector<8x128xf32> to vector<8x32xf32>
    %575 = arith.negf %574 : vector<8x32xf32>
    %576 = math.exp %575 : vector<8x32xf32>
    %cst_287 = arith.constant 1.000000e+00 : f32
    %577 = vector.broadcast %cst_287 : f32 to vector<8x32xf32>
    %578 = arith.addf %577, %576 : vector<8x32xf32>
    %579 = arith.divf %577, %578 : vector<8x32xf32>
    %580 = arith.mulf %571, %559 : vector<8x32xf32>
    %581 = arith.mulf %565, %573 : vector<8x32xf32>
    %582 = arith.addf %580, %581 : vector<8x32xf32>
    %583 = math.tanh %582 : vector<8x32xf32>
    %584 = arith.mulf %579, %583 : vector<8x32xf32>
    %c0_288 = arith.constant 0 : index
    %c0_289 = arith.constant 0 : index
    %585 = vector.load %arg14[%c0_288, %c0_289] : memref<8x32xf32, #tpu.memory_space<vmem>>, vector<8x32xf32>
    tpu.vector_store %arg14[%c0_288, %c0_289], %584 {strides = array<i32>} : memref<8x32xf32, #tpu.memory_space<vmem>>, vector<8x32xf32>,
    %c0_290 = arith.constant 0 : index
    %c0_291 = arith.constant 0 : index
    %586 = vector.load %arg15[%c0_290, %c0_291] : memref<8x32xf32, #tpu.memory_space<vmem>>, vector<8x32xf32>
    tpu.vector_store %arg15[%c0_290, %c0_291], %582 {strides = array<i32>} : memref<8x32xf32, #tpu.memory_space<vmem>>, vector<8x32xf32>,
    %c6_i32_292 = arith.constant 6 : i32
    %587 = arith.index_cast %c6_i32_292 : i32 to index
    %c0_293 = arith.constant 0 : index
    %c0_294 = arith.constant 0 : index
    %588 = vector.load %arg12[%587, %c0_293, %c0_294] : memref<8x8x128xf32, #tpu.memory_space<vmem>>, vector<1x8x128xf32>
    %589 = vector.shape_cast %588 : vector<1x8x128xf32> to vector<8x128xf32>
    %c0_295 = arith.constant 0 : index
    %c0_296 = arith.constant 0 : index
    %590 = vector.load %arg14[%c0_295, %c0_296] : memref<8x32xf32, #tpu.memory_space<vmem>>, vector<8x32xf32>
    %c0_297 = arith.constant 0 : index
    %c0_298 = arith.constant 0 : index
    %591 = vector.load %arg5[%c0_297, %c0_298] : memref<32x128xf32, #tpu.memory_space<vmem>>, vector<32x128xf32>
    %cst_299 = arith.constant dense<0.000000e+00> : vector<8x128xf32>
    %592 = tpu.matmul %590, %591, %cst_299 {dimension_numbers = #tpu.dot_dimension_numbers<[1], [0], [0], [1], [0, 0, 1, 1], [], []>} : vector<8x32xf32>, vector<32x128xf32>, vector<8x128xf32> -> vector<8x128xf32>
    %593 = arith.addf %589, %592 : vector<8x128xf32>
    %c0_300 = arith.constant 0 : index
    %c0_301 = arith.constant 0 : index
    %594 = vector.load %arg15[%c0_300, %c0_301] : memref<8x32xf32, #tpu.memory_space<vmem>>, vector<8x32xf32>
    %595 = vector.extract_strided_slice %593 {offsets = [0, 0], sizes = [8, 32], strides = [1, 1]} : vector<8x128xf32> to vector<8x32xf32>
    %596 = arith.negf %595 : vector<8x32xf32>
    %597 = math.exp %596 : vector<8x32xf32>
    %cst_302 = arith.constant 1.000000e+00 : f32
    %598 = vector.broadcast %cst_302 : f32 to vector<8x32xf32>
    %599 = arith.addf %598, %597 : vector<8x32xf32>
    %600 = arith.divf %598, %599 : vector<8x32xf32>
    %601 = vector.extract_strided_slice %593 {offsets = [0, 32], sizes = [8, 32], strides = [1, 1]} : vector<8x128xf32> to vector<8x32xf32>
    %602 = arith.negf %601 : vector<8x32xf32>
    %603 = math.exp %602 : vector<8x32xf32>
    %cst_303 = arith.constant 1.000000e+00 : f32
    %604 = vector.broadcast %cst_303 : f32 to vector<8x32xf32>
    %605 = arith.addf %604, %603 : vector<8x32xf32>
    %606 = arith.divf %604, %605 : vector<8x32xf32>
    %607 = vector.extract_strided_slice %593 {offsets = [0, 64], sizes = [8, 32], strides = [1, 1]} : vector<8x128xf32> to vector<8x32xf32>
    %608 = math.tanh %607 : vector<8x32xf32>
    %609 = vector.extract_strided_slice %593 {offsets = [0, 96], sizes = [8, 32], strides = [1, 1]} : vector<8x128xf32> to vector<8x32xf32>
    %610 = arith.negf %609 : vector<8x32xf32>
    %611 = math.exp %610 : vector<8x32xf32>
    %cst_304 = arith.constant 1.000000e+00 : f32
    %612 = vector.broadcast %cst_304 : f32 to vector<8x32xf32>
    %613 = arith.addf %612, %611 : vector<8x32xf32>
    %614 = arith.divf %612, %613 : vector<8x32xf32>
    %615 = arith.mulf %606, %594 : vector<8x32xf32>
    %616 = arith.mulf %600, %608 : vector<8x32xf32>
    %617 = arith.addf %615, %616 : vector<8x32xf32>
    %618 = math.tanh %617 : vector<8x32xf32>
    %619 = arith.mulf %614, %618 : vector<8x32xf32>
    %c0_305 = arith.constant 0 : index
    %c0_306 = arith.constant 0 : index
    %620 = vector.load %arg14[%c0_305, %c0_306] : memref<8x32xf32, #tpu.memory_space<vmem>>, vector<8x32xf32>
    tpu.vector_store %arg14[%c0_305, %c0_306], %619 {strides = array<i32>} : memref<8x32xf32, #tpu.memory_space<vmem>>, vector<8x32xf32>,
    %c0_307 = arith.constant 0 : index
    %c0_308 = arith.constant 0 : index
    %621 = vector.load %arg15[%c0_307, %c0_308] : memref<8x32xf32, #tpu.memory_space<vmem>>, vector<8x32xf32>
    tpu.vector_store %arg15[%c0_307, %c0_308], %617 {strides = array<i32>} : memref<8x32xf32, #tpu.memory_space<vmem>>, vector<8x32xf32>,
    %c7_i32_309 = arith.constant 7 : i32
    %622 = arith.index_cast %c7_i32_309 : i32 to index
    %c0_310 = arith.constant 0 : index
    %c0_311 = arith.constant 0 : index
    %623 = vector.load %arg12[%622, %c0_310, %c0_311] : memref<8x8x128xf32, #tpu.memory_space<vmem>>, vector<1x8x128xf32>
    %624 = vector.shape_cast %623 : vector<1x8x128xf32> to vector<8x128xf32>
    %c0_312 = arith.constant 0 : index
    %c0_313 = arith.constant 0 : index
    %625 = vector.load %arg14[%c0_312, %c0_313] : memref<8x32xf32, #tpu.memory_space<vmem>>, vector<8x32xf32>
    %c0_314 = arith.constant 0 : index
    %c0_315 = arith.constant 0 : index
    %626 = vector.load %arg5[%c0_314, %c0_315] : memref<32x128xf32, #tpu.memory_space<vmem>>, vector<32x128xf32>
    %cst_316 = arith.constant dense<0.000000e+00> : vector<8x128xf32>
    %627 = tpu.matmul %625, %626, %cst_316 {dimension_numbers = #tpu.dot_dimension_numbers<[1], [0], [0], [1], [0, 0, 1, 1], [], []>} : vector<8x32xf32>, vector<32x128xf32>, vector<8x128xf32> -> vector<8x128xf32>
    %628 = arith.addf %624, %627 : vector<8x128xf32>
    %c0_317 = arith.constant 0 : index
    %c0_318 = arith.constant 0 : index
    %629 = vector.load %arg15[%c0_317, %c0_318] : memref<8x32xf32, #tpu.memory_space<vmem>>, vector<8x32xf32>
    %630 = vector.extract_strided_slice %628 {offsets = [0, 0], sizes = [8, 32], strides = [1, 1]} : vector<8x128xf32> to vector<8x32xf32>
    %631 = arith.negf %630 : vector<8x32xf32>
    %632 = math.exp %631 : vector<8x32xf32>
    %cst_319 = arith.constant 1.000000e+00 : f32
    %633 = vector.broadcast %cst_319 : f32 to vector<8x32xf32>
    %634 = arith.addf %633, %632 : vector<8x32xf32>
    %635 = arith.divf %633, %634 : vector<8x32xf32>
    %636 = vector.extract_strided_slice %628 {offsets = [0, 32], sizes = [8, 32], strides = [1, 1]} : vector<8x128xf32> to vector<8x32xf32>
    %637 = arith.negf %636 : vector<8x32xf32>
    %638 = math.exp %637 : vector<8x32xf32>
    %cst_320 = arith.constant 1.000000e+00 : f32
    %639 = vector.broadcast %cst_320 : f32 to vector<8x32xf32>
    %640 = arith.addf %639, %638 : vector<8x32xf32>
    %641 = arith.divf %639, %640 : vector<8x32xf32>
    %642 = vector.extract_strided_slice %628 {offsets = [0, 64], sizes = [8, 32], strides = [1, 1]} : vector<8x128xf32> to vector<8x32xf32>
    %643 = math.tanh %642 : vector<8x32xf32>
    %644 = vector.extract_strided_slice %628 {offsets = [0, 96], sizes = [8, 32], strides = [1, 1]} : vector<8x128xf32> to vector<8x32xf32>
    %645 = arith.negf %644 : vector<8x32xf32>
    %646 = math.exp %645 : vector<8x32xf32>
    %cst_321 = arith.constant 1.000000e+00 : f32
    %647 = vector.broadcast %cst_321 : f32 to vector<8x32xf32>
    %648 = arith.addf %647, %646 : vector<8x32xf32>
    %649 = arith.divf %647, %648 : vector<8x32xf32>
    %650 = arith.mulf %641, %629 : vector<8x32xf32>
    %651 = arith.mulf %635, %643 : vector<8x32xf32>
    %652 = arith.addf %650, %651 : vector<8x32xf32>
    %653 = math.tanh %652 : vector<8x32xf32>
    %654 = arith.mulf %649, %653 : vector<8x32xf32>
    %c0_322 = arith.constant 0 : index
    %c0_323 = arith.constant 0 : index
    %655 = vector.load %arg14[%c0_322, %c0_323] : memref<8x32xf32, #tpu.memory_space<vmem>>, vector<8x32xf32>
    tpu.vector_store %arg14[%c0_322, %c0_323], %654 {strides = array<i32>} : memref<8x32xf32, #tpu.memory_space<vmem>>, vector<8x32xf32>,
    %c0_324 = arith.constant 0 : index
    %c0_325 = arith.constant 0 : index
    %656 = vector.load %arg15[%c0_324, %c0_325] : memref<8x32xf32, #tpu.memory_space<vmem>>, vector<8x32xf32>
    tpu.vector_store %arg15[%c0_324, %c0_325], %652 {strides = array<i32>} : memref<8x32xf32, #tpu.memory_space<vmem>>, vector<8x32xf32>,
    %c8_i32_326 = arith.constant 8 : i32
    %c0_327 = arith.constant 0 : index
    %c0_328 = arith.constant 0 : index
    %657 = vector.load %arg14[%c0_327, %c0_328] : memref<8x32xf32, #tpu.memory_space<vmem>>, vector<8x32xf32>
    %c0_329 = arith.constant 0 : index
    %c0_330 = arith.constant 0 : index
    %658 = vector.load %arg7[%c0_329, %c0_330] : memref<32x64xf32, #tpu.memory_space<vmem>>, vector<32x64xf32>
    %cst_331 = arith.constant dense<0.000000e+00> : vector<8x64xf32>
    %659 = tpu.matmul %657, %658, %cst_331 {dimension_numbers = #tpu.dot_dimension_numbers<[1], [0], [0], [1], [0, 0, 1, 1], [], []>} : vector<8x32xf32>, vector<32x64xf32>, vector<8x64xf32> -> vector<8x64xf32>
    %c0_332 = arith.constant 0 : index
    %c0_333 = arith.constant 0 : index
    %660 = vector.load %arg8[%c0_332, %c0_333] : memref<1x64xf32, #tpu.memory_space<vmem>>, vector<1x64xf32>
    %661 = vector.broadcast %660 : vector<1x64xf32> to vector<8x64xf32>
    %662 = arith.addf %659, %661 : vector<8x64xf32>
    %cst_334 = arith.constant 0.000000e+00 : f32
    %663 = vector.broadcast %cst_334 : f32 to vector<8x64xf32>
    %664 = arith.maximumf %662, %663 : vector<8x64xf32>
    %c0_335 = arith.constant 0 : index
    %c0_336 = arith.constant 0 : index
    %665 = vector.load %arg9[%c0_335, %c0_336] : memref<64x4xf32, #tpu.memory_space<vmem>>, vector<64x4xf32>
    %cst_337 = arith.constant dense<0.000000e+00> : vector<8x4xf32>
    %666 = tpu.matmul %664, %665, %cst_337 {dimension_numbers = #tpu.dot_dimension_numbers<[1], [0], [0], [1], [0, 0, 1, 1], [], []>} : vector<8x64xf32>, vector<64x4xf32>, vector<8x4xf32> -> vector<8x4xf32>
    %c0_338 = arith.constant 0 : index
    %c0_339 = arith.constant 0 : index
    %667 = vector.load %arg10[%c0_338, %c0_339] : memref<1x4xf32, #tpu.memory_space<vmem>>, vector<1x4xf32>
    %668 = vector.broadcast %667 : vector<1x4xf32> to vector<8x4xf32>
    %669 = arith.addf %666, %668 : vector<8x4xf32>
    %c0_340 = arith.constant 0 : index
    %c0_341 = arith.constant 0 : index
    %670 = vector.load %arg11[%c0_340, %c0_341] : memref<8x4xf32, #tpu.memory_space<vmem>>, vector<8x4xf32>
    tpu.vector_store %arg11[%c0_340, %c0_341], %669 {strides = array<i32>} : memref<8x4xf32, #tpu.memory_space<vmem>>, vector<8x4xf32>,
    return
  }
}

</mosaic_0001>

<llo_original>
// kernel: enhanced_lstm_net_forward.1
$region0: #{enhanced_lstm_net_forward.1}
  #allocation0 [shape = 'u32[]', space=smem, size = 0x4, offset = 0x4, fixed_abs, tag = 'smem constant byte address 0x4 - core index']
  #allocation1 [shape = 'u32[72,128]{1,0:T(1,128)}', space=vmem, size = 0x9000, scoped, tag = 'internal scratch']
  #allocation2 [shape = 'f32[8,8,128]{2,1,0:T(8,128)}', space=vmem, size = 0x8000, scoped, tag = 'scratch operand']
  #allocation3 [shape = 'f32[8,8,32]{2,1,0:T(8,128)}', space=vmem, size = 0x8000, scoped, tag = 'scratch operand']
  #allocation4 [shape = 'f32[8,32]{1,0:T(8,128)}', space=vmem, size = 0x1000, scoped, tag = 'scratch operand']
  #allocation5 [shape = 'f32[8,32]{1,0:T(8,128)}', space=vmem, size = 0x1000, scoped, tag = 'scratch operand']
  %s0 = inlined_call_operand.vmem [shape: f32[8,8,16], index: 0, kind: input, shape index: {}]
  %s1 = inlined_call_operand.vmem [shape: f32[16,128], index: 1, kind: input, shape index: {}]
  %s2 = inlined_call_operand.vmem [shape: f32[32,128], index: 2, kind: input, shape index: {}]
  %s3 = inlined_call_operand.vmem [shape: f32[1,128], index: 3, kind: input, shape index: {}]
  %s4 = inlined_call_operand.vmem [shape: f32[32,128], index: 4, kind: input, shape index: {}]
  %s5 = inlined_call_operand.vmem [shape: f32[32,128], index: 5, kind: input, shape index: {}]
  %s6 = inlined_call_operand.vmem [shape: f32[1,128], index: 6, kind: input, shape index: {}]
  %s7 = inlined_call_operand.vmem [shape: f32[32,64], index: 7, kind: input, shape index: {}]
  %s8 = inlined_call_operand.hbm [shape: f32[1,64], index: 8, kind: input, shape index: {}]
  %s9 = inlined_call_operand.vmem [shape: f32[64,4], index: 9, kind: input, shape index: {}]
  %s10 = inlined_call_operand.vmem [shape: f32[1,4], index: 10, kind: input, shape index: {}]
  %s11 = inlined_call_operand.vmem [shape: f32[8,4], index: 11, kind: output, shape index: {}]
  %s12 = sld [smem:[#allocation0]]
  $region58: #{enhanced_lstm_net_forward.1} parent=0
    _
  %s14 = ssub.s32 1, %s12
  %s15 = scalar_select 0, %s14, %s12
  $region1: #{enhanced_lstm_net_forward.1} parent=0
    #allocation6 [shape = 'u8[512]{0}', space=vmem, size = 0x400, scoped, tag = 'input window, operand 8, single buffered']
    #allocation7 [shape = 's32[1]{0}', space=sflag, size = 0x4, scoped, tag = 'scoped memory for enhanced_lstm_net_forward.1']
    %16 = vsyncpa [#allocation7], 0
    // Predicated region
    $region2: #{enhanced_lstm_net_forward.1} parent=1 // pred_check
      _
    $region3: #{enhanced_lstm_net_forward.1} parent=1 // pred_check_branch
      %18 = sbr.rel (0) target = $region5
    $region4: #{enhanced_lstm_net_forward.1} parent=1 // pred_region
      _
    $region5: #{enhanced_lstm_net_forward.1} parent=1 // pred_fallthru
      _
    // Predicated region
    $region6: #{enhanced_lstm_net_forward.1} parent=1 // pred_check
      _
    $region7: #{enhanced_lstm_net_forward.1} parent=1 // pred_check_branch
      %20 = sbr.rel (0) target = $region9
    $region8: #{enhanced_lstm_net_forward.1} parent=1 // pred_region
      _
    $region9: #{enhanced_lstm_net_forward.1} parent=1 // pred_fallthru
      _
    // Predicated region
    $region10: #{enhanced_lstm_net_forward.1} parent=1 // pred_check
      _
    $region11: #{enhanced_lstm_net_forward.1} parent=1 // pred_check_branch
      %22 = sbr.rel (0) target = $region13
    $region12: #{enhanced_lstm_net_forward.1} parent=1 // pred_region
      _
    $region13: #{enhanced_lstm_net_forward.1} parent=1 // pred_fallthru
      _
    // Predicated region
    $region14: #{enhanced_lstm_net_forward.1} parent=1 // pred_check
      _
    $region15: #{enhanced_lstm_net_forward.1} parent=1 // pred_check_branch
      %24 = sbr.rel (0) target = $region17
    $region16: #{enhanced_lstm_net_forward.1} parent=1 // pred_region
      _
    $region17: #{enhanced_lstm_net_forward.1} parent=1 // pred_fallthru
      _
    // Predicated region
    $region18: #{enhanced_lstm_net_forward.1} parent=1 // pred_check
      _
    $region19: #{enhanced_lstm_net_forward.1} parent=1 // pred_check_branch
      %26 = sbr.rel (0) target = $region21
    $region20: #{enhanced_lstm_net_forward.1} parent=1 // pred_region
      _
    $region21: #{enhanced_lstm_net_forward.1} parent=1 // pred_fallthru
      _
    // Predicated region
    $region22: #{enhanced_lstm_net_forward.1} parent=1 // pred_check
      _
    $region23: #{enhanced_lstm_net_forward.1} parent=1 // pred_check_branch
      %28 = sbr.rel (0) target = $region25
    $region24: #{enhanced_lstm_net_forward.1} parent=1 // pred_region
      _
    $region25: #{enhanced_lstm_net_forward.1} parent=1 // pred_fallthru
      _
    // Predicated region
    $region26: #{enhanced_lstm_net_forward.1} parent=1 // pred_check
      _
    $region27: #{enhanced_lstm_net_forward.1} parent=1 // pred_check_branch
      %30 = sbr.rel (0) target = $region29
    $region28: #{enhanced_lstm_net_forward.1} parent=1 // pred_region
      _
    $region29: #{enhanced_lstm_net_forward.1} parent=1 // pred_fallthru
      _
    // Predicated region
    $region30: #{enhanced_lstm_net_forward.1} parent=1 // pred_check
      _
    $region31: #{enhanced_lstm_net_forward.1} parent=1 // pred_check_branch
      %32 = sbr.rel (0) target = $region33
    $region32: #{enhanced_lstm_net_forward.1} parent=1 // pred_region
      _
    $region33: #{enhanced_lstm_net_forward.1} parent=1 // pred_fallthru
      _
    // Predicated region
    $region34: #{enhanced_lstm_net_forward.1} parent=1 // pred_check
      _
    $region35: #{enhanced_lstm_net_forward.1} parent=1 // pred_check_branch
      %34 = sbr.rel (0) target = $region37
    $region36: #{enhanced_lstm_net_forward.1} parent=1 // pred_region
      %36 = vsyncadd [#allocation7], 0
      %s38 = sshll.u32 %s8, 4
      %s39 = int_to_ptr.hbm [resolvable:$true] %s38
      %s40 = sshll.u32 [#allocation6], 4
      %s41 = int_to_ptr.vmem [resolvable:$true] %s40
      %43 = dma.hbm_to_vmem [thread:$0]  %s39, 16, %s41, [#allocation7]
    $region37: #{enhanced_lstm_net_forward.1} parent=1 // pred_fallthru
      _
    // Predicated region
    $region38: #{enhanced_lstm_net_forward.1} parent=1 // pred_check
      _
    $region39: #{enhanced_lstm_net_forward.1} parent=1 // pred_check_branch
      %45 = sbr.rel (0) target = $region41
    $region40: #{enhanced_lstm_net_forward.1} parent=1 // pred_region
      _
    $region41: #{enhanced_lstm_net_forward.1} parent=1 // pred_fallthru
      _
    // Predicated region
    $region42: #{enhanced_lstm_net_forward.1} parent=1 // pred_check
      _
    $region43: #{enhanced_lstm_net_forward.1} parent=1 // pred_check_branch
      %47 = sbr.rel (0) target = $region45
    $region44: #{enhanced_lstm_net_forward.1} parent=1 // pred_region
      _
    $region45: #{enhanced_lstm_net_forward.1} parent=1 // pred_fallthru
      _
    // Predicated region
    $region46: #{enhanced_lstm_net_forward.1} parent=1 // pred_check
      _
    $region47: #{enhanced_lstm_net_forward.1} parent=1 // pred_check_branch
      %49 = sbr.rel (0) target = $region49
    $region48: #{enhanced_lstm_net_forward.1} parent=1 // pred_region
      %51 = dma.done [#allocation7], 16
    $region49: #{enhanced_lstm_net_forward.1} parent=1 // pred_fallthru
      _
    %v52 = vld [vmem:[%s0] sm:$0xff]
    %v53 = vld [vmem:[%s0 + $0x8] sm:$0xff]
    %v54 = vld [vmem:[%s0 + $0x10] sm:$0xff]
    %v55 = vld [vmem:[%s0 + $0x18] sm:$0xff]
    %v56 = vld [vmem:[%s0 + $0x20] sm:$0xff]
    %v57 = vld [vmem:[%s0 + $0x28] sm:$0xff]
    %v58 = vld [vmem:[%s0 + $0x30] sm:$0xff]
    %v59 = vld [vmem:[%s0 + $0x38] sm:$0xff]
    %v60 = vld [vmem:[%s1] sm:$0xff]
    %v61 = vld [vmem:[%s1 + $0x8] sm:$0xff]
    %v62 = vld [vmem:[%s3] sm:$0x1]
    %v64 = vperm.slane %v62, 0
    %vm66 = vcmask 130048
    %v68 = vsel %vm66, %v52, 0
    %v71 = vsel %vm66, %v53, 0
    %v74 = vsel %vm66, %v54, 0
    %v77 = vsel %vm66, %v55, 0
    %v80 = vsel %vm66, %v56, 0
    %v83 = vsel %vm66, %v57, 0
    %v86 = vsel %vm66, %v58, 0
    %v89 = vsel %vm66, %v59, 0
    %91 = vmatpush.msra.mxu0 0.0
    %92 = vmatpush.msra.mxu0 0.0
    %93 = vmatpush.msra.mxu0 0.0
    %94 = vmatpush.msra.mxu0 0.0
    %95 = vmatpush.msra.mxu0 0.0
    %96 = vmatpush.msra.mxu0 0.0
    %97 = vmatpush.msra.mxu0 0.0
    %98 = vmatpush.msra.mxu0 0.0
    %99 = vmatpush.msra.mxu0 0.0
    %100 = vmatpush.msra.mxu0 0.0
    %101 = vmatpush.msra.mxu0 0.0
    %102 = vmatpush.msra.mxu0 0.0
    %103 = vmatpush.msra.mxu0 0.0
    %104 = vmatpush.msra.mxu0 0.0
    %105 = vmatpush.msra.mxu0 %v61
    %106 = vmatpush.msra.mxu0 %v60
    %107 = vmatmul.f32.gmra.mxu0 %v68
    %v108 = vpop.f32.mrf.mxu0
    %v109 = vadd.f32 %v64, %v108
    %110 = vmatmul.f32.gmra.mxu0 %v71
    %v111 = vpop.f32.mrf.mxu0
    %v112 = vadd.f32 %v64, %v111
    %113 = vmatmul.f32.gmra.mxu0 %v74
    %v114 = vpop.f32.mrf.mxu0
    %v115 = vadd.f32 %v64, %v114
    %116 = vmatmul.f32.gmra.mxu0 %v77
    %v117 = vpop.f32.mrf.mxu0
    %v118 = vadd.f32 %v64, %v117
    %119 = vmatmul.f32.gmra.mxu0 %v80
    %v120 = vpop.f32.mrf.mxu0
    %v121 = vadd.f32 %v64, %v120
    %122 = vmatmul.f32.gmra.mxu0 %v83
    %v123 = vpop.f32.mrf.mxu0
    %v124 = vadd.f32 %v64, %v123
    %125 = vmatmul.f32.gmra.mxu0 %v86
    %v126 = vpop.f32.mrf.mxu0
    %v127 = vadd.f32 %v64, %v126
    %128 = vmatmul.f32.gmra.mxu0 %v89
    %v129 = vpop.f32.mrf.mxu0
    %v130 = vadd.f32 %v64, %v129
    %131 = vdwg.mxu0
    %v140 = vrot.slane %v112, 7
    %vm141 = vcmask 1041409
    %v142 = vsel %vm141, %v140, %v109
    %v143 = vrot.slane %v115, 6
    %vm144 = vcmask 1042434
    %v145 = vsel %vm144, %v143, %v142
    %v146 = vrot.slane %v118, 5
    %vm147 = vcmask 1043459
    %v148 = vsel %vm147, %v146, %v145
    %v149 = vrot.slane %v121, 4
    %vm150 = vcmask 1044484
    %v151 = vsel %vm150, %v149, %v148
    %v152 = vrot.slane %v124, 3
    %vm153 = vcmask 1045509
    %v154 = vsel %vm153, %v152, %v151
    %v155 = vrot.slane %v127, 2
    %vm156 = vcmask 1046534
    %v157 = vsel %vm156, %v155, %v154
    %v158 = vrot.slane %v130, 1
    %vm159 = vcmask 1047559
    %v160 = vsel %vm159, %v158, %v157
    %162 = vst [vmem:[#allocation2] sm:$0xff] %v160
    %v163 = vsel %vm144, %v140, %v109
    %v164 = vsel %vm147, %v143, %v163
    %v165 = vsel %vm150, %v146, %v164
    %v166 = vsel %vm153, %v149, %v165
    %v167 = vsel %vm156, %v152, %v166
    %v168 = vsel %vm159, %v155, %v167
    %s171 = scalar_lea.vmem [#allocation2], 8
    %172 = vst [vmem:[%s171 - $0x1] sm:$0xfe] %v168
    %173 = vst [vmem:[%s171 + $0x7] sm:$0x1] %v158
    %v174 = vsel %vm147, %v140, %v109
    %v175 = vsel %vm150, %v143, %v174
    %v176 = vsel %vm153, %v146, %v175
    %v177 = vsel %vm156, %v149, %v176
    %v178 = vsel %vm159, %v152, %v177
    %v179 = vsel %vm141, %v158, %v155
    %s182 = scalar_lea.vmem [#allocation2], 16
    %183 = vst [vmem:[%s182 - $0x2] sm:$0xfc] %v178
    %184 = vst [vmem:[%s182 + $0x6] sm:$0x3] %v179
    %v185 = vsel %vm150, %v140, %v109
    %v186 = vsel %vm153, %v143, %v185
    %v187 = vsel %vm156, %v146, %v186
    %v188 = vsel %vm159, %v149, %v187
    %v189 = vsel %vm141, %v155, %v152
    %v190 = vsel %vm144, %v158, %v189
    %s193 = scalar_lea.vmem [#allocation2], 24
    %194 = vst [vmem:[%s193 - $0x3] sm:$0xf8] %v188
    %195 = vst [vmem:[%s193 + $0x5] sm:$0x7] %v190
    %v196 = vsel %vm153, %v140, %v109
    %v197 = vsel %vm156, %v143, %v196
    %v198 = vsel %vm159, %v146, %v197
    %v199 = vsel %vm141, %v152, %v149
    %v200 = vsel %vm144, %v155, %v199
    %v201 = vsel %vm147, %v158, %v200
    %s204 = scalar_lea.vmem [#allocation2], 32
    %205 = vst [vmem:[%s204 - $0x4] sm:$0xf0] %v198
    %206 = vst [vmem:[%s204 + $0x4] sm:$0xf] %v201
    %v207 = vsel %vm156, %v140, %v109
    %v208 = vsel %vm159, %v143, %v207
    %v209 = vsel %vm141, %v149, %v146
    %v210 = vsel %vm144, %v152, %v209
    %v211 = vsel %vm147, %v155, %v210
    %v212 = vsel %vm150, %v158, %v211
    %s215 = scalar_lea.vmem [#allocation2], 40
    %216 = vst [vmem:[%s215 - $0x5] sm:$0xe0] %v208
    %217 = vst [vmem:[%s215 + $0x3] sm:$0x1f] %v212
    %v218 = vsel %vm159, %v140, %v109
    %v219 = vsel %vm141, %v146, %v143
    %v220 = vsel %vm144, %v149, %v219
    %v221 = vsel %vm147, %v152, %v220
    %v222 = vsel %vm150, %v155, %v221
    %v223 = vsel %vm153, %v158, %v222
    %s226 = scalar_lea.vmem [#allocation2], 48
    %227 = vst [vmem:[%s226 - $0x6] sm:$0xc0] %v218
    %228 = vst [vmem:[%s226 + $0x2] sm:$0x3f] %v223
    %v229 = vsel %vm141, %v143, %v140
    %v230 = vsel %vm144, %v146, %v229
    %v231 = vsel %vm147, %v149, %v230
    %v232 = vsel %vm150, %v152, %v231
    %v233 = vsel %vm153, %v155, %v232
    %v234 = vsel %vm156, %v158, %v233
    %s237 = scalar_lea.vmem [#allocation2], 56
    %238 = vst [vmem:[%s237 - $0x7] sm:$0x80] %v109
    %239 = vst [vmem:[%s237 + $0x1] sm:$0x7f] %v234
    %vm240 = vcmask 261120
    %241 = vst.msk [vmem:[#allocation4] sm:$0xff] %vm240, 0.0
    %242 = vst.msk [vmem:[#allocation5] sm:$0xff] %vm240, 0.0
    %v243 = vld [vmem:[#allocation2] sm:$0xff]
    %v244 = vld [vmem:[#allocation4] sm:$0xff]
    %v245 = vld [vmem:[%s2] sm:$0xff]
    %v246 = vld [vmem:[%s2 + $0x8] sm:$0xff]
    %v247 = vld [vmem:[%s2 + $0x10] sm:$0xff]
    %v248 = vld [vmem:[%s2 + $0x18] sm:$0xff]
    %v250 = vsel %vm240, %v244, 0
    %252 = vmatpush.msra.mxu0 0.0
    %253 = vmatpush.msra.mxu0 0.0
    %254 = vmatpush.msra.mxu0 0.0
    %255 = vmatpush.msra.mxu0 0.0
    %256 = vmatpush.msra.mxu0 0.0
    %257 = vmatpush.msra.mxu0 0.0
    %258 = vmatpush.msra.mxu0 0.0
    %259 = vmatpush.msra.mxu0 0.0
    %260 = vmatpush.msra.mxu0 0.0
    %261 = vmatpush.msra.mxu0 0.0
    %262 = vmatpush.msra.mxu0 0.0
    %263 = vmatpush.msra.mxu0 0.0
    %264 = vmatpush.msra.mxu0 %v248
    %265 = vmatpush.msra.mxu0 %v247
    %266 = vmatpush.msra.mxu0 %v246
    %267 = vmatpush.msra.mxu0 %v245
    %268 = vmatmul.f32.gmra.mxu0 %v250
    %v269 = vpop.f32.mrf.mxu0
    %v270 = vadd.f32 0.0, %v269
    %271 = vdwg.mxu0
    %v272 = vadd.f32 %v243, %v270
    %v273 = vld [vmem:[#allocation5] sm:$0xff]
    %v274 = vxor.u32 %v272, 2147483648
    %v275 = vmul.f32 %v274, 1.442695
    %v276 = vpow.pop %v275
    %v277 = vadd.f32 %v276, 1.0
    %v278 = vrcp.pop %v277
    %v279 = vmul.f32 %v277, %v278
    %v280 = vsub.f32 1.0, %v279
    %v281 = vmul.f32 %v278, %v280
    %v282 = vadd.f32 %v278, %v281
    %vm283 = vweird.f32 %v277
    %vm284 = vweird.f32 %v278
    %vm285 = vmor %vm283, %vm284
    %v286 = vsel %vm285, %v278, %v282
    %v287 = vand.u32 2147483647, %v277
    %vm288 = vcmp.eq.f32.partialorder %v287, 8.507059e+37
    %v289 = vand.u32 %v277, 2147483648
    %v290 = vor.u32 1.1754944e-38, %v289
    %v291 = vsel %vm288, %v290, %v286
    %v292 = vmul.f32 1.0, %v291
    %v293 = vtanh.pop %v272
    %295 = vrot.lane.b32.xlu0 %v273, 32
    %v296 = vpop.permute.xlu0 %295
    %v298 = vmul.f32 %v292, %v296
    %300 = vrot.lane.b32.xlu0 %v293, 64
    %v301 = vpop.permute.xlu0 %300
    %v303 = vmul.f32 %v292, %v301
    %305 = vrot.lane.b32.xlu0 %v303, 32
    %v306 = vpop.permute.xlu0 %305
    %v308 = vadd.f32 %v298, %v306
    %v309 = vtanh.pop %v308
    %311 = vrot.lane.b32.xlu0 %v309, 64
    %v312 = vpop.permute.xlu0 %311
    %v314 = vmul.f32 %v292, %v312
    %316 = vrot.lane.b32.xlu0 %v314, 32
    %v317 = vpop.permute.xlu0 %316
    %319 = vst.msk [vmem:[#allocation4] sm:$0xff] %vm240, %v317
    %321 = vrot.lane.b32.xlu0 %v308, 96
    %v322 = vpop.permute.xlu0 %321
    %324 = vst.msk [vmem:[#allocation5] sm:$0xff] %vm240, %v322
    %325 = vst.msk [vmem:[#allocation3] sm:$0xff] %vm240, %v317
    %v326 = vld [vmem:[%s171] sm:$0xff]
    %v327 = vld [vmem:[#allocation4] sm:$0xff]
    %v328 = vld [vmem:[%s2] sm:$0xff]
    %v329 = vld [vmem:[%s2 + $0x8] sm:$0xff]
    %v330 = vld [vmem:[%s2 + $0x10] sm:$0xff]
    %v331 = vld [vmem:[%s2 + $0x18] sm:$0xff]
    %v333 = vsel %vm240, %v327, 0
    %335 = vmatpush.msra.mxu0 0.0
    %336 = vmatpush.msra.mxu0 0.0
    %337 = vmatpush.msra.mxu0 0.0
    %338 = vmatpush.msra.mxu0 0.0
    %339 = vmatpush.msra.mxu0 0.0
    %340 = vmatpush.msra.mxu0 0.0
    %341 = vmatpush.msra.mxu0 0.0
    %342 = vmatpush.msra.mxu0 0.0
    %343 = vmatpush.msra.mxu0 0.0
    %344 = vmatpush.msra.mxu0 0.0
    %345 = vmatpush.msra.mxu0 0.0
    %346 = vmatpush.msra.mxu0 0.0
    %347 = vmatpush.msra.mxu0 %v331
    %348 = vmatpush.msra.mxu0 %v330
    %349 = vmatpush.msra.mxu0 %v329
    %350 = vmatpush.msra.mxu0 %v328
    %351 = vmatmul.f32.gmra.mxu0 %v333
    %v352 = vpop.f32.mrf.mxu0
    %v353 = vadd.f32 0.0, %v352
    %354 = vdwg.mxu0
    %v355 = vadd.f32 %v326, %v353
    %v356 = vld [vmem:[#allocation5] sm:$0xff]
    %v357 = vxor.u32 %v355, 2147483648
    %v358 = vmul.f32 %v357, 1.442695
    %v359 = vpow.pop %v358
    %v360 = vadd.f32 %v359, 1.0
    %v361 = vrcp.pop %v360
    %v362 = vmul.f32 %v360, %v361
    %v363 = vsub.f32 1.0, %v362
    %v364 = vmul.f32 %v361, %v363
    %v365 = vadd.f32 %v361, %v364
    %vm366 = vweird.f32 %v360
    %vm367 = vweird.f32 %v361
    %vm368 = vmor %vm366, %vm367
    %v369 = vsel %vm368, %v361, %v365
    %v370 = vand.u32 2147483647, %v360
    %vm371 = vcmp.eq.f32.partialorder %v370, 8.507059e+37
    %v372 = vand.u32 %v360, 2147483648
    %v373 = vor.u32 1.1754944e-38, %v372
    %v374 = vsel %vm371, %v373, %v369
    %v375 = vmul.f32 1.0, %v374
    %v376 = vtanh.pop %v355
    %378 = vrot.lane.b32.xlu0 %v356, 32
    %v379 = vpop.permute.xlu0 %378
    %v381 = vmul.f32 %v375, %v379
    %383 = vrot.lane.b32.xlu0 %v376, 64
    %v384 = vpop.permute.xlu0 %383
    %v386 = vmul.f32 %v375, %v384
    %388 = vrot.lane.b32.xlu0 %v386, 32
    %v389 = vpop.permute.xlu0 %388
    %v391 = vadd.f32 %v381, %v389
    %v392 = vtanh.pop %v391
    %394 = vrot.lane.b32.xlu0 %v392, 64
    %v395 = vpop.permute.xlu0 %394
    %v397 = vmul.f32 %v375, %v395
    %399 = vrot.lane.b32.xlu0 %v397, 32
    %v400 = vpop.permute.xlu0 %399
    %402 = vst.msk [vmem:[#allocation4] sm:$0xff] %vm240, %v400
    %404 = vrot.lane.b32.xlu0 %v391, 96
    %v405 = vpop.permute.xlu0 %404
    %407 = vst.msk [vmem:[#allocation5] sm:$0xff] %vm240, %v405
    %s408 = scalar_lea.vmem [#allocation3], 8
    %409 = vst.msk [vmem:[%s408] sm:$0xff] %vm240, %v400
    %v410 = vld [vmem:[%s182] sm:$0xff]
    %v411 = vld [vmem:[#allocation4] sm:$0xff]
    %v412 = vld [vmem:[%s2] sm:$0xff]
    %v413 = vld [vmem:[%s2 + $0x8] sm:$0xff]
    %v414 = vld [vmem:[%s2 + $0x10] sm:$0xff]
    %v415 = vld [vmem:[%s2 + $0x18] sm:$0xff]
    %v417 = vsel %vm240, %v411, 0
    %419 = vmatpush.msra.mxu0 0.0
    %420 = vmatpush.msra.mxu0 0.0
    %421 = vmatpush.msra.mxu0 0.0
    %422 = vmatpush.msra.mxu0 0.0
    %423 = vmatpush.msra.mxu0 0.0
    %424 = vmatpush.msra.mxu0 0.0
    %425 = vmatpush.msra.mxu0 0.0
    %426 = vmatpush.msra.mxu0 0.0
    %427 = vmatpush.msra.mxu0 0.0
    %428 = vmatpush.msra.mxu0 0.0
    %429 = vmatpush.msra.mxu0 0.0
    %430 = vmatpush.msra.mxu0 0.0
    %431 = vmatpush.msra.mxu0 %v415
    %432 = vmatpush.msra.mxu0 %v414
    %433 = vmatpush.msra.mxu0 %v413
    %434 = vmatpush.msra.mxu0 %v412
    %435 = vmatmul.f32.gmra.mxu0 %v417
    %v436 = vpop.f32.mrf.mxu0
    %v437 = vadd.f32 0.0, %v436
    %438 = vdwg.mxu0
    %v439 = vadd.f32 %v410, %v437
    %v440 = vld [vmem:[#allocation5] sm:$0xff]
    %v441 = vxor.u32 %v439, 2147483648
    %v442 = vmul.f32 %v441, 1.442695
    %v443 = vpow.pop %v442
    %v444 = vadd.f32 %v443, 1.0
    %v445 = vrcp.pop %v444
    %v446 = vmul.f32 %v444, %v445
    %v447 = vsub.f32 1.0, %v446
    %v448 = vmul.f32 %v445, %v447
    %v449 = vadd.f32 %v445, %v448
    %vm450 = vweird.f32 %v444
    %vm451 = vweird.f32 %v445
    %vm452 = vmor %vm450, %vm451
    %v453 = vsel %vm452, %v445, %v449
    %v454 = vand.u32 2147483647, %v444
    %vm455 = vcmp.eq.f32.partialorder %v454, 8.507059e+37
    %v456 = vand.u32 %v444, 2147483648
    %v457 = vor.u32 1.1754944e-38, %v456
    %v458 = vsel %vm455, %v457, %v453
    %v459 = vmul.f32 1.0, %v458
    %v460 = vtanh.pop %v439
    %462 = vrot.lane.b32.xlu0 %v440, 32
    %v463 = vpop.permute.xlu0 %462
    %v465 = vmul.f32 %v459, %v463
    %467 = vrot.lane.b32.xlu0 %v460, 64
    %v468 = vpop.permute.xlu0 %467
    %v470 = vmul.f32 %v459, %v468
    %472 = vrot.lane.b32.xlu0 %v470, 32
    %v473 = vpop.permute.xlu0 %472
    %v475 = vadd.f32 %v465, %v473
    %v476 = vtanh.pop %v475
    %478 = vrot.lane.b32.xlu0 %v476, 64
    %v479 = vpop.permute.xlu0 %478
    %v481 = vmul.f32 %v459, %v479
    %483 = vrot.lane.b32.xlu0 %v481, 32
    %v484 = vpop.permute.xlu0 %483
    %486 = vst.msk [vmem:[#allocation4] sm:$0xff] %vm240, %v484
    %488 = vrot.lane.b32.xlu0 %v475, 96
    %v489 = vpop.permute.xlu0 %488
    %491 = vst.msk [vmem:[#allocation5] sm:$0xff] %vm240, %v489
    %s492 = scalar_lea.vmem [#allocation3], 16
    %493 = vst.msk [vmem:[%s492] sm:$0xff] %vm240, %v484
    %v494 = vld [vmem:[%s193] sm:$0xff]
    %v495 = vld [vmem:[#allocation4] sm:$0xff]
    %v496 = vld [vmem:[%s2] sm:$0xff]
    %v497 = vld [vmem:[%s2 + $0x8] sm:$0xff]
    %v498 = vld [vmem:[%s2 + $0x10] sm:$0xff]
    %v499 = vld [vmem:[%s2 + $0x18] sm:$0xff]
    %v501 = vsel %vm240, %v495, 0
    %503 = vmatpush.msra.mxu0 0.0
    %504 = vmatpush.msra.mxu0 0.0
    %505 = vmatpush.msra.mxu0 0.0
    %506 = vmatpush.msra.mxu0 0.0
    %507 = vmatpush.msra.mxu0 0.0
    %508 = vmatpush.msra.mxu0 0.0
    %509 = vmatpush.msra.mxu0 0.0
    %510 = vmatpush.msra.mxu0 0.0
    %511 = vmatpush.msra.mxu0 0.0
    %512 = vmatpush.msra.mxu0 0.0
    %513 = vmatpush.msra.mxu0 0.0
    %514 = vmatpush.msra.mxu0 0.0
    %515 = vmatpush.msra.mxu0 %v499
    %516 = vmatpush.msra.mxu0 %v498
    %517 = vmatpush.msra.mxu0 %v497
    %518 = vmatpush.msra.mxu0 %v496
    %519 = vmatmul.f32.gmra.mxu0 %v501
    %v520 = vpop.f32.mrf.mxu0
    %v521 = vadd.f32 0.0, %v520
    %522 = vdwg.mxu0
    %v523 = vadd.f32 %v494, %v521
    %v524 = vld [vmem:[#allocation5] sm:$0xff]
    %v525 = vxor.u32 %v523, 2147483648
    %v526 = vmul.f32 %v525, 1.442695
    %v527 = vpow.pop %v526
    %v528 = vadd.f32 %v527, 1.0
    %v529 = vrcp.pop %v528
    %v530 = vmul.f32 %v528, %v529
    %v531 = vsub.f32 1.0, %v530
    %v532 = vmul.f32 %v529, %v531
    %v533 = vadd.f32 %v529, %v532
    %vm534 = vweird.f32 %v528
    %vm535 = vweird.f32 %v529
    %vm536 = vmor %vm534, %vm535
    %v537 = vsel %vm536, %v529, %v533
    %v538 = vand.u32 2147483647, %v528
    %vm539 = vcmp.eq.f32.partialorder %v538, 8.507059e+37
    %v540 = vand.u32 %v528, 2147483648
    %v541 = vor.u32 1.1754944e-38, %v540
    %v542 = vsel %vm539, %v541, %v537
    %v543 = vmul.f32 1.0, %v542
    %v544 = vtanh.pop %v523
    %546 = vrot.lane.b32.xlu0 %v524, 32
    %v547 = vpop.permute.xlu0 %546
    %v549 = vmul.f32 %v543, %v547
    %551 = vrot.lane.b32.xlu0 %v544, 64
    %v552 = vpop.permute.xlu0 %551
    %v554 = vmul.f32 %v543, %v552
    %556 = vrot.lane.b32.xlu0 %v554, 32
    %v557 = vpop.permute.xlu0 %556
    %v559 = vadd.f32 %v549, %v557
    %v560 = vtanh.pop %v559
    %562 = vrot.lane.b32.xlu0 %v560, 64
    %v563 = vpop.permute.xlu0 %562
    %v565 = vmul.f32 %v543, %v563
    %567 = vrot.lane.b32.xlu0 %v565, 32
    %v568 = vpop.permute.xlu0 %567
    %570 = vst.msk [vmem:[#allocation4] sm:$0xff] %vm240, %v568
    %572 = vrot.lane.b32.xlu0 %v559, 96
    %v573 = vpop.permute.xlu0 %572
    %575 = vst.msk [vmem:[#allocation5] sm:$0xff] %vm240, %v573
    %s576 = scalar_lea.vmem [#allocation3], 24
    %577 = vst.msk [vmem:[%s576] sm:$0xff] %vm240, %v568
    %v578 = vld [vmem:[%s204] sm:$0xff]
    %v579 = vld [vmem:[#allocation4] sm:$0xff]
    %v580 = vld [vmem:[%s2] sm:$0xff]
    %v581 = vld [vmem:[%s2 + $0x8] sm:$0xff]
    %v582 = vld [vmem:[%s2 + $0x10] sm:$0xff]
    %v583 = vld [vmem:[%s2 + $0x18] sm:$0xff]
    %v585 = vsel %vm240, %v579, 0
    %587 = vmatpush.msra.mxu0 0.0
    %588 = vmatpush.msra.mxu0 0.0
    %589 = vmatpush.msra.mxu0 0.0
    %590 = vmatpush.msra.mxu0 0.0
    %591 = vmatpush.msra.mxu0 0.0
    %592 = vmatpush.msra.mxu0 0.0
    %593 = vmatpush.msra.mxu0 0.0
    %594 = vmatpush.msra.mxu0 0.0
    %595 = vmatpush.msra.mxu0 0.0
    %596 = vmatpush.msra.mxu0 0.0
    %597 = vmatpush.msra.mxu0 0.0
    %598 = vmatpush.msra.mxu0 0.0
    %599 = vmatpush.msra.mxu0 %v583
    %600 = vmatpush.msra.mxu0 %v582
    %601 = vmatpush.msra.mxu0 %v581
    %602 = vmatpush.msra.mxu0 %v580
    %603 = vmatmul.f32.gmra.mxu0 %v585
    %v604 = vpop.f32.mrf.mxu0
    %v605 = vadd.f32 0.0, %v604
    %606 = vdwg.mxu0
    %v607 = vadd.f32 %v578, %v605
    %v608 = vld [vmem:[#allocation5] sm:$0xff]
    %v609 = vxor.u32 %v607, 2147483648
    %v610 = vmul.f32 %v609, 1.442695
    %v611 = vpow.pop %v610
    %v612 = vadd.f32 %v611, 1.0
    %v613 = vrcp.pop %v612
    %v614 = vmul.f32 %v612, %v613
    %v615 = vsub.f32 1.0, %v614
    %v616 = vmul.f32 %v613, %v615
    %v617 = vadd.f32 %v613, %v616
    %vm618 = vweird.f32 %v612
    %vm619 = vweird.f32 %v613
    %vm620 = vmor %vm618, %vm619
    %v621 = vsel %vm620, %v613, %v617
    %v622 = vand.u32 2147483647, %v612
    %vm623 = vcmp.eq.f32.partialorder %v622, 8.507059e+37
    %v624 = vand.u32 %v612, 2147483648
    %v625 = vor.u32 1.1754944e-38, %v624
    %v626 = vsel %vm623, %v625, %v621
    %v627 = vmul.f32 1.0, %v626
    %v628 = vtanh.pop %v607
    %630 = vrot.lane.b32.xlu0 %v608, 32
    %v631 = vpop.permute.xlu0 %630
    %v633 = vmul.f32 %v627, %v631
    %635 = vrot.lane.b32.xlu0 %v628, 64
    %v636 = vpop.permute.xlu0 %635
    %v638 = vmul.f32 %v627, %v636
    %640 = vrot.lane.b32.xlu0 %v638, 32
    %v641 = vpop.permute.xlu0 %640
    %v643 = vadd.f32 %v633, %v641
    %v644 = vtanh.pop %v643
    %646 = vrot.lane.b32.xlu0 %v644, 64
    %v647 = vpop.permute.xlu0 %646
    %v649 = vmul.f32 %v627, %v647
    %651 = vrot.lane.b32.xlu0 %v649, 32
    %v652 = vpop.permute.xlu0 %651
    %654 = vst.msk [vmem:[#allocation4] sm:$0xff] %vm240, %v652
    %656 = vrot.lane.b32.xlu0 %v643, 96
    %v657 = vpop.permute.xlu0 %656
    %659 = vst.msk [vmem:[#allocation5] sm:$0xff] %vm240, %v657
    %s660 = scalar_lea.vmem [#allocation3], 32
    %661 = vst.msk [vmem:[%s660] sm:$0xff] %vm240, %v652
    %v662 = vld [vmem:[%s215] sm:$0xff]
    %v663 = vld [vmem:[#allocation4] sm:$0xff]
    %v664 = vld [vmem:[%s2] sm:$0xff]
    %v665 = vld [vmem:[%s2 + $0x8] sm:$0xff]
    %v666 = vld [vmem:[%s2 + $0x10] sm:$0xff]
    %v667 = vld [vmem:[%s2 + $0x18] sm:$0xff]
    %v669 = vsel %vm240, %v663, 0
    %671 = vmatpush.msra.mxu0 0.0
    %672 = vmatpush.msra.mxu0 0.0
    %673 = vmatpush.msra.mxu0 0.0
    %674 = vmatpush.msra.mxu0 0.0
    %675 = vmatpush.msra.mxu0 0.0
    %676 = vmatpush.msra.mxu0 0.0
    %677 = vmatpush.msra.mxu0 0.0
    %678 = vmatpush.msra.mxu0 0.0
    %679 = vmatpush.msra.mxu0 0.0
    %680 = vmatpush.msra.mxu0 0.0
    %681 = vmatpush.msra.mxu0 0.0
    %682 = vmatpush.msra.mxu0 0.0
    %683 = vmatpush.msra.mxu0 %v667
    %684 = vmatpush.msra.mxu0 %v666
    %685 = vmatpush.msra.mxu0 %v665
    %686 = vmatpush.msra.mxu0 %v664
    %687 = vmatmul.f32.gmra.mxu0 %v669
    %v688 = vpop.f32.mrf.mxu0
    %v689 = vadd.f32 0.0, %v688
    %690 = vdwg.mxu0
    %v691 = vadd.f32 %v662, %v689
    %v692 = vld [vmem:[#allocation5] sm:$0xff]
    %v693 = vxor.u32 %v691, 2147483648
    %v694 = vmul.f32 %v693, 1.442695
    %v695 = vpow.pop %v694
    %v696 = vadd.f32 %v695, 1.0
    %v697 = vrcp.pop %v696
    %v698 = vmul.f32 %v696, %v697
    %v699 = vsub.f32 1.0, %v698
    %v700 = vmul.f32 %v697, %v699
    %v701 = vadd.f32 %v697, %v700
    %vm702 = vweird.f32 %v696
    %vm703 = vweird.f32 %v697
    %vm704 = vmor %vm702, %vm703
    %v705 = vsel %vm704, %v697, %v701
    %v706 = vand.u32 2147483647, %v696
    %vm707 = vcmp.eq.f32.partialorder %v706, 8.507059e+37
    %v708 = vand.u32 %v696, 2147483648
    %v709 = vor.u32 1.1754944e-38, %v708
    %v710 = vsel %vm707, %v709, %v705
    %v711 = vmul.f32 1.0, %v710
    %v712 = vtanh.pop %v691
    %714 = vrot.lane.b32.xlu0 %v692, 32
    %v715 = vpop.permute.xlu0 %714
    %v717 = vmul.f32 %v711, %v715
    %719 = vrot.lane.b32.xlu0 %v712, 64
    %v720 = vpop.permute.xlu0 %719
    %v722 = vmul.f32 %v711, %v720
    %724 = vrot.lane.b32.xlu0 %v722, 32
    %v725 = vpop.permute.xlu0 %724
    %v727 = vadd.f32 %v717, %v725
    %v728 = vtanh.pop %v727
    %730 = vrot.lane.b32.xlu0 %v728, 64
    %v731 = vpop.permute.xlu0 %730
    %v733 = vmul.f32 %v711, %v731
    %735 = vrot.lane.b32.xlu0 %v733, 32
    %v736 = vpop.permute.xlu0 %735
    %738 = vst.msk [vmem:[#allocation4] sm:$0xff] %vm240, %v736
    %740 = vrot.lane.b32.xlu0 %v727, 96
    %v741 = vpop.permute.xlu0 %740
    %743 = vst.msk [vmem:[#allocation5] sm:$0xff] %vm240, %v741
    %s744 = scalar_lea.vmem [#allocation3], 40
    %745 = vst.msk [vmem:[%s744] sm:$0xff] %vm240, %v736
    %v746 = vld [vmem:[%s226] sm:$0xff]
    %v747 = vld [vmem:[#allocation4] sm:$0xff]
    %v748 = vld [vmem:[%s2] sm:$0xff]
    %v749 = vld [vmem:[%s2 + $0x8] sm:$0xff]
    %v750 = vld [vmem:[%s2 + $0x10] sm:$0xff]
    %v751 = vld [vmem:[%s2 + $0x18] sm:$0xff]
    %v753 = vsel %vm240, %v747, 0
    %755 = vmatpush.msra.mxu0 0.0
    %756 = vmatpush.msra.mxu0 0.0
    %757 = vmatpush.msra.mxu0 0.0
    %758 = vmatpush.msra.mxu0 0.0
    %759 = vmatpush.msra.mxu0 0.0
    %760 = vmatpush.msra.mxu0 0.0
    %761 = vmatpush.msra.mxu0 0.0
    %762 = vmatpush.msra.mxu0 0.0
    %763 = vmatpush.msra.mxu0 0.0
    %764 = vmatpush.msra.mxu0 0.0
    %765 = vmatpush.msra.mxu0 0.0
    %766 = vmatpush.msra.mxu0 0.0
    %767 = vmatpush.msra.mxu0 %v751
    %768 = vmatpush.msra.mxu0 %v750
    %769 = vmatpush.msra.mxu0 %v749
    %770 = vmatpush.msra.mxu0 %v748
    %771 = vmatmul.f32.gmra.mxu0 %v753
    %v772 = vpop.f32.mrf.mxu0
    %v773 = vadd.f32 0.0, %v772
    %774 = vdwg.mxu0
    %v775 = vadd.f32 %v746, %v773
    %v776 = vld [vmem:[#allocation5] sm:$0xff]
    %v777 = vxor.u32 %v775, 2147483648
    %v778 = vmul.f32 %v777, 1.442695
    %v779 = vpow.pop %v778
    %v780 = vadd.f32 %v779, 1.0
    %v781 = vrcp.pop %v780
    %v782 = vmul.f32 %v780, %v781
    %v783 = vsub.f32 1.0, %v782
    %v784 = vmul.f32 %v781, %v783
    %v785 = vadd.f32 %v781, %v784
    %vm786 = vweird.f32 %v780
    %vm787 = vweird.f32 %v781
    %vm788 = vmor %vm786, %vm787
    %v789 = vsel %vm788, %v781, %v785
    %v790 = vand.u32 2147483647, %v780
    %vm791 = vcmp.eq.f32.partialorder %v790, 8.507059e+37
    %v792 = vand.u32 %v780, 2147483648
    %v793 = vor.u32 1.1754944e-38, %v792
    %v794 = vsel %vm791, %v793, %v789
    %v795 = vmul.f32 1.0, %v794
    %v796 = vtanh.pop %v775
    %798 = vrot.lane.b32.xlu0 %v776, 32
    %v799 = vpop.permute.xlu0 %798
    %v801 = vmul.f32 %v795, %v799
    %803 = vrot.lane.b32.xlu0 %v796, 64
    %v804 = vpop.permute.xlu0 %803
    %v806 = vmul.f32 %v795, %v804
    %808 = vrot.lane.b32.xlu0 %v806, 32
    %v809 = vpop.permute.xlu0 %808
    %v811 = vadd.f32 %v801, %v809
    %v812 = vtanh.pop %v811
    %814 = vrot.lane.b32.xlu0 %v812, 64
    %v815 = vpop.permute.xlu0 %814
    %v817 = vmul.f32 %v795, %v815
    %819 = vrot.lane.b32.xlu0 %v817, 32
    %v820 = vpop.permute.xlu0 %819
    %822 = vst.msk [vmem:[#allocation4] sm:$0xff] %vm240, %v820
    %824 = vrot.lane.b32.xlu0 %v811, 96
    %v825 = vpop.permute.xlu0 %824
    %827 = vst.msk [vmem:[#allocation5] sm:$0xff] %vm240, %v825
    %s828 = scalar_lea.vmem [#allocation3], 48
    %829 = vst.msk [vmem:[%s828] sm:$0xff] %vm240, %v820
    %v830 = vld [vmem:[%s237] sm:$0xff]
    %v831 = vld [vmem:[#allocation4] sm:$0xff]
    %v832 = vld [vmem:[%s2] sm:$0xff]
    %v833 = vld [vmem:[%s2 + $0x8] sm:$0xff]
    %v834 = vld [vmem:[%s2 + $0x10] sm:$0xff]
    %v835 = vld [vmem:[%s2 + $0x18] sm:$0xff]
    %v837 = vsel %vm240, %v831, 0
    %839 = vmatpush.msra.mxu0 0.0
    %840 = vmatpush.msra.mxu0 0.0
    %841 = vmatpush.msra.mxu0 0.0
    %842 = vmatpush.msra.mxu0 0.0
    %843 = vmatpush.msra.mxu0 0.0
    %844 = vmatpush.msra.mxu0 0.0
    %845 = vmatpush.msra.mxu0 0.0
    %846 = vmatpush.msra.mxu0 0.0
    %847 = vmatpush.msra.mxu0 0.0
    %848 = vmatpush.msra.mxu0 0.0
    %849 = vmatpush.msra.mxu0 0.0
    %850 = vmatpush.msra.mxu0 0.0
    %851 = vmatpush.msra.mxu0 %v835
    %852 = vmatpush.msra.mxu0 %v834
    %853 = vmatpush.msra.mxu0 %v833
    %854 = vmatpush.msra.mxu0 %v832
    %855 = vmatmul.f32.gmra.mxu0 %v837
    %v856 = vpop.f32.mrf.mxu0
    %v857 = vadd.f32 0.0, %v856
    %858 = vdwg.mxu0
    %v859 = vadd.f32 %v830, %v857
    %v860 = vld [vmem:[#allocation5] sm:$0xff]
    %v861 = vxor.u32 %v859, 2147483648
    %v862 = vmul.f32 %v861, 1.442695
    %v863 = vpow.pop %v862
    %v864 = vadd.f32 %v863, 1.0
    %v865 = vrcp.pop %v864
    %v866 = vmul.f32 %v864, %v865
    %v867 = vsub.f32 1.0, %v866
    %v868 = vmul.f32 %v865, %v867
    %v869 = vadd.f32 %v865, %v868
    %vm870 = vweird.f32 %v864
    %vm871 = vweird.f32 %v865
    %vm872 = vmor %vm870, %vm871
    %v873 = vsel %vm872, %v865, %v869
    %v874 = vand.u32 2147483647, %v864
    %vm875 = vcmp.eq.f32.partialorder %v874, 8.507059e+37
    %v876 = vand.u32 %v864, 2147483648
    %v877 = vor.u32 1.1754944e-38, %v876
    %v878 = vsel %vm875, %v877, %v873
    %v879 = vmul.f32 1.0, %v878
    %v880 = vtanh.pop %v859
    %882 = vrot.lane.b32.xlu0 %v860, 32
    %v883 = vpop.permute.xlu0 %882
    %v885 = vmul.f32 %v879, %v883
    %887 = vrot.lane.b32.xlu0 %v880, 64
    %v888 = vpop.permute.xlu0 %887
    %v890 = vmul.f32 %v879, %v888
    %892 = vrot.lane.b32.xlu0 %v890, 32
    %v893 = vpop.permute.xlu0 %892
    %v895 = vadd.f32 %v885, %v893
    %v896 = vtanh.pop %v895
    %898 = vrot.lane.b32.xlu0 %v896, 64
    %v899 = vpop.permute.xlu0 %898
    %v901 = vmul.f32 %v879, %v899
    %903 = vrot.lane.b32.xlu0 %v901, 32
    %v904 = vpop.permute.xlu0 %903
    %906 = vst.msk [vmem:[#allocation4] sm:$0xff] %vm240, %v904
    %908 = vrot.lane.b32.xlu0 %v895, 96
    %v909 = vpop.permute.xlu0 %908
    %911 = vst.msk [vmem:[#allocation5] sm:$0xff] %vm240, %v909
    %s912 = scalar_lea.vmem [#allocation3], 56
    %913 = vst.msk [vmem:[%s912] sm:$0xff] %vm240, %v904
    %v914 = vld [vmem:[#allocation3] sm:$0xff]
    %v915 = vld [vmem:[#allocation3 + $0x8] sm:$0xff]
    %v916 = vld [vmem:[#allocation3 + $0x10] sm:$0xff]
    %v917 = vld [vmem:[#allocation3 + $0x18] sm:$0xff]
    %v918 = vld [vmem:[#allocation3 + $0x20] sm:$0xff]
    %v919 = vld [vmem:[#allocation3 + $0x28] sm:$0xff]
    %v920 = vld [vmem:[#allocation3 + $0x30] sm:$0xff]
    %v921 = vld [vmem:[#allocation3 + $0x38] sm:$0xff]
    %v922 = vld [vmem:[%s4] sm:$0xff]
    %v923 = vld [vmem:[%s4 + $0x8] sm:$0xff]
    %v924 = vld [vmem:[%s4 + $0x10] sm:$0xff]
    %v925 = vld [vmem:[%s4 + $0x18] sm:$0xff]
    %v926 = vld [vmem:[%s6] sm:$0x1]
    %v928 = vperm.slane %v926, 0
    %v931 = vsel %vm240, %v914, 0
    %v934 = vsel %vm240, %v915, 0
    %v937 = vsel %vm240, %v916, 0
    %v940 = vsel %vm240, %v917, 0
    %v943 = vsel %vm240, %v918, 0
    %v946 = vsel %vm240, %v919, 0
    %v949 = vsel %vm240, %v920, 0
    %v952 = vsel %vm240, %v921, 0
    %954 = vmatpush.msra.mxu0 0.0
    %955 = vmatpush.msra.mxu0 0.0
    %956 = vmatpush.msra.mxu0 0.0
    %957 = vmatpush.msra.mxu0 0.0
    %958 = vmatpush.msra.mxu0 0.0
    %959 = vmatpush.msra.mxu0 0.0
    %960 = vmatpush.msra.mxu0 0.0
    %961 = vmatpush.msra.mxu0 0.0
    %962 = vmatpush.msra.mxu0 0.0
    %963 = vmatpush.msra.mxu0 0.0
    %964 = vmatpush.msra.mxu0 0.0
    %965 = vmatpush.msra.mxu0 0.0
    %966 = vmatpush.msra.mxu0 %v925
    %967 = vmatpush.msra.mxu0 %v924
    %968 = vmatpush.msra.mxu0 %v923
    %969 = vmatpush.msra.mxu0 %v922
    %970 = vmatmul.f32.gmra.mxu0 %v931
    %v971 = vpop.f32.mrf.mxu0
    %v972 = vadd.f32 %v928, %v971
    %973 = vmatmul.f32.gmra.mxu0 %v934
    %v974 = vpop.f32.mrf.mxu0
    %v975 = vadd.f32 %v928, %v974
    %976 = vmatmul.f32.gmra.mxu0 %v937
    %v977 = vpop.f32.mrf.mxu0
    %v978 = vadd.f32 %v928, %v977
    %979 = vmatmul.f32.gmra.mxu0 %v940
    %v980 = vpop.f32.mrf.mxu0
    %v981 = vadd.f32 %v928, %v980
    %982 = vmatmul.f32.gmra.mxu0 %v943
    %v983 = vpop.f32.mrf.mxu0
    %v984 = vadd.f32 %v928, %v983
    %985 = vmatmul.f32.gmra.mxu0 %v946
    %v986 = vpop.f32.mrf.mxu0
    %v987 = vadd.f32 %v928, %v986
    %988 = vmatmul.f32.gmra.mxu0 %v949
    %v989 = vpop.f32.mrf.mxu0
    %v990 = vadd.f32 %v928, %v989
    %991 = vmatmul.f32.gmra.mxu0 %v952
    %v992 = vpop.f32.mrf.mxu0
    %v993 = vadd.f32 %v928, %v992
    %994 = vdwg.mxu0
    %995 = vst [vmem:[#allocation2] sm:$0xff] %v972
    %996 = vst [vmem:[#allocation2 + $0x8] sm:$0xff] %v975
    %997 = vst [vmem:[#allocation2 + $0x10] sm:$0xff] %v978
    %998 = vst [vmem:[#allocation2 + $0x18] sm:$0xff] %v981
    %999 = vst [vmem:[#allocation2 + $0x20] sm:$0xff] %v984
    %1000 = vst [vmem:[#allocation2 + $0x28] sm:$0xff] %v987
    %1001 = vst [vmem:[#allocation2 + $0x30] sm:$0xff] %v990
    %1002 = vst [vmem:[#allocation2 + $0x38] sm:$0xff] %v993
    %1003 = vst.msk [vmem:[#allocation4] sm:$0xff] %vm240, 0.0
    %1004 = vst.msk [vmem:[#allocation5] sm:$0xff] %vm240, 0.0
    %v1005 = vld [vmem:[#allocation2] sm:$0xff]
    %v1006 = vld [vmem:[#allocation4] sm:$0xff]
    %v1007 = vld [vmem:[%s5] sm:$0xff]
    %v1008 = vld [vmem:[%s5 + $0x8] sm:$0xff]
    %v1009 = vld [vmem:[%s5 + $0x10] sm:$0xff]
    %v1010 = vld [vmem:[%s5 + $0x18] sm:$0xff]
    %v1012 = vsel %vm240, %v1006, 0
    %1014 = vmatpush.msra.mxu0 0.0
    %1015 = vmatpush.msra.mxu0 0.0
    %1016 = vmatpush.msra.mxu0 0.0
    %1017 = vmatpush.msra.mxu0 0.0
    %1018 = vmatpush.msra.mxu0 0.0
    %1019 = vmatpush.msra.mxu0 0.0
    %1020 = vmatpush.msra.mxu0 0.0
    %1021 = vmatpush.msra.mxu0 0.0
    %1022 = vmatpush.msra.mxu0 0.0
    %1023 = vmatpush.msra.mxu0 0.0
    %1024 = vmatpush.msra.mxu0 0.0
    %1025 = vmatpush.msra.mxu0 0.0
    %1026 = vmatpush.msra.mxu0 %v1010
    %1027 = vmatpush.msra.mxu0 %v1009
    %1028 = vmatpush.msra.mxu0 %v1008
    %1029 = vmatpush.msra.mxu0 %v1007
    %1030 = vmatmul.f32.gmra.mxu0 %v1012
    %v1031 = vpop.f32.mrf.mxu0
    %v1032 = vadd.f32 0.0, %v1031
    %1033 = vdwg.mxu0
    %v1034 = vadd.f32 %v1005, %v1032
    %v1035 = vld [vmem:[#allocation5] sm:$0xff]
    %v1036 = vxor.u32 %v1034, 2147483648
    %v1037 = vmul.f32 %v1036, 1.442695
    %v1038 = vpow.pop %v1037
    %v1039 = vadd.f32 %v1038, 1.0
    %v1040 = vrcp.pop %v1039
    %v1041 = vmul.f32 %v1039, %v1040
    %v1042 = vsub.f32 1.0, %v1041
    %v1043 = vmul.f32 %v1040, %v1042
    %v1044 = vadd.f32 %v1040, %v1043
    %vm1045 = vweird.f32 %v1039
    %vm1046 = vweird.f32 %v1040
    %vm1047 = vmor %vm1045, %vm1046
    %v1048 = vsel %vm1047, %v1040, %v1044
    %v1049 = vand.u32 2147483647, %v1039
    %vm1050 = vcmp.eq.f32.partialorder %v1049, 8.507059e+37
    %v1051 = vand.u32 %v1039, 2147483648
    %v1052 = vor.u32 1.1754944e-38, %v1051
    %v1053 = vsel %vm1050, %v1052, %v1048
    %v1054 = vmul.f32 1.0, %v1053
    %v1055 = vtanh.pop %v1034
    %1057 = vrot.lane.b32.xlu0 %v1035, 32
    %v1058 = vpop.permute.xlu0 %1057
    %v1060 = vmul.f32 %v1054, %v1058
    %1062 = vrot.lane.b32.xlu0 %v1055, 64
    %v1063 = vpop.permute.xlu0 %1062
    %v1065 = vmul.f32 %v1054, %v1063
    %1067 = vrot.lane.b32.xlu0 %v1065, 32
    %v1068 = vpop.permute.xlu0 %1067
    %v1070 = vadd.f32 %v1060, %v1068
    %v1071 = vtanh.pop %v1070
    %1073 = vrot.lane.b32.xlu0 %v1071, 64
    %v1074 = vpop.permute.xlu0 %1073
    %v1076 = vmul.f32 %v1054, %v1074
    %1078 = vrot.lane.b32.xlu0 %v1076, 32
    %v1079 = vpop.permute.xlu0 %1078
    %1081 = vst.msk [vmem:[#allocation4] sm:$0xff] %vm240, %v1079
    %1083 = vrot.lane.b32.xlu0 %v1070, 96
    %v1084 = vpop.permute.xlu0 %1083
    %1086 = vst.msk [vmem:[#allocation5] sm:$0xff] %vm240, %v1084
    %v1087 = vld [vmem:[%s171] sm:$0xff]
    %v1088 = vld [vmem:[#allocation4] sm:$0xff]
    %v1089 = vld [vmem:[%s5] sm:$0xff]
    %v1090 = vld [vmem:[%s5 + $0x8] sm:$0xff]
    %v1091 = vld [vmem:[%s5 + $0x10] sm:$0xff]
    %v1092 = vld [vmem:[%s5 + $0x18] sm:$0xff]
    %v1094 = vsel %vm240, %v1088, 0
    %1096 = vmatpush.msra.mxu0 0.0
    %1097 = vmatpush.msra.mxu0 0.0
    %1098 = vmatpush.msra.mxu0 0.0
    %1099 = vmatpush.msra.mxu0 0.0
    %1100 = vmatpush.msra.mxu0 0.0
    %1101 = vmatpush.msra.mxu0 0.0
    %1102 = vmatpush.msra.mxu0 0.0
    %1103 = vmatpush.msra.mxu0 0.0
    %1104 = vmatpush.msra.mxu0 0.0
    %1105 = vmatpush.msra.mxu0 0.0
    %1106 = vmatpush.msra.mxu0 0.0
    %1107 = vmatpush.msra.mxu0 0.0
    %1108 = vmatpush.msra.mxu0 %v1092
    %1109 = vmatpush.msra.mxu0 %v1091
    %1110 = vmatpush.msra.mxu0 %v1090
    %1111 = vmatpush.msra.mxu0 %v1089
    %1112 = vmatmul.f32.gmra.mxu0 %v1094
    %v1113 = vpop.f32.mrf.mxu0
    %v1114 = vadd.f32 0.0, %v1113
    %1115 = vdwg.mxu0
    %v1116 = vadd.f32 %v1087, %v1114
    %v1117 = vld [vmem:[#allocation5] sm:$0xff]
    %v1118 = vxor.u32 %v1116, 2147483648
    %v1119 = vmul.f32 %v1118, 1.442695
    %v1120 = vpow.pop %v1119
    %v1121 = vadd.f32 %v1120, 1.0
    %v1122 = vrcp.pop %v1121
    %v1123 = vmul.f32 %v1121, %v1122
    %v1124 = vsub.f32 1.0, %v1123
    %v1125 = vmul.f32 %v1122, %v1124
    %v1126 = vadd.f32 %v1122, %v1125
    %vm1127 = vweird.f32 %v1121
    %vm1128 = vweird.f32 %v1122
    %vm1129 = vmor %vm1127, %vm1128
    %v1130 = vsel %vm1129, %v1122, %v1126
    %v1131 = vand.u32 2147483647, %v1121
    %vm1132 = vcmp.eq.f32.partialorder %v1131, 8.507059e+37
    %v1133 = vand.u32 %v1121, 2147483648
    %v1134 = vor.u32 1.1754944e-38, %v1133
    %v1135 = vsel %vm1132, %v1134, %v1130
    %v1136 = vmul.f32 1.0, %v1135
    %v1137 = vtanh.pop %v1116
    %1139 = vrot.lane.b32.xlu0 %v1117, 32
    %v1140 = vpop.permute.xlu0 %1139
    %v1142 = vmul.f32 %v1136, %v1140
    %1144 = vrot.lane.b32.xlu0 %v1137, 64
    %v1145 = vpop.permute.xlu0 %1144
    %v1147 = vmul.f32 %v1136, %v1145
    %1149 = vrot.lane.b32.xlu0 %v1147, 32
    %v1150 = vpop.permute.xlu0 %1149
    %v1152 = vadd.f32 %v1142, %v1150
    %v1153 = vtanh.pop %v1152
    %1155 = vrot.lane.b32.xlu0 %v1153, 64
    %v1156 = vpop.permute.xlu0 %1155
    %v1158 = vmul.f32 %v1136, %v1156
    %1160 = vrot.lane.b32.xlu0 %v1158, 32
    %v1161 = vpop.permute.xlu0 %1160
    %1163 = vst.msk [vmem:[#allocation4] sm:$0xff] %vm240, %v1161
    %1165 = vrot.lane.b32.xlu0 %v1152, 96
    %v1166 = vpop.permute.xlu0 %1165
    %1168 = vst.msk [vmem:[#allocation5] sm:$0xff] %vm240, %v1166
    %v1169 = vld [vmem:[%s182] sm:$0xff]
    %v1170 = vld [vmem:[#allocation4] sm:$0xff]
    %v1171 = vld [vmem:[%s5] sm:$0xff]
    %v1172 = vld [vmem:[%s5 + $0x8] sm:$0xff]
    %v1173 = vld [vmem:[%s5 + $0x10] sm:$0xff]
    %v1174 = vld [vmem:[%s5 + $0x18] sm:$0xff]
    %v1176 = vsel %vm240, %v1170, 0
    %1178 = vmatpush.msra.mxu0 0.0
    %1179 = vmatpush.msra.mxu0 0.0
    %1180 = vmatpush.msra.mxu0 0.0
    %1181 = vmatpush.msra.mxu0 0.0
    %1182 = vmatpush.msra.mxu0 0.0
    %1183 = vmatpush.msra.mxu0 0.0
    %1184 = vmatpush.msra.mxu0 0.0
    %1185 = vmatpush.msra.mxu0 0.0
    %1186 = vmatpush.msra.mxu0 0.0
    %1187 = vmatpush.msra.mxu0 0.0
    %1188 = vmatpush.msra.mxu0 0.0
    %1189 = vmatpush.msra.mxu0 0.0
    %1190 = vmatpush.msra.mxu0 %v1174
    %1191 = vmatpush.msra.mxu0 %v1173
    %1192 = vmatpush.msra.mxu0 %v1172
    %1193 = vmatpush.msra.mxu0 %v1171
    %1194 = vmatmul.f32.gmra.mxu0 %v1176
    %v1195 = vpop.f32.mrf.mxu0
    %v1196 = vadd.f32 0.0, %v1195
    %1197 = vdwg.mxu0
    %v1198 = vadd.f32 %v1169, %v1196
    %v1199 = vld [vmem:[#allocation5] sm:$0xff]
    %v1200 = vxor.u32 %v1198, 2147483648
    %v1201 = vmul.f32 %v1200, 1.442695
    %v1202 = vpow.pop %v1201
    %v1203 = vadd.f32 %v1202, 1.0
    %v1204 = vrcp.pop %v1203
    %v1205 = vmul.f32 %v1203, %v1204
    %v1206 = vsub.f32 1.0, %v1205
    %v1207 = vmul.f32 %v1204, %v1206
    %v1208 = vadd.f32 %v1204, %v1207
    %vm1209 = vweird.f32 %v1203
    %vm1210 = vweird.f32 %v1204
    %vm1211 = vmor %vm1209, %vm1210
    %v1212 = vsel %vm1211, %v1204, %v1208
    %v1213 = vand.u32 2147483647, %v1203
    %vm1214 = vcmp.eq.f32.partialorder %v1213, 8.507059e+37
    %v1215 = vand.u32 %v1203, 2147483648
    %v1216 = vor.u32 1.1754944e-38, %v1215
    %v1217 = vsel %vm1214, %v1216, %v1212
    %v1218 = vmul.f32 1.0, %v1217
    %v1219 = vtanh.pop %v1198
    %1221 = vrot.lane.b32.xlu0 %v1199, 32
    %v1222 = vpop.permute.xlu0 %1221
    %v1224 = vmul.f32 %v1218, %v1222
    %1226 = vrot.lane.b32.xlu0 %v1219, 64
    %v1227 = vpop.permute.xlu0 %1226
    %v1229 = vmul.f32 %v1218, %v1227
    %1231 = vrot.lane.b32.xlu0 %v1229, 32
    %v1232 = vpop.permute.xlu0 %1231
    %v1234 = vadd.f32 %v1224, %v1232
    %v1235 = vtanh.pop %v1234
    %1237 = vrot.lane.b32.xlu0 %v1235, 64
    %v1238 = vpop.permute.xlu0 %1237
    %v1240 = vmul.f32 %v1218, %v1238
    %1242 = vrot.lane.b32.xlu0 %v1240, 32
    %v1243 = vpop.permute.xlu0 %1242
    %1245 = vst.msk [vmem:[#allocation4] sm:$0xff] %vm240, %v1243
    %1247 = vrot.lane.b32.xlu0 %v1234, 96
    %v1248 = vpop.permute.xlu0 %1247
    %1250 = vst.msk [vmem:[#allocation5] sm:$0xff] %vm240, %v1248
    %v1251 = vld [vmem:[%s193] sm:$0xff]
    %v1252 = vld [vmem:[#allocation4] sm:$0xff]
    %v1253 = vld [vmem:[%s5] sm:$0xff]
    %v1254 = vld [vmem:[%s5 + $0x8] sm:$0xff]
    %v1255 = vld [vmem:[%s5 + $0x10] sm:$0xff]
    %v1256 = vld [vmem:[%s5 + $0x18] sm:$0xff]
    %v1258 = vsel %vm240, %v1252, 0
    %1260 = vmatpush.msra.mxu0 0.0
    %1261 = vmatpush.msra.mxu0 0.0
    %1262 = vmatpush.msra.mxu0 0.0
    %1263 = vmatpush.msra.mxu0 0.0
    %1264 = vmatpush.msra.mxu0 0.0
    %1265 = vmatpush.msra.mxu0 0.0
    %1266 = vmatpush.msra.mxu0 0.0
    %1267 = vmatpush.msra.mxu0 0.0
    %1268 = vmatpush.msra.mxu0 0.0
    %1269 = vmatpush.msra.mxu0 0.0
    %1270 = vmatpush.msra.mxu0 0.0
    %1271 = vmatpush.msra.mxu0 0.0
    %1272 = vmatpush.msra.mxu0 %v1256
    %1273 = vmatpush.msra.mxu0 %v1255
    %1274 = vmatpush.msra.mxu0 %v1254
    %1275 = vmatpush.msra.mxu0 %v1253
    %1276 = vmatmul.f32.gmra.mxu0 %v1258
    %v1277 = vpop.f32.mrf.mxu0
    %v1278 = vadd.f32 0.0, %v1277
    %1279 = vdwg.mxu0
    %v1280 = vadd.f32 %v1251, %v1278
    %v1281 = vld [vmem:[#allocation5] sm:$0xff]
    %v1282 = vxor.u32 %v1280, 2147483648
    %v1283 = vmul.f32 %v1282, 1.442695
    %v1284 = vpow.pop %v1283
    %v1285 = vadd.f32 %v1284, 1.0
    %v1286 = vrcp.pop %v1285
    %v1287 = vmul.f32 %v1285, %v1286
    %v1288 = vsub.f32 1.0, %v1287
    %v1289 = vmul.f32 %v1286, %v1288
    %v1290 = vadd.f32 %v1286, %v1289
    %vm1291 = vweird.f32 %v1285
    %vm1292 = vweird.f32 %v1286
    %vm1293 = vmor %vm1291, %vm1292
    %v1294 = vsel %vm1293, %v1286, %v1290
    %v1295 = vand.u32 2147483647, %v1285
    %vm1296 = vcmp.eq.f32.partialorder %v1295, 8.507059e+37
    %v1297 = vand.u32 %v1285, 2147483648
    %v1298 = vor.u32 1.1754944e-38, %v1297
    %v1299 = vsel %vm1296, %v1298, %v1294
    %v1300 = vmul.f32 1.0, %v1299
    %v1301 = vtanh.pop %v1280
    %1303 = vrot.lane.b32.xlu0 %v1281, 32
    %v1304 = vpop.permute.xlu0 %1303
    %v1306 = vmul.f32 %v1300, %v1304
    %1308 = vrot.lane.b32.xlu0 %v1301, 64
    %v1309 = vpop.permute.xlu0 %1308
    %v1311 = vmul.f32 %v1300, %v1309
    %1313 = vrot.lane.b32.xlu0 %v1311, 32
    %v1314 = vpop.permute.xlu0 %1313
    %v1316 = vadd.f32 %v1306, %v1314
    %v1317 = vtanh.pop %v1316
    %1319 = vrot.lane.b32.xlu0 %v1317, 64
    %v1320 = vpop.permute.xlu0 %1319
    %v1322 = vmul.f32 %v1300, %v1320
    %1324 = vrot.lane.b32.xlu0 %v1322, 32
    %v1325 = vpop.permute.xlu0 %1324
    %1327 = vst.msk [vmem:[#allocation4] sm:$0xff] %vm240, %v1325
    %1329 = vrot.lane.b32.xlu0 %v1316, 96
    %v1330 = vpop.permute.xlu0 %1329
    %1332 = vst.msk [vmem:[#allocation5] sm:$0xff] %vm240, %v1330
    %v1333 = vld [vmem:[%s204] sm:$0xff]
    %v1334 = vld [vmem:[#allocation4] sm:$0xff]
    %v1335 = vld [vmem:[%s5] sm:$0xff]
    %v1336 = vld [vmem:[%s5 + $0x8] sm:$0xff]
    %v1337 = vld [vmem:[%s5 + $0x10] sm:$0xff]
    %v1338 = vld [vmem:[%s5 + $0x18] sm:$0xff]
    %v1340 = vsel %vm240, %v1334, 0
    %1342 = vmatpush.msra.mxu0 0.0
    %1343 = vmatpush.msra.mxu0 0.0
    %1344 = vmatpush.msra.mxu0 0.0
    %1345 = vmatpush.msra.mxu0 0.0
    %1346 = vmatpush.msra.mxu0 0.0
    %1347 = vmatpush.msra.mxu0 0.0
    %1348 = vmatpush.msra.mxu0 0.0
    %1349 = vmatpush.msra.mxu0 0.0
    %1350 = vmatpush.msra.mxu0 0.0
    %1351 = vmatpush.msra.mxu0 0.0
    %1352 = vmatpush.msra.mxu0 0.0
    %1353 = vmatpush.msra.mxu0 0.0
    %1354 = vmatpush.msra.mxu0 %v1338
    %1355 = vmatpush.msra.mxu0 %v1337
    %1356 = vmatpush.msra.mxu0 %v1336
    %1357 = vmatpush.msra.mxu0 %v1335
    %1358 = vmatmul.f32.gmra.mxu0 %v1340
    %v1359 = vpop.f32.mrf.mxu0
    %v1360 = vadd.f32 0.0, %v1359
    %1361 = vdwg.mxu0
    %v1362 = vadd.f32 %v1333, %v1360
    %v1363 = vld [vmem:[#allocation5] sm:$0xff]
    %v1364 = vxor.u32 %v1362, 2147483648
    %v1365 = vmul.f32 %v1364, 1.442695
    %v1366 = vpow.pop %v1365
    %v1367 = vadd.f32 %v1366, 1.0
    %v1368 = vrcp.pop %v1367
    %v1369 = vmul.f32 %v1367, %v1368
    %v1370 = vsub.f32 1.0, %v1369
    %v1371 = vmul.f32 %v1368, %v1370
    %v1372 = vadd.f32 %v1368, %v1371
    %vm1373 = vweird.f32 %v1367
    %vm1374 = vweird.f32 %v1368
    %vm1375 = vmor %vm1373, %vm1374
    %v1376 = vsel %vm1375, %v1368, %v1372
    %v1377 = vand.u32 2147483647, %v1367
    %vm1378 = vcmp.eq.f32.partialorder %v1377, 8.507059e+37
    %v1379 = vand.u32 %v1367, 2147483648
    %v1380 = vor.u32 1.1754944e-38, %v1379
    %v1381 = vsel %vm1378, %v1380, %v1376
    %v1382 = vmul.f32 1.0, %v1381
    %v1383 = vtanh.pop %v1362
    %1385 = vrot.lane.b32.xlu0 %v1363, 32
    %v1386 = vpop.permute.xlu0 %1385
    %v1388 = vmul.f32 %v1382, %v1386
    %1390 = vrot.lane.b32.xlu0 %v1383, 64
    %v1391 = vpop.permute.xlu0 %1390
    %v1393 = vmul.f32 %v1382, %v1391
    %1395 = vrot.lane.b32.xlu0 %v1393, 32
    %v1396 = vpop.permute.xlu0 %1395
    %v1398 = vadd.f32 %v1388, %v1396
    %v1399 = vtanh.pop %v1398
    %1401 = vrot.lane.b32.xlu0 %v1399, 64
    %v1402 = vpop.permute.xlu0 %1401
    %v1404 = vmul.f32 %v1382, %v1402
    %1406 = vrot.lane.b32.xlu0 %v1404, 32
    %v1407 = vpop.permute.xlu0 %1406
    %1409 = vst.msk [vmem:[#allocation4] sm:$0xff] %vm240, %v1407
    %1411 = vrot.lane.b32.xlu0 %v1398, 96
    %v1412 = vpop.permute.xlu0 %1411
    %1414 = vst.msk [vmem:[#allocation5] sm:$0xff] %vm240, %v1412
    %v1415 = vld [vmem:[%s215] sm:$0xff]
    %v1416 = vld [vmem:[#allocation4] sm:$0xff]
    %v1417 = vld [vmem:[%s5] sm:$0xff]
    %v1418 = vld [vmem:[%s5 + $0x8] sm:$0xff]
    %v1419 = vld [vmem:[%s5 + $0x10] sm:$0xff]
    %v1420 = vld [vmem:[%s5 + $0x18] sm:$0xff]
    %v1422 = vsel %vm240, %v1416, 0
    %1424 = vmatpush.msra.mxu0 0.0
    %1425 = vmatpush.msra.mxu0 0.0
    %1426 = vmatpush.msra.mxu0 0.0
    %1427 = vmatpush.msra.mxu0 0.0
    %1428 = vmatpush.msra.mxu0 0.0
    %1429 = vmatpush.msra.mxu0 0.0
    %1430 = vmatpush.msra.mxu0 0.0
    %1431 = vmatpush.msra.mxu0 0.0
    %1432 = vmatpush.msra.mxu0 0.0
    %1433 = vmatpush.msra.mxu0 0.0
    %1434 = vmatpush.msra.mxu0 0.0
    %1435 = vmatpush.msra.mxu0 0.0
    %1436 = vmatpush.msra.mxu0 %v1420
    %1437 = vmatpush.msra.mxu0 %v1419
    %1438 = vmatpush.msra.mxu0 %v1418
    %1439 = vmatpush.msra.mxu0 %v1417
    %1440 = vmatmul.f32.gmra.mxu0 %v1422
    %v1441 = vpop.f32.mrf.mxu0
    %v1442 = vadd.f32 0.0, %v1441
    %1443 = vdwg.mxu0
    %v1444 = vadd.f32 %v1415, %v1442
    %v1445 = vld [vmem:[#allocation5] sm:$0xff]
    %v1446 = vxor.u32 %v1444, 2147483648
    %v1447 = vmul.f32 %v1446, 1.442695
    %v1448 = vpow.pop %v1447
    %v1449 = vadd.f32 %v1448, 1.0
    %v1450 = vrcp.pop %v1449
    %v1451 = vmul.f32 %v1449, %v1450
    %v1452 = vsub.f32 1.0, %v1451
    %v1453 = vmul.f32 %v1450, %v1452
    %v1454 = vadd.f32 %v1450, %v1453
    %vm1455 = vweird.f32 %v1449
    %vm1456 = vweird.f32 %v1450
    %vm1457 = vmor %vm1455, %vm1456
    %v1458 = vsel %vm1457, %v1450, %v1454
    %v1459 = vand.u32 2147483647, %v1449
    %vm1460 = vcmp.eq.f32.partialorder %v1459, 8.507059e+37
    %v1461 = vand.u32 %v1449, 2147483648
    %v1462 = vor.u32 1.1754944e-38, %v1461
    %v1463 = vsel %vm1460, %v1462, %v1458
    %v1464 = vmul.f32 1.0, %v1463
    %v1465 = vtanh.pop %v1444
    %1467 = vrot.lane.b32.xlu0 %v1445, 32
    %v1468 = vpop.permute.xlu0 %1467
    %v1470 = vmul.f32 %v1464, %v1468
    %1472 = vrot.lane.b32.xlu0 %v1465, 64
    %v1473 = vpop.permute.xlu0 %1472
    %v1475 = vmul.f32 %v1464, %v1473
    %1477 = vrot.lane.b32.xlu0 %v1475, 32
    %v1478 = vpop.permute.xlu0 %1477
    %v1480 = vadd.f32 %v1470, %v1478
    %v1481 = vtanh.pop %v1480
    %1483 = vrot.lane.b32.xlu0 %v1481, 64
    %v1484 = vpop.permute.xlu0 %1483
    %v1486 = vmul.f32 %v1464, %v1484
    %1488 = vrot.lane.b32.xlu0 %v1486, 32
    %v1489 = vpop.permute.xlu0 %1488
    %1491 = vst.msk [vmem:[#allocation4] sm:$0xff] %vm240, %v1489
    %1493 = vrot.lane.b32.xlu0 %v1480, 96
    %v1494 = vpop.permute.xlu0 %1493
    %1496 = vst.msk [vmem:[#allocation5] sm:$0xff] %vm240, %v1494
    %v1497 = vld [vmem:[%s226] sm:$0xff]
    %v1498 = vld [vmem:[#allocation4] sm:$0xff]
    %v1499 = vld [vmem:[%s5] sm:$0xff]
    %v1500 = vld [vmem:[%s5 + $0x8] sm:$0xff]
    %v1501 = vld [vmem:[%s5 + $0x10] sm:$0xff]
    %v1502 = vld [vmem:[%s5 + $0x18] sm:$0xff]
    %v1504 = vsel %vm240, %v1498, 0
    %1506 = vmatpush.msra.mxu0 0.0
    %1507 = vmatpush.msra.mxu0 0.0
    %1508 = vmatpush.msra.mxu0 0.0
    %1509 = vmatpush.msra.mxu0 0.0
    %1510 = vmatpush.msra.mxu0 0.0
    %1511 = vmatpush.msra.mxu0 0.0
    %1512 = vmatpush.msra.mxu0 0.0
    %1513 = vmatpush.msra.mxu0 0.0
    %1514 = vmatpush.msra.mxu0 0.0
    %1515 = vmatpush.msra.mxu0 0.0
    %1516 = vmatpush.msra.mxu0 0.0
    %1517 = vmatpush.msra.mxu0 0.0
    %1518 = vmatpush.msra.mxu0 %v1502
    %1519 = vmatpush.msra.mxu0 %v1501
    %1520 = vmatpush.msra.mxu0 %v1500
    %1521 = vmatpush.msra.mxu0 %v1499
    %1522 = vmatmul.f32.gmra.mxu0 %v1504
    %v1523 = vpop.f32.mrf.mxu0
    %v1524 = vadd.f32 0.0, %v1523
    %1525 = vdwg.mxu0
    %v1526 = vadd.f32 %v1497, %v1524
    %v1527 = vld [vmem:[#allocation5] sm:$0xff]
    %v1528 = vxor.u32 %v1526, 2147483648
    %v1529 = vmul.f32 %v1528, 1.442695
    %v1530 = vpow.pop %v1529
    %v1531 = vadd.f32 %v1530, 1.0
    %v1532 = vrcp.pop %v1531
    %v1533 = vmul.f32 %v1531, %v1532
    %v1534 = vsub.f32 1.0, %v1533
    %v1535 = vmul.f32 %v1532, %v1534
    %v1536 = vadd.f32 %v1532, %v1535
    %vm1537 = vweird.f32 %v1531
    %vm1538 = vweird.f32 %v1532
    %vm1539 = vmor %vm1537, %vm1538
    %v1540 = vsel %vm1539, %v1532, %v1536
    %v1541 = vand.u32 2147483647, %v1531
    %vm1542 = vcmp.eq.f32.partialorder %v1541, 8.507059e+37
    %v1543 = vand.u32 %v1531, 2147483648
    %v1544 = vor.u32 1.1754944e-38, %v1543
    %v1545 = vsel %vm1542, %v1544, %v1540
    %v1546 = vmul.f32 1.0, %v1545
    %v1547 = vtanh.pop %v1526
    %1549 = vrot.lane.b32.xlu0 %v1527, 32
    %v1550 = vpop.permute.xlu0 %1549
    %v1552 = vmul.f32 %v1546, %v1550
    %1554 = vrot.lane.b32.xlu0 %v1547, 64
    %v1555 = vpop.permute.xlu0 %1554
    %v1557 = vmul.f32 %v1546, %v1555
    %1559 = vrot.lane.b32.xlu0 %v1557, 32
    %v1560 = vpop.permute.xlu0 %1559
    %v1562 = vadd.f32 %v1552, %v1560
    %v1563 = vtanh.pop %v1562
    %1565 = vrot.lane.b32.xlu0 %v1563, 64
    %v1566 = vpop.permute.xlu0 %1565
    %v1568 = vmul.f32 %v1546, %v1566
    %1570 = vrot.lane.b32.xlu0 %v1568, 32
    %v1571 = vpop.permute.xlu0 %1570
    %1573 = vst.msk [vmem:[#allocation4] sm:$0xff] %vm240, %v1571
    %1575 = vrot.lane.b32.xlu0 %v1562, 96
    %v1576 = vpop.permute.xlu0 %1575
    %1578 = vst.msk [vmem:[#allocation5] sm:$0xff] %vm240, %v1576
    %v1579 = vld [vmem:[%s237] sm:$0xff]
    %v1580 = vld [vmem:[#allocation4] sm:$0xff]
    %v1581 = vld [vmem:[%s5] sm:$0xff]
    %v1582 = vld [vmem:[%s5 + $0x8] sm:$0xff]
    %v1583 = vld [vmem:[%s5 + $0x10] sm:$0xff]
    %v1584 = vld [vmem:[%s5 + $0x18] sm:$0xff]
    %v1586 = vsel %vm240, %v1580, 0
    %1588 = vmatpush.msra.mxu0 0.0
    %1589 = vmatpush.msra.mxu0 0.0
    %1590 = vmatpush.msra.mxu0 0.0
    %1591 = vmatpush.msra.mxu0 0.0
    %1592 = vmatpush.msra.mxu0 0.0
    %1593 = vmatpush.msra.mxu0 0.0
    %1594 = vmatpush.msra.mxu0 0.0
    %1595 = vmatpush.msra.mxu0 0.0
    %1596 = vmatpush.msra.mxu0 0.0
    %1597 = vmatpush.msra.mxu0 0.0
    %1598 = vmatpush.msra.mxu0 0.0
    %1599 = vmatpush.msra.mxu0 0.0
    %1600 = vmatpush.msra.mxu0 %v1584
    %1601 = vmatpush.msra.mxu0 %v1583
    %1602 = vmatpush.msra.mxu0 %v1582
    %1603 = vmatpush.msra.mxu0 %v1581
    %1604 = vmatmul.f32.gmra.mxu0 %v1586
    %v1605 = vpop.f32.mrf.mxu0
    %v1606 = vadd.f32 0.0, %v1605
    %1607 = vdwg.mxu0
    %v1608 = vadd.f32 %v1579, %v1606
    %v1609 = vld [vmem:[#allocation5] sm:$0xff]
    %v1610 = vxor.u32 %v1608, 2147483648
    %v1611 = vmul.f32 %v1610, 1.442695
    %v1612 = vpow.pop %v1611
    %v1613 = vadd.f32 %v1612, 1.0
    %v1614 = vrcp.pop %v1613
    %v1615 = vmul.f32 %v1613, %v1614
    %v1616 = vsub.f32 1.0, %v1615
    %v1617 = vmul.f32 %v1614, %v1616
    %v1618 = vadd.f32 %v1614, %v1617
    %vm1619 = vweird.f32 %v1613
    %vm1620 = vweird.f32 %v1614
    %vm1621 = vmor %vm1619, %vm1620
    %v1622 = vsel %vm1621, %v1614, %v1618
    %v1623 = vand.u32 2147483647, %v1613
    %vm1624 = vcmp.eq.f32.partialorder %v1623, 8.507059e+37
    %v1625 = vand.u32 %v1613, 2147483648
    %v1626 = vor.u32 1.1754944e-38, %v1625
    %v1627 = vsel %vm1624, %v1626, %v1622
    %v1628 = vmul.f32 1.0, %v1627
    %v1629 = vtanh.pop %v1608
    %1631 = vrot.lane.b32.xlu0 %v1609, 32
    %v1632 = vpop.permute.xlu0 %1631
    %v1634 = vmul.f32 %v1628, %v1632
    %1636 = vrot.lane.b32.xlu0 %v1629, 64
    %v1637 = vpop.permute.xlu0 %1636
    %v1639 = vmul.f32 %v1628, %v1637
    %1641 = vrot.lane.b32.xlu0 %v1639, 32
    %v1642 = vpop.permute.xlu0 %1641
    %v1644 = vadd.f32 %v1634, %v1642
    %v1645 = vtanh.pop %v1644
    %1647 = vrot.lane.b32.xlu0 %v1645, 64
    %v1648 = vpop.permute.xlu0 %1647
    %v1650 = vmul.f32 %v1628, %v1648
    %1652 = vrot.lane.b32.xlu0 %v1650, 32
    %v1653 = vpop.permute.xlu0 %1652
    %1655 = vst.msk [vmem:[#allocation4] sm:$0xff] %vm240, %v1653
    %1657 = vrot.lane.b32.xlu0 %v1644, 96
    %v1658 = vpop.permute.xlu0 %1657
    %1660 = vst.msk [vmem:[#allocation5] sm:$0xff] %vm240, %v1658
    %v1661 = vld [vmem:[#allocation4] sm:$0xff]
    %v1662 = vld [vmem:[%s7] sm:$0xff]
    %v1663 = vld [vmem:[%s7 + $0x8] sm:$0xff]
    %v1664 = vld [vmem:[%s7 + $0x10] sm:$0xff]
    %v1665 = vld [vmem:[%s7 + $0x18] sm:$0xff]
    %v1666 = vld [vmem:[#allocation6] sm:$0x1]
    %v1668 = vperm.slane %v1666, 0
    %v1671 = vsel %vm240, %v1661, 0
    %1673 = vmatpush.msra.mxu0 0.0
    %1674 = vmatpush.msra.mxu0 0.0
    %1675 = vmatpush.msra.mxu0 0.0
    %1676 = vmatpush.msra.mxu0 0.0
    %1677 = vmatpush.msra.mxu0 0.0
    %1678 = vmatpush.msra.mxu0 0.0
    %1679 = vmatpush.msra.mxu0 0.0
    %1680 = vmatpush.msra.mxu0 0.0
    %1681 = vmatpush.msra.mxu0 0.0
    %1682 = vmatpush.msra.mxu0 0.0
    %1683 = vmatpush.msra.mxu0 0.0
    %1684 = vmatpush.msra.mxu0 0.0
    %1685 = vmatpush.msra.mxu0 %v1665
    %1686 = vmatpush.msra.mxu0 %v1664
    %1687 = vmatpush.msra.mxu0 %v1663
    %1688 = vmatpush.msra.mxu0 %v1662
    %1689 = vmatmul.f32.gmra.mxu0 %v1671
    %v1690 = vpop.f32.mrf.mxu0
    %v1691 = vadd.f32 %v1668, %v1690
    %1692 = vdwg.mxu0
    %v1693 = vmax.f32 %v1691, 0.0
    %v1694 = vld [vmem:[%s9] sm:$0xff]
    %v1695 = vld [vmem:[%s9 + $0x8] sm:$0xff]
    %v1696 = vld [vmem:[%s9 + $0x10] sm:$0xff]
    %v1697 = vld [vmem:[%s9 + $0x18] sm:$0xff]
    %v1698 = vld [vmem:[%s9 + $0x20] sm:$0xff]
    %v1699 = vld [vmem:[%s9 + $0x28] sm:$0xff]
    %v1700 = vld [vmem:[%s9 + $0x30] sm:$0xff]
    %v1701 = vld [vmem:[%s9 + $0x38] sm:$0xff]
    %v1702 = vld [vmem:[%s10] sm:$0x1]
    %v1704 = vperm.slane %v1702, 0
    %vm1706 = vcmask 523264
    %v1708 = vsel %vm1706, %v1693, 0
    %1710 = vmatpush.msra.mxu0 0.0
    %1711 = vmatpush.msra.mxu0 0.0
    %1712 = vmatpush.msra.mxu0 0.0
    %1713 = vmatpush.msra.mxu0 0.0
    %1714 = vmatpush.msra.mxu0 0.0
    %1715 = vmatpush.msra.mxu0 0.0
    %1716 = vmatpush.msra.mxu0 0.0
    %1717 = vmatpush.msra.mxu0 0.0
    %1718 = vmatpush.msra.mxu0 %v1701
    %1719 = vmatpush.msra.mxu0 %v1700
    %1720 = vmatpush.msra.mxu0 %v1699
    %1721 = vmatpush.msra.mxu0 %v1698
    %1722 = vmatpush.msra.mxu0 %v1697
    %1723 = vmatpush.msra.mxu0 %v1696
    %1724 = vmatpush.msra.mxu0 %v1695
    %1725 = vmatpush.msra.mxu0 %v1694
    %1726 = vmatmul.f32.gmra.mxu0 %v1708
    %v1727 = vpop.f32.mrf.mxu0
    %v1728 = vadd.f32 %v1704, %v1727
    %1729 = vdwg.mxu0
    %vm1730 = vcmask 31744
    %1731 = vst.msk [vmem:[%s11] sm:$0xff] %vm1730, %v1728
    // Predicated region
    $region50: #{enhanced_lstm_net_forward.1} parent=1 // pred_check
      _
    $region51: #{enhanced_lstm_net_forward.1} parent=1 // pred_check_branch
      %1733 = sbr.rel (0) target = $region53
    $region52: #{enhanced_lstm_net_forward.1} parent=1 // pred_region
      _
    $region53: #{enhanced_lstm_net_forward.1} parent=1 // pred_fallthru
      _
    // Predicated region
    $region54: #{enhanced_lstm_net_forward.1} parent=1 // pred_check
      _
    $region55: #{enhanced_lstm_net_forward.1} parent=1 // pred_check_branch
      %1735 = sbr.rel (0) target = $region57
    $region56: #{enhanced_lstm_net_forward.1} parent=1 // pred_region
      _
    $region57: #{enhanced_lstm_net_forward.1} parent=1 // pred_fallthru
      _
    %1736 = vsyncpa [#allocation7], 1

</llo_original>
